<compile_context>
chip_gen: v6e
topology: v6e:2x2x1
jax: 0.10.0
libtpu: 0.0.40
codegen_flags: <defaults>
</compile_context>

<pallas_src>
from functools import partial

import numpy as np
import jax
import jax.numpy as jnp
from jax.experimental import pallas as pl
from jax.experimental.pallas import tpu as pltpu


# -----------------------------------------------------------------------------
# constants (built once at import time)
# -----------------------------------------------------------------------------
def make_tridiag(n, w_left, w_diag, w_right):
    m = np.eye(n, dtype=np.float32)
    for i in range(n - 2):
        m[i + 1, i] = w_left
        m[i + 1, i + 1] = w_diag
        m[i + 1, i + 2] = w_right
    return m


_NC = 256  # channel dim fixed by the module's 256x256 `cal` parameter
_CAL = jnp.asarray(make_tridiag(_NC, 0.3, 0.8, 0.3))            # self.cal
_MASK02 = jnp.asarray(0.2 * make_tridiag(_NC, 1.0, 1.0, 1.0))   # 0.2 * wts_near(.,1,1,1)


def avg_pool_nchw(x, kh, kw):
    # same semantics as nn.AvgPool2d((kh, kw)) on NCHW input (H, W divisible by kernel)
    n, c, h, w = x.shape
    return x.reshape(n, c, h // kh, kh, w // kw, kw).mean(axis=(3, 5))


def _round_up(x, m):
    return ((x + m - 1) // m) * m


def _pick_tile_hw(hw, target=2048):
    """Largest multiple-of-128 divisor of hw not exceeding `target` (else hw itself)."""
    if hw % 128 != 0:
        # TODO(synk): non-128-multiple feature maps fall back to a single block.
        return hw
    t = min(target, hw)
    t -= t % 128
    for cand in range(t, 0, -128):
        if hw % cand == 0:
            return cand
    return hw


# -----------------------------------------------------------------------------
# kernel 1: prototype refinement (tiny, runs once)
#   w1 = X X^T ; row-softmax ; W3 = (1 + 0.2*mask*sm)*cal
#   protos = (W3 X)^T = Y W3^T ; output pre-scaled rows: 20 * protos * rsqrt(||p||^2)
# -----------------------------------------------------------------------------
def _refine_kernel(y_ref, mask02_ref, cal_ref, pro_ref):
    eps = 1e-4
    y = y_ref[...]                                     # (Npad, C) f32 (= n_sup_x.T, zero-padded rows)
    y_bf = y.astype(jnp.bfloat16)                      # bf16 MXU operands, f32 accumulation

    # w1 = X @ X.T with X = y.T  ->  (C, C); zero padded cells add nothing to the sum
    w1 = jax.lax.dot_general(y_bf, y_bf, (((0,), (0,)), ((), ())),
                             preferred_element_type=jnp.float32)
    w1 = w1 - jnp.max(w1, axis=1, keepdims=True)       # F.softmax(w1, dim=1) in f32
    e1 = jnp.exp(w1)
    sm = e1 / jnp.sum(e1, axis=1, keepdims=True)       # exact reciprocal (feeds two matmuls)
    w3 = (1.0 + mask02_ref[...] * sm) * cal_ref[...]

    # protos = (w3 @ X)^T = Y @ w3^T  ->  (Npad, C), lane-dense (C=256 lanes)
    protos = jax.lax.dot_general(y_bf, w3.astype(jnp.bfloat16),
                                 (((1,), (1,)), ((), ())),
                                 preferred_element_type=jnp.float32)

    # fold safe_norm row scale and the *20 into the stored prototypes
    p_ss = jnp.sum(protos * protos, axis=1, keepdims=True)
    scale = 20.0 * jax.lax.rsqrt(jnp.maximum(p_ss, eps * eps))
    pro_ref[...] = (protos * scale).astype(jnp.bfloat16)


def _refine_call(y_pad, mask02, cal):
    npad, c = y_pad.shape
    return pl.pallas_call(
        _refine_kernel,
        out_shape=jax.ShapeDtypeStruct((npad, c), jnp.bfloat16),
        grid=(1,),
        in_specs=[pl.BlockSpec((npad, c), lambda i: (0, 0)),
                  pl.BlockSpec((c, c), lambda i: (0, 0)),
                  pl.BlockSpec((c, c), lambda i: (0, 0))],
        out_specs=pl.BlockSpec((npad, c), lambda i: (0, 0)),
        compiler_params=pltpu.CompilerParams(dimension_semantics=("arbitrary",)),
    )(y_pad, mask02, cal)


# -----------------------------------------------------------------------------
# kernel 2: streaming cosine distances + masked softmax over cells (+ argmax)
#   grid over HW tiles ("parallel"); prototypes/aux resident via constant index_map
# -----------------------------------------------------------------------------
def _stream_kernel(pro_ref, aux_ref, q_ref, *out_refs, emit_dists, emit_assign):
    eps = 1e-4
    pro = pro_ref[...]                                  # (Npad, C) bf16, 20/||p||-scaled
    q = q_ref[...]                                      # (C, T) f32

    # per-column query norm -> post-matmul column scale (no q_n materialization)
    q_ss = jnp.sum(q * q, axis=0, keepdims=True)        # (1, T)
    colscale = jax.lax.rsqrt(jnp.maximum(q_ss, eps * eps))

    raw = jnp.dot(pro, q.astype(jnp.bfloat16),
                  preferred_element_type=jnp.float32)    # (Npad, T) f32 accumulate
    dists = raw * colscale                               # cosine * 20

    negb = aux_ref[:, 0:1]                               # (Npad, 1): 0 valid / -1e30 invalid
    masked = dists + negb
    m = jnp.max(masked, axis=0, keepdims=True)
    e = jnp.exp(masked - m)                              # exp(-huge) underflows to 0
    inv = pl.reciprocal(jnp.sum(e, axis=0, keepdims=True), approx=True)
    pred = jnp.sum(e * dists, axis=0, keepdims=True) * inv   # (1, T)

    i = 0
    if emit_dists:
        out_refs[i][...] = dists
        i += 1
    out_refs[i][...] = pred
    i += 1
    if emit_assign:
        cidx = jnp.broadcast_to(aux_ref[:, 1:2], dists.shape)   # compacted proto index
        cand = jnp.where(masked >= m, cidx, jnp.float32(1e9))
        out_refs[i][...] = jnp.min(cand, axis=0, keepdims=True)  # first-occurrence argmax


def _stream_call(pro, aux, q2d, *, emit_dists, emit_assign):
    npad, c = pro.shape
    _, hw = q2d.shape
    tile = _pick_tile_hw(hw)
    ntiles = max(1, hw // tile)

    out_shape, out_specs = [], []
    if emit_dists:
        out_shape.append(jax.ShapeDtypeStruct((npad, hw), jnp.float32))
        out_specs.append(pl.BlockSpec((npad, tile), lambda i: (0, i)))
    out_shape.append(jax.ShapeDtypeStruct((1, hw), jnp.float32))
    out_specs.append(pl.BlockSpec((1, tile), lambda i: (0, i)))
    if emit_assign:
        out_shape.append(jax.ShapeDtypeStruct((1, hw), jnp.float32))
        out_specs.append(pl.BlockSpec((1, tile), lambda i: (0, i)))

    # explicit VMEM budget (double-buffered tiles + residents), safe on v7x's 64 MiB
    vmem_need = (2 * npad * c * 2            # pro (bf16, resident)
                 + 2 * npad * 128 * 4        # aux (lane-padded)
                 + 2 * c * tile * 4          # q stream
                 + 2 * 2 * 8 * tile * 4)     # pred / assign blocks (sublane-padded)
    if emit_dists:
        vmem_need += 2 * npad * tile * 4
    vmem_limit = int(min(48 * 2**20, max(32 * 2**20, 2 * vmem_need + (1 << 20))))

    # TODO(synk): if the q-stream DMA is still exposed in xprof at large HW, bump the
    #             q BlockSpec to pipeline_mode=pl.Buffered(3) (account for it in the budget).
    outs = pl.pallas_call(
        partial(_stream_kernel, emit_dists=emit_dists, emit_assign=emit_assign),
        out_shape=tuple(out_shape),
        grid=(ntiles,),
        in_specs=[pl.BlockSpec((npad, c), lambda i: (0, 0)),   # resident prototypes
                  pl.BlockSpec((npad, 2), lambda i: (0, 0)),   # resident negb/cidx
                  pl.BlockSpec((c, tile), lambda i: (0, i))],  # streamed query
        out_specs=tuple(out_specs),
        compiler_params=pltpu.CompilerParams(
            dimension_semantics=("parallel",),                 # v7x: split HW across TCs
            vmem_limit_bytes=vmem_limit),
    )(pro, aux, q2d)

    outs = outs if isinstance(outs, (tuple, list)) else (outs,)
    i = 0
    dists = None
    if emit_dists:
        dists = outs[i]; i += 1
    pred = outs[i]; i += 1
    assign = outs[i] if emit_assign else None
    return dists, pred, assign


# -----------------------------------------------------------------------------
# jitted forward core (everything fixed-shape, one device program)
# -----------------------------------------------------------------------------
@partial(jax.jit, static_argnames=("proto_grid", "vis_sim", "emit_assign"))
def _gridconv_core(qry, sup_x, sup_y, thresh, *, proto_grid, vis_sim, emit_assign):
    # squeezes identical to the PyTorch module
    qry = qry[:, 0]            # (way=1, C, H, W)
    sup_x = sup_x[0, :, 0]     # (shot, C, H, W)
    sup_y = sup_y[0]           # (shot, 1, H, W)

    shot, nc, h, w = sup_x.shape
    assert nc == _NC, "channel dim must be 256 (fixed by the 256x256 `cal` parameter)"
    kh, kw = h // proto_grid[0], w // proto_grid[1]
    g = proto_grid[0] * proto_grid[1]
    n_cells = shot * g

    pooled_x = avg_pool_nchw(sup_x, kh, kw)          # (shot, C, gh, gw)
    pooled_y = avg_pool_nchw(sup_y, kh, kw)          # (shot, 1, gh, gw)

    # y_mat == n_sup_x.T of the torch view/permute chain: (Ncells, C), shot-major rows
    y_mat = jnp.transpose(pooled_x.reshape(shot, nc, g), (0, 2, 1)).reshape(n_cells, nc)
    y_mat = y_mat.astype(jnp.float32)
    sup_y_g = jnp.transpose(pooled_y.reshape(shot, 1, g), (1, 0, 2)).reshape(-1)

    # zero-pad cells to a sublane/bf16-friendly multiple; zero rows are exact no-ops
    # through the refinement (they contract to 0) and are masked out downstream.
    # TODO(synk): on v5e, padding to 128 (or batching shots) would fill the 128-row MXU;
    #             skipped here since it doubles the post-matmul VPU pass on v6e/v7x.
    npad = max(16, _round_up(n_cells, 16))
    pad = npad - n_cells
    y_pad = jnp.pad(y_mat, ((0, pad), (0, 0)))

    # fixed-shape replacement for `protos = n_sup_x[sup_y_g > thresh]`
    valid = sup_y_g > thresh
    valid_pad = jnp.pad(valid, (0, pad), constant_values=False)
    negb = jnp.where(valid_pad, 0.0, -1e30).astype(jnp.float32)
    # compacted prototype index so debug_assign matches the thresholded-subset argmax
    cidx = jnp.cumsum(valid_pad.astype(jnp.float32)) - 1.0
    aux = jnp.stack([negb, cidx], axis=1)            # (Npad, 2) packed small input
    # TODO(synk): if no cell passes the threshold the reference code crashes; here the
    #             masked softmax degenerates to a uniform average instead of asserting.

    # kernel 1: refined, pre-scaled prototypes (runs once; ~64 KiB HBM round-trip)
    pro = _refine_call(y_pad, _MASK02, _CAL)         # (Npad, C) bf16

    # kernel 2: stream the query over HW tiles
    q2d = qry[0].reshape(nc, h * w).astype(jnp.float32)      # (C, HW)
    dists2d, pred2d, assign2d = _stream_call(
        pro, aux, q2d, emit_dists=vis_sim, emit_assign=emit_assign)

    pred_grid = pred2d.reshape(1, 1, h, w)
    debug_assign = None if assign2d is None else assign2d.reshape(1, h, w)
    dists = None if dists2d is None else dists2d[:n_cells].reshape(1, n_cells, h, w)
    return pred_grid, debug_assign, dists


# -----------------------------------------------------------------------------
# public wrapper reproducing MultiProtoAsConv.forward(..., mode='gridconv')
# -----------------------------------------------------------------------------
def multi_proto_as_conv_forward(mol, qry, sup_x, sup_y, s_init_seed, mode, thresh,
                                proto_grid, isval=False, val_wsize=None, vis_sim=False,
                                compute_assign=True):
    if mode != 'gridconv':
        # TODO(synk): 'mask'/'gridconv+'/'bg'/'mask++' need sp_center_iter (data-dependent
        #             K-means) and dynamic-shape selections; only 'gridconv' is implemented.
        raise NotImplementedError(mode)
    if isval:
        # TODO(synk): isval/val_wsize dynamic pooling window not implemented.
        raise NotImplementedError("isval/val_wsize pooling path")
    # TODO(synk): self.attention(sup_x, qry) is dead compute in the 'gridconv' branch of
    #             the reference module (out_su unused) and is omitted here.
    pred_grid, debug_assign, dists = _gridconv_core(
        jnp.asarray(qry), jnp.asarray(sup_x), jnp.asarray(sup_y),
        jnp.asarray(thresh, jnp.float32),
        proto_grid=tuple(proto_grid), vis_sim=bool(vis_sim),
        emit_assign=bool(compute_assign))
    vis_dict = {'proto_assign': debug_assign}
    if vis_sim:
        # NOTE: raw_local_sims holds similarities for ALL grid cells (fixed shape); the
        #       PyTorch module returns only the thresholded subset (data-dependent shape).
        vis_dict['raw_local_sims'] = dists
    return pred_grid, [debug_assign], vis_dict


# -----------------------------------------------------------------------------
# plain numpy (float64) reference of the 'gridconv' branch, for the sanity check
# -----------------------------------------------------------------------------
def _reference_forward(qry, sup_x, sup_y, thresh, proto_grid):
    qry = np.asarray(qry, np.float64)
    sup_x = np.asarray(sup_x, np.float64)
    sup_y = np.asarray(sup_y, np.float64)
    q = qry[:, 0][0]
    sx = sup_x[0, :, 0]
    sy = sup_y[0]
    shot, nc, h, w = sx.shape
    kh, kw = h // proto_grid[0], w // proto_grid[1]
    px = avg_pool_nchw(sx, kh, kw)
    py = avg_pool_nchw(sy, kh, kw)
    g = proto_grid[0] * proto_grid[1]
    Y = px.reshape(shot, nc, g).transpose(0, 2, 1).reshape(shot * g, nc)
    X = Y.T
    ygrid = py.reshape(shot, 1, g).transpose(1, 0, 2).reshape(-1)
    cal = make_tridiag(nc, 0.3, 0.8, 0.3).astype(np.float64)
    mw = make_tridiag(nc, 1.0, 1.0, 1.0).astype(np.float64)
    w1 = X @ X.T
    w1 = w1 - w1.max(axis=1, keepdims=True)
    e = np.exp(w1)
    sm = e / e.sum(axis=1, keepdims=True)
    refined = ((1.0 + 0.2 * mw * sm) * cal) @ X                       # (C, N)
    sel = ygrid > thresh
    protos = refined.T[sel]                                           # (P, C)
    eps = 1e-4
    pro_n = protos / np.maximum(np.linalg.norm(protos, axis=1, keepdims=True), eps)
    q2d = q.reshape(nc, h * w)
    q_n = q2d / np.maximum(np.linalg.norm(q2d, axis=0, keepdims=True), eps)
    dists = pro_n @ q_n * 20.0                                        # (P, HW)
    se = np.exp(dists - dists.max(axis=0, keepdims=True))
    se = se / se.sum(axis=0, keepdims=True)
    pred = (se * dists).sum(axis=0)                                   # (HW,)
    return dists, pred, sel


if __name__ == "__main__":
    key = jax.random.PRNGKey(0)
    NC, H, W = 256, 16, 16          # channel dim must be 256 (matches the 256x256 `cal`)
    PROTO_GRID = (8, 8)             # pooling kernel = 16 // 8 = 2
    SHOT = 1
    THRESH = 0.5

    k1, k2, k3 = jax.random.split(key, 3)
    qry = jax.random.normal(k1, (1, 1, NC, H, W), dtype=jnp.float32)          # [way, nb, C, H, W]
    sup_x = jax.random.normal(k2, (1, SHOT, 1, NC, H, W), dtype=jnp.float32)  # [way, shot, nb, C, H, W]
    sup_y = (jax.random.uniform(k3, (1, SHOT, 1, H, W)) > 0.5).astype(jnp.float32)  # [way, shot, nb, H, W]
    s_init_seed = jnp.zeros((1, 4, 2), jnp.int32)   # unused in 'gridconv'

    # vis_sim=True variant (full dists written back)
    pred_grid, aux, vis_dict = multi_proto_as_conv_forward(
        'notAlign', qry, sup_x, sup_y, s_init_seed, 'gridconv', THRESH,
        proto_grid=PROTO_GRID, vis_sim=True)
    pred_grid = jax.block_until_ready(pred_grid)
    debug_assign = np.asarray(jax.block_until_ready(aux[0]))
    raw_sims = np.asarray(jax.block_until_ready(vis_dict['raw_local_sims']))

    # vis_sim=False variant (dists never written back to HBM)
    pred_grid2, aux2, vis_dict2 = multi_proto_as_conv_forward(
        'notAlign', qry, sup_x, sup_y, s_init_seed, 'gridconv', THRESH,
        proto_grid=PROTO_GRID, vis_sim=False)
    pred_grid2 = jax.block_until_ready(pred_grid2)
    assert 'raw_local_sims' not in vis_dict2

    # training hot-path variant (no dists, no argmax pass)
    pred_grid3, aux3, _ = multi_proto_as_conv_forward(
        'notAlign', qry, sup_x, sup_y, s_init_seed, 'gridconv', THRESH,
        proto_grid=PROTO_GRID, vis_sim=False, compute_assign=False)
    pred_grid3 = jax.block_until_ready(pred_grid3)
    assert aux3[0] is None

    # --- numerical sanity check against the float64 reference -----------------
    ref_dists, ref_pred, sel = _reference_forward(qry, sup_x, sup_y, THRESH, PROTO_GRID)
    assert sel.sum() > 0, "no prototype above threshold"
    n_cells = SHOT * PROTO_GRID[0] * PROTO_GRID[1]

    got_dists_valid = raw_sims.reshape(n_cells, H * W)[sel]    # compacted (valid) rows
    np.testing.assert_allclose(got_dists_valid, ref_dists, rtol=5e-2, atol=5e-2)
    np.testing.assert_allclose(np.asarray(pred_grid).reshape(-1), ref_pred,
                               rtol=5e-2, atol=5e-2)
    np.testing.assert_allclose(np.asarray(pred_grid2), np.asarray(pred_grid),
                               rtol=1e-4, atol=1e-4)
    np.testing.assert_allclose(np.asarray(pred_grid3), np.asarray(pred_grid),
                               rtol=1e-4, atol=1e-4)

    # argmax self-consistency: kernel 'assign' must equal the first-occurrence argmax of
    # the kernel's own thresholded (compacted) distances.
    assign_flat = debug_assign.reshape(-1)
    np.testing.assert_array_equal(
        assign_flat, np.argmax(got_dists_valid, axis=0).astype(np.float32))
    assert assign_flat.min() >= 0 and assign_flat.max() < sel.sum()

    assert pred_grid.shape == (1, 1, H, W)
    assert debug_assign.shape == (1, H, W)
    assert raw_sims.shape == (1, n_cells, H, W)

    print("KERNEL_OK")
</pallas_src>

<mosaic_0001>
module attributes {stable_mosaic.version = 11 : i64} {
  func.func @_refine_kernel(%arg0: i32, %arg1: memref<64x256xf32, #tpu.memory_space<vmem>>, %arg2: memref<256x256xf32, #tpu.memory_space<vmem>>, %arg3: memref<256x256xf32, #tpu.memory_space<vmem>>, %arg4: memref<64x256xbf16, #tpu.memory_space<vmem>>) attributes {dimension_semantics = [#tpu.dimension_semantics<arbitrary>], iteration_bounds = array<i64: 1>, scalar_prefetch = 0 : i64, scratch_operands = 0 : i64, tpu.core_type = #tpu.core_type<tc>, window_params = [{pipeline_mode = #tpu.pipeline_mode<synchronous>, transform_indices = @transform_0, window_bounds = array<i64: 64, 256>}, {pipeline_mode = #tpu.pipeline_mode<synchronous>, transform_indices = @transform_1, window_bounds = array<i64: 256, 256>}, {pipeline_mode = #tpu.pipeline_mode<synchronous>, transform_indices = @transform_2, window_bounds = array<i64: 256, 256>}, {pipeline_mode = #tpu.pipeline_mode<synchronous>, transform_indices = @transform_3, window_bounds = array<i64: 64, 256>}]} {
    %c0 = arith.constant 0 : index
    %c0_0 = arith.constant 0 : index
    %0 = vector.load %arg1[%c0, %c0_0] : memref<64x256xf32, #tpu.memory_space<vmem>>, vector<64x256xf32>
    %1 = arith.truncf %0 : vector<64x256xf32> to vector<64x256xbf16>
    %cst = arith.constant dense<0.000000e+00> : vector<256x256xf32>
    %2 = tpu.matmul %1, %1, %cst {dimension_numbers = #tpu.dot_dimension_numbers<[0], [0], [1], [1], [0, 1, 1, 1], [], []>} : vector<64x256xbf16>, vector<64x256xbf16>, vector<256x256xf32> -> vector<256x256xf32>
    %cst_1 = arith.constant dense<0xFF800000> : vector<256xf32>
    %3 = vector.multi_reduction <maximumf>, %2, %cst_1 [1] : vector<256x256xf32> to vector<256xf32>
    %4 = vector.shape_cast %3 : vector<256xf32> to vector<256x1xf32>
    %5 = vector.broadcast %4 : vector<256x1xf32> to vector<256x256xf32>
    %6 = arith.subf %2, %5 : vector<256x256xf32>
    %7 = math.exp %6 : vector<256x256xf32>
    %cst_2 = arith.constant dense<0.000000e+00> : vector<256xf32>
    %8 = vector.multi_reduction <add>, %7, %cst_2 [1] : vector<256x256xf32> to vector<256xf32>
    %9 = vector.shape_cast %8 : vector<256xf32> to vector<256x1xf32>
    %10 = vector.broadcast %9 : vector<256x1xf32> to vector<256x256xf32>
    %11 = arith.divf %7, %10 : vector<256x256xf32>
    %c0_3 = arith.constant 0 : index
    %c0_4 = arith.constant 0 : index
    %12 = vector.load %arg2[%c0_3, %c0_4] : memref<256x256xf32, #tpu.memory_space<vmem>>, vector<256x256xf32>
    %13 = arith.mulf %12, %11 : vector<256x256xf32>
    %cst_5 = arith.constant 1.000000e+00 : f32
    %14 = vector.broadcast %cst_5 : f32 to vector<256x256xf32>
    %15 = arith.addf %14, %13 : vector<256x256xf32>
    %c0_6 = arith.constant 0 : index
    %c0_7 = arith.constant 0 : index
    %16 = vector.load %arg3[%c0_6, %c0_7] : memref<256x256xf32, #tpu.memory_space<vmem>>, vector<256x256xf32>
    %17 = arith.mulf %15, %16 : vector<256x256xf32>
    %18 = arith.truncf %17 : vector<256x256xf32> to vector<256x256xbf16>
    %cst_8 = arith.constant dense<0.000000e+00> : vector<64x256xf32>
    %19 = tpu.matmul %1, %18, %cst_8 {dimension_numbers = #tpu.dot_dimension_numbers<[1], [1], [0], [0], [0, 0, 1, 0], [], []>} : vector<64x256xbf16>, vector<256x256xbf16>, vector<64x256xf32> -> vector<64x256xf32>
    %20 = arith.mulf %19, %19 : vector<64x256xf32>
    %cst_9 = arith.constant dense<0.000000e+00> : vector<64xf32>
    %21 = vector.multi_reduction <add>, %20, %cst_9 [1] : vector<64x256xf32> to vector<64xf32>
    %22 = vector.shape_cast %21 : vector<64xf32> to vector<64x1xf32>
    %cst_10 = arith.constant 9.99999993E-9 : f32
    %23 = vector.broadcast %cst_10 : f32 to vector<64x1xf32>
    %24 = arith.maximumf %22, %23 : vector<64x1xf32>
    %25 = math.rsqrt %24 : vector<64x1xf32>
    %cst_11 = arith.constant 2.000000e+01 : f32
    %26 = vector.broadcast %cst_11 : f32 to vector<64x1xf32>
    %27 = arith.mulf %26, %25 : vector<64x1xf32>
    %28 = vector.broadcast %27 : vector<64x1xf32> to vector<64x256xf32>
    %29 = arith.mulf %19, %28 : vector<64x256xf32>
    %30 = arith.truncf %29 : vector<64x256xf32> to vector<64x256xbf16>
    %c0_12 = arith.constant 0 : index
    %c0_13 = arith.constant 0 : index
    %31 = vector.load %arg4[%c0_12, %c0_13] : memref<64x256xbf16, #tpu.memory_space<vmem>>, vector<64x256xbf16>
    tpu.vector_store %arg4[%c0_12, %c0_13], %30 {strides = array<i32>} : memref<64x256xbf16, #tpu.memory_space<vmem>>, vector<64x256xbf16>,
    return
  }
  func.func @transform_0(%arg0: i32) -> (i32, i32) {
    %c0_i32 = arith.constant 0 : i32
    %c0_i32_0 = arith.constant 0 : i32
    %c0_i32_1 = arith.constant 0 : i32
    return %c0_i32, %c0_i32_0 : i32, i32
  }
  func.func @transform_1(%arg0: i32) -> (i32, i32) {
    %c0_i32 = arith.constant 0 : i32
    %c0_i32_0 = arith.constant 0 : i32
    %c0_i32_1 = arith.constant 0 : i32
    return %c0_i32, %c0_i32_0 : i32, i32
  }
  func.func @transform_2(%arg0: i32) -> (i32, i32) {
    %c0_i32 = arith.constant 0 : i32
    %c0_i32_0 = arith.constant 0 : i32
    %c0_i32_1 = arith.constant 0 : i32
    return %c0_i32, %c0_i32_0 : i32, i32
  }
  func.func @transform_3(%arg0: i32) -> (i32, i32) {
    %c0_i32 = arith.constant 0 : i32
    %c0_i32_0 = arith.constant 0 : i32
    %c0_i32_1 = arith.constant 0 : i32
    return %c0_i32, %c0_i32_0 : i32, i32
  }
}

module attributes {stable_mosaic.version = 11 : i64} {
  func.func @_stream_kernel(%arg0: i32, %arg1: memref<64x256xbf16, #tpu.memory_space<vmem>>, %arg2: memref<64x2xf32, #tpu.memory_space<vmem>>, %arg3: memref<256x256xf32, #tpu.memory_space<vmem>>, %arg4: memref<64x256xf32, #tpu.memory_space<vmem>>, %arg5: memref<1x256xf32, #tpu.memory_space<vmem>>, %arg6: memref<1x256xf32, #tpu.memory_space<vmem>>) attributes {dimension_semantics = [#tpu.dimension_semantics<parallel>], iteration_bounds = array<i64: 1>, scalar_prefetch = 0 : i64, scratch_operands = 0 : i64, tpu.core_type = #tpu.core_type<tc>, window_params = [{pipeline_mode = #tpu.pipeline_mode<synchronous>, transform_indices = @transform_0, window_bounds = array<i64: 64, 256>}, {pipeline_mode = #tpu.pipeline_mode<synchronous>, transform_indices = @transform_1, window_bounds = array<i64: 64, 2>}, {transform_indices = @transform_2, window_bounds = array<i64: 256, 256>}, {transform_indices = @transform_3, window_bounds = array<i64: 64, 256>}, {transform_indices = @transform_4, window_bounds = array<i64: 1, 256>}, {transform_indices = @transform_5, window_bounds = array<i64: 1, 256>}]} {
    %c0 = arith.constant 0 : index
    %c0_0 = arith.constant 0 : index
    %0 = vector.load %arg1[%c0, %c0_0] : memref<64x256xbf16, #tpu.memory_space<vmem>>, vector<64x256xbf16>
    %c0_1 = arith.constant 0 : index
    %c0_2 = arith.constant 0 : index
    %1 = vector.load %arg3[%c0_1, %c0_2] : memref<256x256xf32, #tpu.memory_space<vmem>>, vector<256x256xf32>
    %2 = arith.mulf %1, %1 : vector<256x256xf32>
    %cst = arith.constant dense<0.000000e+00> : vector<256xf32>
    %3 = vector.multi_reduction <add>, %2, %cst [0] : vector<256x256xf32> to vector<256xf32>
    %4 = vector.shape_cast %3 : vector<256xf32> to vector<1x256xf32>
    %cst_3 = arith.constant 9.99999993E-9 : f32
    %5 = vector.broadcast %cst_3 : f32 to vector<1x256xf32>
    %6 = arith.maximumf %4, %5 : vector<1x256xf32>
    %7 = math.rsqrt %6 : vector<1x256xf32>
    %8 = arith.truncf %1 : vector<256x256xf32> to vector<256x256xbf16>
    %cst_4 = arith.constant dense<0.000000e+00> : vector<64x256xf32>
    %9 = tpu.matmul %0, %8, %cst_4 {dimension_numbers = #tpu.dot_dimension_numbers<[1], [0], [0], [1], [0, 0, 1, 1], [], []>} : vector<64x256xbf16>, vector<256x256xbf16>, vector<64x256xf32> -> vector<64x256xf32>
    %10 = vector.broadcast %7 : vector<1x256xf32> to vector<64x256xf32>
    %11 = arith.mulf %9, %10 : vector<64x256xf32>
    %c0_5 = arith.constant 0 : index
    %c0_6 = arith.constant 0 : index
    %12 = vector.load %arg2[%c0_5, %c0_6] : memref<64x2xf32, #tpu.memory_space<vmem>>, vector<64x1xf32>
    %13 = vector.broadcast %12 : vector<64x1xf32> to vector<64x256xf32>
    %14 = arith.addf %11, %13 : vector<64x256xf32>
    %cst_7 = arith.constant dense<0xFF800000> : vector<256xf32>
    %15 = vector.multi_reduction <maximumf>, %14, %cst_7 [0] : vector<64x256xf32> to vector<256xf32>
    %16 = vector.shape_cast %15 : vector<256xf32> to vector<1x256xf32>
    %17 = vector.broadcast %16 : vector<1x256xf32> to vector<64x256xf32>
    %18 = arith.subf %14, %17 : vector<64x256xf32>
    %19 = math.exp %18 : vector<64x256xf32>
    %cst_8 = arith.constant dense<0.000000e+00> : vector<256xf32>
    %20 = vector.multi_reduction <add>, %19, %cst_8 [0] : vector<64x256xf32> to vector<256xf32>
    %21 = vector.shape_cast %20 : vector<256xf32> to vector<1x256xf32>
    %22 = tpu.reciprocal %21 {approx = true} : vector<1x256xf32> -> vector<1x256xf32>
    %23 = arith.mulf %19, %11 : vector<64x256xf32>
    %cst_9 = arith.constant dense<0.000000e+00> : vector<256xf32>
    %24 = vector.multi_reduction <add>, %23, %cst_9 [0] : vector<64x256xf32> to vector<256xf32>
    %25 = vector.shape_cast %24 : vector<256xf32> to vector<1x256xf32>
    %26 = arith.mulf %25, %22 : vector<1x256xf32>
    %c0_10 = arith.constant 0 : index
    %c0_11 = arith.constant 0 : index
    %27 = vector.load %arg4[%c0_10, %c0_11] : memref<64x256xf32, #tpu.memory_space<vmem>>, vector<64x256xf32>
    tpu.vector_store %arg4[%c0_10, %c0_11], %11 {strides = array<i32>} : memref<64x256xf32, #tpu.memory_space<vmem>>, vector<64x256xf32>,
    %c0_12 = arith.constant 0 : index
    %c0_13 = arith.constant 0 : index
    %28 = vector.load %arg5[%c0_12, %c0_13] : memref<1x256xf32, #tpu.memory_space<vmem>>, vector<1x256xf32>
    tpu.vector_store %arg5[%c0_12, %c0_13], %26 {strides = array<i32>} : memref<1x256xf32, #tpu.memory_space<vmem>>, vector<1x256xf32>,
    %c0_14 = arith.constant 0 : index
    %c1 = arith.constant 1 : index
    %29 = vector.load %arg2[%c0_14, %c1] : memref<64x2xf32, #tpu.memory_space<vmem>>, vector<64x1xf32>
    %30 = vector.shape_cast %29 : vector<64x1xf32> to vector<64x1xf32>
    %31 = vector.broadcast %30 : vector<64x1xf32> to vector<64x256xf32>
    %32 = vector.broadcast %16 : vector<1x256xf32> to vector<64x256xf32>
    %33 = arith.cmpf oge, %14, %32 : vector<64x256xf32>
    %cst_15 = arith.constant 1.000000e+09 : f32
    %34 = vector.broadcast %cst_15 : f32 to vector<64x256xf32>
    %35 = arith.select %33, %31, %34 : vector<64x256xi1>, vector<64x256xf32>
    %cst_16 = arith.constant dense<0x7F800000> : vector<256xf32>
    %36 = vector.multi_reduction <minimumf>, %35, %cst_16 [0] : vector<64x256xf32> to vector<256xf32>
    %37 = vector.shape_cast %36 : vector<256xf32> to vector<1x256xf32>
    %c0_17 = arith.constant 0 : index
    %c0_18 = arith.constant 0 : index
    %38 = vector.load %arg6[%c0_17, %c0_18] : memref<1x256xf32, #tpu.memory_space<vmem>>, vector<1x256xf32>
    tpu.vector_store %arg6[%c0_17, %c0_18], %37 {strides = array<i32>} : memref<1x256xf32, #tpu.memory_space<vmem>>, vector<1x256xf32>,
    return
  }
  func.func @transform_0(%arg0: i32) -> (i32, i32) {
    %c0_i32 = arith.constant 0 : i32
    %c0_i32_0 = arith.constant 0 : i32
    %c0_i32_1 = arith.constant 0 : i32
    return %c0_i32, %c0_i32_0 : i32, i32
  }
  func.func @transform_1(%arg0: i32) -> (i32, i32) {
    %c0_i32 = arith.constant 0 : i32
    %c0_i32_0 = arith.constant 0 : i32
    %c0_i32_1 = arith.constant 0 : i32
    return %c0_i32, %c0_i32_0 : i32, i32
  }
  func.func @transform_2(%arg0: i32) -> (i32, i32) {
    %c0_i32 = arith.constant 0 : i32
    %c0_i32_0 = arith.constant 0 : i32
    return %c0_i32, %arg0 : i32, i32
  }
  func.func @transform_3(%arg0: i32) -> (i32, i32) {
    %c0_i32 = arith.constant 0 : i32
    %c0_i32_0 = arith.constant 0 : i32
    return %c0_i32, %arg0 : i32, i32
  }
  func.func @transform_4(%arg0: i32) -> (i32, i32) {
    %c0_i32 = arith.constant 0 : i32
    %c0_i32_0 = arith.constant 0 : i32
    return %c0_i32, %arg0 : i32, i32
  }
  func.func @transform_5(%arg0: i32) -> (i32, i32) {
    %c0_i32 = arith.constant 0 : i32
    %c0_i32_0 = arith.constant 0 : i32
    return %c0_i32, %arg0 : i32, i32
  }
}

</mosaic_0001>

<llo_original>
// kernel: squeeze.4
$region0: #{squeeze.4}
  %s0 = inlined_call_operand.hbm [shape: f32[1,1,1,16,16], index: 0, kind: input, shape index: {}]
  %s1 = inlined_call_operand.vmem [shape: f32[8,2,8,2], index: 1, kind: output, shape index: {}]
  $region1: #{squeeze.4} parent=0
    #allocation0 [shape = 'u8[8192]{0}', space=vmem, size = 0x2000, scoped, tag = 'operand span for operand 0']
    #allocation1 [shape = 's32[1]{0}', space=sflag, size = 0x4, scoped, tag = 'scoped memory for squeeze.4']
    %2 = vsyncpa [#allocation1], 0
    %s4 = ssub.s32 256, 256
    %5 = vsyncadd [#allocation1], %s4
    %s7 = sshll.u32 [#allocation0], 4
    %s8 = int_to_ptr.vmem [resolvable:$true] %s7
    %10 = dma.hbm_to_vmem [thread:$0]  %s0, 256, %s8, [#allocation1]
    %11 = dma.done [#allocation1], 256
    %v12 = vld [vmem:[#allocation0] sm:$0xff]
    %vm13 = vcmask 15360
    %14 = vst.msk [vmem:[%s1] ss:$8 sm:$0xf] %vm13, %v12
    %15 = vst.msk [vmem:[%s1] ss:$8 sm:$0xf0] %vm13, %v12
    %s16 = scalar_lea.vmem [#allocation0], 8
    %v17 = vld [vmem:[%s16] sm:$0xff]
    %vm18 = vcmask 15360
    %s19 = scalar_lea.vmem %s1, 64
    %20 = vst.msk [vmem:[%s19] ss:$8 sm:$0xf] %vm18, %v17
    %s21 = scalar_lea.vmem %s1, 64
    %22 = vst.msk [vmem:[%s21] ss:$8 sm:$0xf0] %vm18, %v17
    %v23 = vld [vmem:[#allocation0] sm:$0xff]
    %24 = vrot.lane.b32.xlu0 %v23, 126
    %v25 = vpop.permute.xlu0 %24
    %vm26 = vcmask 15360
    %s27 = scalar_lea.vmem %s1, 1
    %28 = vst.msk [vmem:[%s27] ss:$8 sm:$0xf] %vm26, %v25
    %s29 = scalar_lea.vmem %s1, 1
    %30 = vst.msk [vmem:[%s29] ss:$8 sm:$0xf0] %vm26, %v25
    %s31 = scalar_lea.vmem [#allocation0], 8
    %v32 = vld [vmem:[%s31] sm:$0xff]
    %33 = vrot.lane.b32.xlu0 %v32, 126
    %v34 = vpop.permute.xlu0 %33
    %vm35 = vcmask 15360
    %s36 = scalar_lea.vmem %s1, 65
    %37 = vst.msk [vmem:[%s36] ss:$8 sm:$0xf] %vm35, %v34
    %s38 = scalar_lea.vmem %s1, 65
    %39 = vst.msk [vmem:[%s38] ss:$8 sm:$0xf0] %vm35, %v34
    %v40 = vld [vmem:[#allocation0] sm:$0xff]
    %41 = vrot.lane.b32.xlu0 %v40, 124
    %v42 = vpop.permute.xlu0 %41
    %vm43 = vcmask 15360
    %s44 = scalar_lea.vmem %s1, 2
    %45 = vst.msk [vmem:[%s44] ss:$8 sm:$0xf] %vm43, %v42
    %s46 = scalar_lea.vmem %s1, 2
    %47 = vst.msk [vmem:[%s46] ss:$8 sm:$0xf0] %vm43, %v42
    %s48 = scalar_lea.vmem [#allocation0], 8
    %v49 = vld [vmem:[%s48] sm:$0xff]
    %50 = vrot.lane.b32.xlu0 %v49, 124
    %v51 = vpop.permute.xlu0 %50
    %vm52 = vcmask 15360
    %s53 = scalar_lea.vmem %s1, 66
    %54 = vst.msk [vmem:[%s53] ss:$8 sm:$0xf] %vm52, %v51
    %s55 = scalar_lea.vmem %s1, 66
    %56 = vst.msk [vmem:[%s55] ss:$8 sm:$0xf0] %vm52, %v51
    %v57 = vld [vmem:[#allocation0] sm:$0xff]
    %58 = vrot.lane.b32.xlu0 %v57, 122
    %v59 = vpop.permute.xlu0 %58
    %vm60 = vcmask 15360
    %s61 = scalar_lea.vmem %s1, 3
    %62 = vst.msk [vmem:[%s61] ss:$8 sm:$0xf] %vm60, %v59
    %s63 = scalar_lea.vmem %s1, 3
    %64 = vst.msk [vmem:[%s63] ss:$8 sm:$0xf0] %vm60, %v59
    %s65 = scalar_lea.vmem [#allocation0], 8
    %v66 = vld [vmem:[%s65] sm:$0xff]
    %67 = vrot.lane.b32.xlu0 %v66, 122
    %v68 = vpop.permute.xlu0 %67
    %vm69 = vcmask 15360
    %s70 = scalar_lea.vmem %s1, 67
    %71 = vst.msk [vmem:[%s70] ss:$8 sm:$0xf] %vm69, %v68
    %s72 = scalar_lea.vmem %s1, 67
    %73 = vst.msk [vmem:[%s72] ss:$8 sm:$0xf0] %vm69, %v68
    %v74 = vld [vmem:[#allocation0] sm:$0xff]
    %75 = vrot.lane.b32.xlu0 %v74, 120
    %v76 = vpop.permute.xlu0 %75
    %vm77 = vcmask 15360
    %s78 = scalar_lea.vmem %s1, 4
    %79 = vst.msk [vmem:[%s78] ss:$8 sm:$0xf] %vm77, %v76
    %s80 = scalar_lea.vmem %s1, 4
    %81 = vst.msk [vmem:[%s80] ss:$8 sm:$0xf0] %vm77, %v76
    %s82 = scalar_lea.vmem [#allocation0], 8
    %v83 = vld [vmem:[%s82] sm:$0xff]
    %84 = vrot.lane.b32.xlu0 %v83, 120
    %v85 = vpop.permute.xlu0 %84
    %vm86 = vcmask 15360
    %s87 = scalar_lea.vmem %s1, 68
    %88 = vst.msk [vmem:[%s87] ss:$8 sm:$0xf] %vm86, %v85
    %s89 = scalar_lea.vmem %s1, 68
    %90 = vst.msk [vmem:[%s89] ss:$8 sm:$0xf0] %vm86, %v85
    %v91 = vld [vmem:[#allocation0] sm:$0xff]
    %92 = vrot.lane.b32.xlu0 %v91, 118
    %v93 = vpop.permute.xlu0 %92
    %vm94 = vcmask 15360
    %s95 = scalar_lea.vmem %s1, 5
    %96 = vst.msk [vmem:[%s95] ss:$8 sm:$0xf] %vm94, %v93
    %s97 = scalar_lea.vmem %s1, 5
    %98 = vst.msk [vmem:[%s97] ss:$8 sm:$0xf0] %vm94, %v93
    %s99 = scalar_lea.vmem [#allocation0], 8
    %v100 = vld [vmem:[%s99] sm:$0xff]
    %101 = vrot.lane.b32.xlu0 %v100, 118
    %v102 = vpop.permute.xlu0 %101
    %vm103 = vcmask 15360
    %s104 = scalar_lea.vmem %s1, 69
    %105 = vst.msk [vmem:[%s104] ss:$8 sm:$0xf] %vm103, %v102
    %s106 = scalar_lea.vmem %s1, 69
    %107 = vst.msk [vmem:[%s106] ss:$8 sm:$0xf0] %vm103, %v102
    %v108 = vld [vmem:[#allocation0] sm:$0xff]
    %109 = vrot.lane.b32.xlu0 %v108, 116
    %v110 = vpop.permute.xlu0 %109
    %vm111 = vcmask 15360
    %s112 = scalar_lea.vmem %s1, 6
    %113 = vst.msk [vmem:[%s112] ss:$8 sm:$0xf] %vm111, %v110
    %s114 = scalar_lea.vmem %s1, 6
    %115 = vst.msk [vmem:[%s114] ss:$8 sm:$0xf0] %vm111, %v110
    %s116 = scalar_lea.vmem [#allocation0], 8
    %v117 = vld [vmem:[%s116] sm:$0xff]
    %118 = vrot.lane.b32.xlu0 %v117, 116
    %v119 = vpop.permute.xlu0 %118
    %vm120 = vcmask 15360
    %s121 = scalar_lea.vmem %s1, 70
    %122 = vst.msk [vmem:[%s121] ss:$8 sm:$0xf] %vm120, %v119
    %s123 = scalar_lea.vmem %s1, 70
    %124 = vst.msk [vmem:[%s123] ss:$8 sm:$0xf0] %vm120, %v119
    %v125 = vld [vmem:[#allocation0] sm:$0xff]
    %126 = vrot.lane.b32.xlu0 %v125, 114
    %v127 = vpop.permute.xlu0 %126
    %vm128 = vcmask 15360
    %s129 = scalar_lea.vmem %s1, 7
    %130 = vst.msk [vmem:[%s129] ss:$8 sm:$0xf] %vm128, %v127
    %s131 = scalar_lea.vmem %s1, 7
    %132 = vst.msk [vmem:[%s131] ss:$8 sm:$0xf0] %vm128, %v127
    %s133 = scalar_lea.vmem [#allocation0], 8
    %v134 = vld [vmem:[%s133] sm:$0xff]
    %135 = vrot.lane.b32.xlu0 %v134, 114
    %v136 = vpop.permute.xlu0 %135
    %vm137 = vcmask 15360
    %s138 = scalar_lea.vmem %s1, 71
    %139 = vst.msk [vmem:[%s138] ss:$8 sm:$0xf] %vm137, %v136
    %s140 = scalar_lea.vmem %s1, 71
    %141 = vst.msk [vmem:[%s140] ss:$8 sm:$0xf0] %vm137, %v136
    %142 = vsyncpa [#allocation1], 1

// kernel: squeeze.3
$region0: #{squeeze.3}
  %s0 = inlined_call_operand.vmem [shape: f32[1,1,1,256,16,16], index: 0, kind: input, shape index: {}]
  %s1 = inlined_call_operand.vmem [shape: f32[256,8,2,8,2], index: 1, kind: output, shape index: {}]
  $region1: #{squeeze.3} parent=0
    #allocation0 [shape = 'u8[1048576]{0}', space=vmem, size = 0x100000, scoped, tag = 'scoped mem for output reshape']
    %v2 = vld [vmem:[%s0] sm:$0xff]
    %3 = vst [vmem:[#allocation0] sm:$0x3] %v2
    %s4 = scalar_lea.vmem [#allocation0], 14
    %5 = vst [vmem:[%s4] sm:$0xc] %v2
    %s6 = scalar_lea.vmem [#allocation0], 28
    %7 = vst [vmem:[%s6] sm:$0x30] %v2
    %s8 = scalar_lea.vmem [#allocation0], 42
    %9 = vst [vmem:[%s8] sm:$0xc0] %v2
    %s10 = scalar_lea.vmem %s0, 8
    %v11 = vld [vmem:[%s10] sm:$0xff]
    %s12 = scalar_lea.vmem [#allocation0], 8
    %13 = vst [vmem:[%s12] sm:$0x3] %v11
    %s14 = scalar_lea.vmem [#allocation0], 22
    %15 = vst [vmem:[%s14] sm:$0xc] %v11
    %s16 = scalar_lea.vmem [#allocation0], 36
    %17 = vst [vmem:[%s16] sm:$0x30] %v11
    %s18 = scalar_lea.vmem [#allocation0], 50
    %19 = vst [vmem:[%s18] sm:$0xc0] %v11
    %s20 = scalar_lea.vmem %s0, 16
    %v21 = vld [vmem:[%s20] sm:$0xff]
    %s22 = scalar_lea.vmem [#allocation0], 64
    %23 = vst [vmem:[%s22] sm:$0x3] %v21
    %s24 = scalar_lea.vmem [#allocation0], 78
    %25 = vst [vmem:[%s24] sm:$0xc] %v21
    %s26 = scalar_lea.vmem [#allocation0], 92
    %27 = vst [vmem:[%s26] sm:$0x30] %v21
    %s28 = scalar_lea.vmem [#allocation0], 106
    %29 = vst [vmem:[%s28] sm:$0xc0] %v21
    %s30 = scalar_lea.vmem %s0, 24
    %v31 = vld [vmem:[%s30] sm:$0xff]
    %s32 = scalar_lea.vmem [#allocation0], 72
    %33 = vst [vmem:[%s32] sm:$0x3] %v31
    %s34 = scalar_lea.vmem [#allocation0], 86
    %35 = vst [vmem:[%s34] sm:$0xc] %v31
    %s36 = scalar_lea.vmem [#allocation0], 100
    %37 = vst [vmem:[%s36] sm:$0x30] %v31
    %s38 = scalar_lea.vmem [#allocation0], 114
    %39 = vst [vmem:[%s38] sm:$0xc0] %v31
    %s40 = scalar_lea.vmem %s0, 32
    %v41 = vld [vmem:[%s40] sm:$0xff]
    %s42 = scalar_lea.vmem [#allocation0], 128
    %43 = vst [vmem:[%s42] sm:$0x3] %v41
    %s44 = scalar_lea.vmem [#allocation0], 142
    %45 = vst [vmem:[%s44] sm:$0xc] %v41
    %s46 = scalar_lea.vmem [#allocation0], 156
    %47 = vst [vmem:[%s46] sm:$0x30] %v41
    %s48 = scalar_lea.vmem [#allocation0], 170
    %49 = vst [vmem:[%s48] sm:$0xc0] %v41
    %s50 = scalar_lea.vmem %s0, 40
    %v51 = vld [vmem:[%s50] sm:$0xff]
    %s52 = scalar_lea.vmem [#allocation0], 136
    %53 = vst [vmem:[%s52] sm:$0x3] %v51
    %s54 = scalar_lea.vmem [#allocation0], 150
    %55 = vst [vmem:[%s54] sm:$0xc] %v51
    %s56 = scalar_lea.vmem [#allocation0], 164
    %57 = vst [vmem:[%s56] sm:$0x30] %v51
    %s58 = scalar_lea.vmem [#allocation0], 178
    %59 = vst [vmem:[%s58] sm:$0xc0] %v51
    %s60 = scalar_lea.vmem %s0, 48
    %v61 = vld [vmem:[%s60] sm:$0xff]
    %s62 = scalar_lea.vmem [#allocation0], 192
    %63 = vst [vmem:[%s62] sm:$0x3] %v61
    %s64 = scalar_lea.vmem [#allocation0], 206
    %65 = vst [vmem:[%s64] sm:$0xc] %v61
    %s66 = scalar_lea.vmem [#allocation0], 220
    %67 = vst [vmem:[%s66] sm:$0x30] %v61
    %s68 = scalar_lea.vmem [#allocation0], 234
    %69 = vst [vmem:[%s68] sm:$0xc0] %v61
    %s70 = scalar_lea.vmem %s0, 56
    %v71 = vld [vmem:[%s70] sm:$0xff]
    %s72 = scalar_lea.vmem [#allocation0], 200
    %73 = vst [vmem:[%s72] sm:$0x3] %v71
    %s74 = scalar_lea.vmem [#allocation0], 214
    %75 = vst [vmem:[%s74] sm:$0xc] %v71
    %s76 = scalar_lea.vmem [#allocation0], 228
    %77 = vst [vmem:[%s76] sm:$0x30] %v71
    %s78 = scalar_lea.vmem [#allocation0], 242
    %79 = vst [vmem:[%s78] sm:$0xc0] %v71
    %s80 = scalar_lea.vmem %s0, 64
    %v81 = vld [vmem:[%s80] sm:$0xff]
    %s82 = scalar_lea.vmem [#allocation0], 256
    %83 = vst [vmem:[%s82] sm:$0x3] %v81
    %s84 = scalar_lea.vmem [#allocation0], 270
    %85 = vst [vmem:[%s84] sm:$0xc] %v81
    %s86 = scalar_lea.vmem [#allocation0], 284
    %87 = vst [vmem:[%s86] sm:$0x30] %v81
    %s88 = scalar_lea.vmem [#allocation0], 298
    %89 = vst [vmem:[%s88] sm:$0xc0] %v81
    %s90 = scalar_lea.vmem %s0, 72
    %v91 = vld [vmem:[%s90] sm:$0xff]
    %s92 = scalar_lea.vmem [#allocation0], 264
    %93 = vst [vmem:[%s92] sm:$0x3] %v91
    %s94 = scalar_lea.vmem [#allocation0], 278
    %95 = vst [vmem:[%s94] sm:$0xc] %v91
    %s96 = scalar_lea.vmem [#allocation0], 292
    %97 = vst [vmem:[%s96] sm:$0x30] %v91
    %s98 = scalar_lea.vmem [#allocation0], 306
    %99 = vst [vmem:[%s98] sm:$0xc0] %v91
    %s100 = scalar_lea.vmem %s0, 80
    %v101 = vld [vmem:[%s100] sm:$0xff]
    %s102 = scalar_lea.vmem [#allocation0], 320
    %103 = vst [vmem:[%s102] sm:$0x3] %v101
    %s104 = scalar_lea.vmem [#allocation0], 334
    %105 = vst [vmem:[%s104] sm:$0xc] %v101
    %s106 = scalar_lea.vmem [#allocation0], 348
    %107 = vst [vmem:[%s106] sm:$0x30] %v101
    %s108 = scalar_lea.vmem [#allocation0], 362
    %109 = vst [vmem:[%s108] sm:$0xc0] %v101
    %s110 = scalar_lea.vmem %s0, 88
    %v111 = vld [vmem:[%s110] sm:$0xff]
    %s112 = scalar_lea.vmem [#allocation0], 328
    %113 = vst [vmem:[%s112] sm:$0x3] %v111
    %s114 = scalar_lea.vmem [#allocation0], 342
    %115 = vst [vmem:[%s114] sm:$0xc] %v111
    %s116 = scalar_lea.vmem [#allocation0], 356
    %117 = vst [vmem:[%s116] sm:$0x30] %v111
    %s118 = scalar_lea.vmem [#allocation0], 370
    %119 = vst [vmem:[%s118] sm:$0xc0] %v111
    %s120 = scalar_lea.vmem %s0, 96
    %v121 = vld [vmem:[%s120] sm:$0xff]
    %s122 = scalar_lea.vmem [#allocation0], 384
    %123 = vst [vmem:[%s122] sm:$0x3] %v121
    %s124 = scalar_lea.vmem [#allocation0], 398
    %125 = vst [vmem:[%s124] sm:$0xc] %v121
    %s126 = scalar_lea.vmem [#allocation0], 412
    %127 = vst [vmem:[%s126] sm:$0x30] %v121
    %s128 = scalar_lea.vmem [#allocation0], 426
    %129 = vst [vmem:[%s128] sm:$0xc0] %v121
    %s130 = scalar_lea.vmem %s0, 104
    %v131 = vld [vmem:[%s130] sm:$0xff]
    %s132 = scalar_lea.vmem [#allocation0], 392
    %133 = vst [vmem:[%s132] sm:$0x3] %v131
    %s134 = scalar_lea.vmem [#allocation0], 406
    %135 = vst [vmem:[%s134] sm:$0xc] %v131
    %s136 = scalar_lea.vmem [#allocation0], 420
    %137 = vst [vmem:[%s136] sm:$0x30] %v131
    %s138 = scalar_lea.vmem [#allocation0], 434
    %139 = vst [vmem:[%s138] sm:$0xc0] %v131
    %s140 = scalar_lea.vmem %s0, 112
    %v141 = vld [vmem:[%s140] sm:$0xff]
    %s142 = scalar_lea.vmem [#allocation0], 448
    %143 = vst [vmem:[%s142] sm:$0x3] %v141
    %s144 = scalar_lea.vmem [#allocation0], 462
    %145 = vst [vmem:[%s144] sm:$0xc] %v141
    %s146 = scalar_lea.vmem [#allocation0], 476
    %147 = vst [vmem:[%s146] sm:$0x30] %v141
    %s148 = scalar_lea.vmem [#allocation0], 490
    %149 = vst [vmem:[%s148] sm:$0xc0] %v141
    %s150 = scalar_lea.vmem %s0, 120
    %v151 = vld [vmem:[%s150] sm:$0xff]
    %s152 = scalar_lea.vmem [#allocation0], 456
    %153 = vst [vmem:[%s152] sm:$0x3] %v151
    %s154 = scalar_lea.vmem [#allocation0], 470
    %155 = vst [vmem:[%s154] sm:$0xc] %v151
    %s156 = scalar_lea.vmem [#allocation0], 484
    %157 = vst [vmem:[%s156] sm:$0x30] %v151
    %s158 = scalar_lea.vmem [#allocation0], 498
    %159 = vst [vmem:[%s158] sm:$0xc0] %v151
    %s160 = scalar_lea.vmem %s0, 128
    %v161 = vld [vmem:[%s160] sm:$0xff]
    %s162 = scalar_lea.vmem [#allocation0], 512
    %163 = vst [vmem:[%s162] sm:$0x3] %v161
    %s164 = scalar_lea.vmem [#allocation0], 526
    %165 = vst [vmem:[%s164] sm:$0xc] %v161
    %s166 = scalar_lea.vmem [#allocation0], 540
    %167 = vst [vmem:[%s166] sm:$0x30] %v161
    %s168 = scalar_lea.vmem [#allocation0], 554
    %169 = vst [vmem:[%s168] sm:$0xc0] %v161
    %s170 = scalar_lea.vmem %s0, 136
    %v171 = vld [vmem:[%s170] sm:$0xff]
    %s172 = scalar_lea.vmem [#allocation0], 520
    %173 = vst [vmem:[%s172] sm:$0x3] %v171
    %s174 = scalar_lea.vmem [#allocation0], 534
    %175 = vst [vmem:[%s174] sm:$0xc] %v171
    %s176 = scalar_lea.vmem [#allocation0], 548
    %177 = vst [vmem:[%s176] sm:$0x30] %v171
    %s178 = scalar_lea.vmem [#allocation0], 562
    %179 = vst [vmem:[%s178] sm:$0xc0] %v171
    %s180 = scalar_lea.vmem %s0, 144
    %v181 = vld [vmem:[%s180] sm:$0xff]
    %s182 = scalar_lea.vmem [#allocation0], 576
    %183 = vst [vmem:[%s182] sm:$0x3] %v181
    %s184 = scalar_lea.vmem [#allocation0], 590
    %185 = vst [vmem:[%s184] sm:$0xc] %v181
    %s186 = scalar_lea.vmem [#allocation0], 604
    %187 = vst [vmem:[%s186] sm:$0x30] %v181
    %s188 = scalar_lea.vmem [#allocation0], 618
    %189 = vst [vmem:[%s188] sm:$0xc0] %v181
    %s190 = scalar_lea.vmem %s0, 152
    %v191 = vld [vmem:[%s190] sm:$0xff]
    %s192 = scalar_lea.vmem [#allocation0], 584
    %193 = vst [vmem:[%s192] sm:$0x3] %v191
    %s194 = scalar_lea.vmem [#allocation0], 598
    %195 = vst [vmem:[%s194] sm:$0xc] %v191
    %s196 = scalar_lea.vmem [#allocation0], 612
    %197 = vst [vmem:[%s196] sm:$0x30] %v191
    %s198 = scalar_lea.vmem [#allocation0], 626
    %199 = vst [vmem:[%s198] sm:$0xc0] %v191
    %s200 = scalar_lea.vmem %s0, 160
    %v201 = vld [vmem:[%s200] sm:$0xff]
    %s202 = scalar_lea.vmem [#allocation0], 640
    %203 = vst [vmem:[%s202] sm:$0x3] %v201
    %s204 = scalar_lea.vmem [#allocation0], 654
    %205 = vst [vmem:[%s204] sm:$0xc] %v201
    %s206 = scalar_lea.vmem [#allocation0], 668
    %207 = vst [vmem:[%s206] sm:$0x30] %v201
    %s208 = scalar_lea.vmem [#allocation0], 682
    %209 = vst [vmem:[%s208] sm:$0xc0] %v201
    %s210 = scalar_lea.vmem %s0, 168
    %v211 = vld [vmem:[%s210] sm:$0xff]
    %s212 = scalar_lea.vmem [#allocation0], 648
    %213 = vst [vmem:[%s212] sm:$0x3] %v211
    %s214 = scalar_lea.vmem [#allocation0], 662
    %215 = vst [vmem:[%s214] sm:$0xc] %v211
    %s216 = scalar_lea.vmem [#allocation0], 676
    %217 = vst [vmem:[%s216] sm:$0x30] %v211
    %s218 = scalar_lea.vmem [#allocation0], 690
    %219 = vst [vmem:[%s218] sm:$0xc0] %v211
    %s220 = scalar_lea.vmem %s0, 176
    %v221 = vld [vmem:[%s220] sm:$0xff]
    %s222 = scalar_lea.vmem [#allocation0], 704
    %223 = vst [vmem:[%s222] sm:$0x3] %v221
    %s224 = scalar_lea.vmem [#allocation0], 718
    %225 = vst [vmem:[%s224] sm:$0xc] %v221
    %s226 = scalar_lea.vmem [#allocation0], 732
    %227 = vst [vmem:[%s226] sm:$0x30] %v221
    %s228 = scalar_lea.vmem [#allocation0], 746
    %229 = vst [vmem:[%s228] sm:$0xc0] %v221
    %s230 = scalar_lea.vmem %s0, 184
    %v231 = vld [vmem:[%s230] sm:$0xff]
    %s232 = scalar_lea.vmem [#allocation0], 712
    %233 = vst [vmem:[%s232] sm:$0x3] %v231
    %s234 = scalar_lea.vmem [#allocation0], 726
    %235 = vst [vmem:[%s234] sm:$0xc] %v231
    %s236 = scalar_lea.vmem [#allocation0], 740
    %237 = vst [vmem:[%s236] sm:$0x30] %v231
    %s238 = scalar_lea.vmem [#allocation0], 754
    %239 = vst [vmem:[%s238] sm:$0xc0] %v231
    %s240 = scalar_lea.vmem %s0, 192
    %v241 = vld [vmem:[%s240] sm:$0xff]
    %s242 = scalar_lea.vmem [#allocation0], 768
    %243 = vst [vmem:[%s242] sm:$0x3] %v241
    %s244 = scalar_lea.vmem [#allocation0], 782
    %245 = vst [vmem:[%s244] sm:$0xc] %v241
    %s246 = scalar_lea.vmem [#allocation0], 796
    %247 = vst [vmem:[%s246] sm:$0x30] %v241
    %s248 = scalar_lea.vmem [#allocation0], 810
    %249 = vst [vmem:[%s248] sm:$0xc0] %v241
    %s250 = scalar_lea.vmem %s0, 200
    %v251 = vld [vmem:[%s250] sm:$0xff]
    %s252 = scalar_lea.vmem [#allocation0], 776
    %253 = vst [vmem:[%s252] sm:$0x3] %v251
    %s254 = scalar_lea.vmem [#allocation0], 790
    %255 = vst [vmem:[%s254] sm:$0xc] %v251
    %s256 = scalar_lea.vmem [#allocation0], 804
    %257 = vst [vmem:[%s256] sm:$0x30] %v251
    %s258 = scalar_lea.vmem [#allocation0], 818
    %259 = vst [vmem:[%s258] sm:$0xc0] %v251
    %s260 = scalar_lea.vmem %s0, 208
    %v261 = vld [vmem:[%s260] sm:$0xff]
    %s262 = scalar_lea.vmem [#allocation0], 832
    %263 = vst [vmem:[%s262] sm:$0x3] %v261
    %s264 = scalar_lea.vmem [#allocation0], 846
    %265 = vst [vmem:[%s264] sm:$0xc] %v261
    %s266 = scalar_lea.vmem [#allocation0], 860
    %267 = vst [vmem:[%s266] sm:$0x30] %v261
    %s268 = scalar_lea.vmem [#allocation0], 874
    %269 = vst [vmem:[%s268] sm:$0xc0] %v261
    %s270 = scalar_lea.vmem %s0, 216
    %v271 = vld [vmem:[%s270] sm:$0xff]
    %s272 = scalar_lea.vmem [#allocation0], 840
    %273 = vst [vmem:[%s272] sm:$0x3] %v271
    %s274 = scalar_lea.vmem [#allocation0], 854
    %275 = vst [vmem:[%s274] sm:$0xc] %v271
    %s276 = scalar_lea.vmem [#allocation0], 868
    %277 = vst [vmem:[%s276] sm:$0x30] %v271
    %s278 = scalar_lea.vmem [#allocation0], 882
    %279 = vst [vmem:[%s278] sm:$0xc0] %v271
    %s280 = scalar_lea.vmem %s0, 224
    %v281 = vld [vmem:[%s280] sm:$0xff]
    %s282 = scalar_lea.vmem [#allocation0], 896
    %283 = vst [vmem:[%s282] sm:$0x3] %v281
    %s284 = scalar_lea.vmem [#allocation0], 910
    %285 = vst [vmem:[%s284] sm:$0xc] %v281
    %s286 = scalar_lea.vmem [#allocation0], 924
    %287 = vst [vmem:[%s286] sm:$0x30] %v281
    %s288 = scalar_lea.vmem [#allocation0], 938
    %289 = vst [vmem:[%s288] sm:$0xc0] %v281
    %s290 = scalar_lea.vmem %s0, 232
    %v291 = vld [vmem:[%s290] sm:$0xff]
    %s292 = scalar_lea.vmem [#allocation0], 904
    %293 = vst [vmem:[%s292] sm:$0x3] %v291
    %s294 = scalar_lea.vmem [#allocation0], 918
    %295 = vst [vmem:[%s294] sm:$0xc] %v291
    %s296 = scalar_lea.vmem [#allocation0], 932
    %297 = vst [vmem:[%s296] sm:$0x30] %v291
    %s298 = scalar_lea.vmem [#allocation0], 946
    %299 = vst [vmem:[%s298] sm:$0xc0] %v291
    %s300 = scalar_lea.vmem %s0, 240
    %v301 = vld [vmem:[%s300] sm:$0xff]
    %s302 = scalar_lea.vmem [#allocation0], 960
    %303 = vst [vmem:[%s302] sm:$0x3] %v301
    %s304 = scalar_lea.vmem [#allocation0], 974
    %305 = vst [vmem:[%s304] sm:$0xc] %v301
    %s306 = scalar_lea.vmem [#allocation0], 988
    %307 = vst [vmem:[%s306] sm:$0x30] %v301
    %s308 = scalar_lea.vmem [#allocation0], 1002
    %309 = vst [vmem:[%s308] sm:$0xc0] %v301
    %s310 = scalar_lea.vmem %s0, 248
    %v311 = vld [vmem:[%s310] sm:$0xff]
    %s312 = scalar_lea.vmem [#allocation0], 968
    %313 = vst [vmem:[%s312] sm:$0x3] %v311
    %s314 = scalar_lea.vmem [#allocation0], 982
    %315 = vst [vmem:[%s314] sm:$0xc] %v311
    %s316 = scalar_lea.vmem [#allocation0], 996
    %317 = vst [vmem:[%s316] sm:$0x30] %v311
    %s318 = scalar_lea.vmem [#allocation0], 1010
    %319 = vst [vmem:[%s318] sm:$0xc0] %v311
    %s320 = scalar_lea.vmem %s0, 256
    %v321 = vld [vmem:[%s320] sm:$0xff]
    %s322 = scalar_lea.vmem [#allocation0], 1024
    %323 = vst [vmem:[%s322] sm:$0x3] %v321
    %s324 = scalar_lea.vmem [#allocation0], 1038
    %325 = vst [vmem:[%s324] sm:$0xc] %v321
    %s326 = scalar_lea.vmem [#allocation0], 1052
    %327 = vst [vmem:[%s326] sm:$0x30] %v321
    %s328 = scalar_lea.vmem [#allocation0], 1066
    %329 = vst [vmem:[%s328] sm:$0xc0] %v321
    %s330 = scalar_lea.vmem %s0, 264
    %v331 = vld [vmem:[%s330] sm:$0xff]
    %s332 = scalar_lea.vmem [#allocation0], 1032
    %333 = vst [vmem:[%s332] sm:$0x3] %v331
    %s334 = scalar_lea.vmem [#allocation0], 1046
    %335 = vst [vmem:[%s334] sm:$0xc] %v331
    %s336 = scalar_lea.vmem [#allocation0], 1060
    %337 = vst [vmem:[%s336] sm:$0x30] %v331
    %s338 = scalar_lea.vmem [#allocation0], 1074
    %339 = vst [vmem:[%s338] sm:$0xc0] %v331
    %s340 = scalar_lea.vmem %s0, 272
    %v341 = vld [vmem:[%s340] sm:$0xff]
    %s342 = scalar_lea.vmem [#allocation0], 1088
    %343 = vst [vmem:[%s342] sm:$0x3] %v341
    %s344 = scalar_lea.vmem [#allocation0], 1102
    %345 = vst [vmem:[%s344] sm:$0xc] %v341
    %s346 = scalar_lea.vmem [#allocation0], 1116
    %347 = vst [vmem:[%s346] sm:$0x30] %v341
    %s348 = scalar_lea.vmem [#allocation0], 1130
    %349 = vst [vmem:[%s348] sm:$0xc0] %v341
    %s350 = scalar_lea.vmem %s0, 280
    %v351 = vld [vmem:[%s350] sm:$0xff]
    %s352 = scalar_lea.vmem [#allocation0], 1096
    %353 = vst [vmem:[%s352] sm:$0x3] %v351
    %s354 = scalar_lea.vmem [#allocation0], 1110
    %355 = vst [vmem:[%s354] sm:$0xc] %v351
    %s356 = scalar_lea.vmem [#allocation0], 1124
    %357 = vst [vmem:[%s356] sm:$0x30] %v351
    %s358 = scalar_lea.vmem [#allocation0], 1138
    %359 = vst [vmem:[%s358] sm:$0xc0] %v351
    %s360 = scalar_lea.vmem %s0, 288
    %v361 = vld [vmem:[%s360] sm:$0xff]
    %s362 = scalar_lea.vmem [#allocation0], 1152
    %363 = vst [vmem:[%s362] sm:$0x3] %v361
    %s364 = scalar_lea.vmem [#allocation0], 1166
    %365 = vst [vmem:[%s364] sm:$0xc] %v361
    %s366 = scalar_lea.vmem [#allocation0], 1180
    %367 = vst [vmem:[%s366] sm:$0x30] %v361
    %s368 = scalar_lea.vmem [#allocation0], 1194
    %369 = vst [vmem:[%s368] sm:$0xc0] %v361
    %s370 = scalar_lea.vmem %s0, 296
    %v371 = vld [vmem:[%s370] sm:$0xff]
    %s372 = scalar_lea.vmem [#allocation0], 1160
    %373 = vst [vmem:[%s372] sm:$0x3] %v371
    %s374 = scalar_lea.vmem [#allocation0], 1174
    %375 = vst [vmem:[%s374] sm:$0xc] %v371
    %s376 = scalar_lea.vmem [#allocation0], 1188
    %377 = vst [vmem:[%s376] sm:$0x30] %v371
    %s378 = scalar_lea.vmem [#allocation0], 1202
    %379 = vst [vmem:[%s378] sm:$0xc0] %v371
    %s380 = scalar_lea.vmem %s0, 304
    %v381 = vld [vmem:[%s380] sm:$0xff]
    %s382 = scalar_lea.vmem [#allocation0], 1216
    %383 = vst [vmem:[%s382] sm:$0x3] %v381
    %s384 = scalar_lea.vmem [#allocation0], 1230
    %385 = vst [vmem:[%s384] sm:$0xc] %v381
    %s386 = scalar_lea.vmem [#allocation0], 1244
    %387 = vst [vmem:[%s386] sm:$0x30] %v381
    %s388 = scalar_lea.vmem [#allocation0], 1258
    %389 = vst [vmem:[%s388] sm:$0xc0] %v381
    %s390 = scalar_lea.vmem %s0, 312
    %v391 = vld [vmem:[%s390] sm:$0xff]
    %s392 = scalar_lea.vmem [#allocation0], 1224
    %393 = vst [vmem:[%s392] sm:$0x3] %v391
    %s394 = scalar_lea.vmem [#allocation0], 1238
    %395 = vst [vmem:[%s394] sm:$0xc] %v391
    %s396 = scalar_lea.vmem [#allocation0], 1252
    %397 = vst [vmem:[%s396] sm:$0x30] %v391
    %s398 = scalar_lea.vmem [#allocation0], 1266
    %399 = vst [vmem:[%s398] sm:$0xc0] %v391
    %s400 = scalar_lea.vmem %s0, 320
    %v401 = vld [vmem:[%s400] sm:$0xff]
    %s402 = scalar_lea.vmem [#allocation0], 1280
    %403 = vst [vmem:[%s402] sm:$0x3] %v401
    %s404 = scalar_lea.vmem [#allocation0], 1294
    %405 = vst [vmem:[%s404] sm:$0xc] %v401
    %s406 = scalar_lea.vmem [#allocation0], 1308
    %407 = vst [vmem:[%s406] sm:$0x30] %v401
    %s408 = scalar_lea.vmem [#allocation0], 1322
    %409 = vst [vmem:[%s408] sm:$0xc0] %v401
    %s410 = scalar_lea.vmem %s0, 328
    %v411 = vld [vmem:[%s410] sm:$0xff]
    %s412 = scalar_lea.vmem [#allocation0], 1288
    %413 = vst [vmem:[%s412] sm:$0x3] %v411
    %s414 = scalar_lea.vmem [#allocation0], 1302
    %415 = vst [vmem:[%s414] sm:$0xc] %v411
    %s416 = scalar_lea.vmem [#allocation0], 1316
    %417 = vst [vmem:[%s416] sm:$0x30] %v411
    %s418 = scalar_lea.vmem [#allocation0], 1330
    %419 = vst [vmem:[%s418] sm:$0xc0] %v411
    %s420 = scalar_lea.vmem %s0, 336
    %v421 = vld [vmem:[%s420] sm:$0xff]
    %s422 = scalar_lea.vmem [#allocation0], 1344
    %423 = vst [vmem:[%s422] sm:$0x3] %v421
    %s424 = scalar_lea.vmem [#allocation0], 1358
    %425 = vst [vmem:[%s424] sm:$0xc] %v421
    %s426 = scalar_lea.vmem [#allocation0], 1372
    %427 = vst [vmem:[%s426] sm:$0x30] %v421
    %s428 = scalar_lea.vmem [#allocation0], 1386
    %429 = vst [vmem:[%s428] sm:$0xc0] %v421
    %s430 = scalar_lea.vmem %s0, 344
    %v431 = vld [vmem:[%s430] sm:$0xff]
    %s432 = scalar_lea.vmem [#allocation0], 1352
    %433 = vst [vmem:[%s432] sm:$0x3] %v431
    %s434 = scalar_lea.vmem [#allocation0], 1366
    %435 = vst [vmem:[%s434] sm:$0xc] %v431
    %s436 = scalar_lea.vmem [#allocation0], 1380
    %437 = vst [vmem:[%s436] sm:$0x30] %v431
    %s438 = scalar_lea.vmem [#allocation0], 1394
    %439 = vst [vmem:[%s438] sm:$0xc0] %v431
    %s440 = scalar_lea.vmem %s0, 352
    %v441 = vld [vmem:[%s440] sm:$0xff]
    %s442 = scalar_lea.vmem [#allocation0], 1408
    %443 = vst [vmem:[%s442] sm:$0x3] %v441
    %s444 = scalar_lea.vmem [#allocation0], 1422
    %445 = vst [vmem:[%s444] sm:$0xc] %v441
    %s446 = scalar_lea.vmem [#allocation0], 1436
    %447 = vst [vmem:[%s446] sm:$0x30] %v441
    %s448 = scalar_lea.vmem [#allocation0], 1450
    %449 = vst [vmem:[%s448] sm:$0xc0] %v441
    %s450 = scalar_lea.vmem %s0, 360
    %v451 = vld [vmem:[%s450] sm:$0xff]
    %s452 = scalar_lea.vmem [#allocation0], 1416
    %453 = vst [vmem:[%s452] sm:$0x3] %v451
    %s454 = scalar_lea.vmem [#allocation0], 1430
    %455 = vst [vmem:[%s454] sm:$0xc] %v451
    %s456 = scalar_lea.vmem [#allocation0], 1444
    %457 = vst [vmem:[%s456] sm:$0x30] %v451
    %s458 = scalar_lea.vmem [#allocation0], 1458
    %459 = vst [vmem:[%s458] sm:$0xc0] %v451
    %s460 = scalar_lea.vmem %s0, 368
    %v461 = vld [vmem:[%s460] sm:$0xff]
    %s462 = scalar_lea.vmem [#allocation0], 1472
    %463 = vst [vmem:[%s462] sm:$0x3] %v461
    %s464 = scalar_lea.vmem [#allocation0], 1486
    %465 = vst [vmem:[%s464] sm:$0xc] %v461
    %s466 = scalar_lea.vmem [#allocation0], 1500
    %467 = vst [vmem:[%s466] sm:$0x30] %v461
    %s468 = scalar_lea.vmem [#allocation0], 1514
    %469 = vst [vmem:[%s468] sm:$0xc0] %v461
    %s470 = scalar_lea.vmem %s0, 376
    %v471 = vld [vmem:[%s470] sm:$0xff]
    %s472 = scalar_lea.vmem [#allocation0], 1480
    %473 = vst [vmem:[%s472] sm:$0x3] %v471
    %s474 = scalar_lea.vmem [#allocation0], 1494
    %475 = vst [vmem:[%s474] sm:$0xc] %v471
    %s476 = scalar_lea.vmem [#allocation0], 1508
    %477 = vst [vmem:[%s476] sm:$0x30] %v471
    %s478 = scalar_lea.vmem [#allocation0], 1522
    %479 = vst [vmem:[%s478] sm:$0xc0] %v471
    %s480 = scalar_lea.vmem %s0, 384
    %v481 = vld [vmem:[%s480] sm:$0xff]
    %s482 = scalar_lea.vmem [#allocation0], 1536
    %483 = vst [vmem:[%s482] sm:$0x3] %v481
    %s484 = scalar_lea.vmem [#allocation0], 1550
    %485 = vst [vmem:[%s484] sm:$0xc] %v481
    %s486 = scalar_lea.vmem [#allocation0], 1564
    %487 = vst [vmem:[%s486] sm:$0x30] %v481
    %s488 = scalar_lea.vmem [#allocation0], 1578
    %489 = vst [vmem:[%s488] sm:$0xc0] %v481
    %s490 = scalar_lea.vmem %s0, 392
    %v491 = vld [vmem:[%s490] sm:$0xff]
    %s492 = scalar_lea.vmem [#allocation0], 1544
    %493 = vst [vmem:[%s492] sm:$0x3] %v491
    %s494 = scalar_lea.vmem [#allocation0], 1558
    %495 = vst [vmem:[%s494] sm:$0xc] %v491
    %s496 = scalar_lea.vmem [#allocation0], 1572
    %497 = vst [vmem:[%s496] sm:$0x30] %v491
    %s498 = scalar_lea.vmem [#allocation0], 1586
    %499 = vst [vmem:[%s498] sm:$0xc0] %v491
    %s500 = scalar_lea.vmem %s0, 400
    %v501 = vld [vmem:[%s500] sm:$0xff]
    %s502 = scalar_lea.vmem [#allocation0], 1600
    %503 = vst [vmem:[%s502] sm:$0x3] %v501
    %s504 = scalar_lea.vmem [#allocation0], 1614
    %505 = vst [vmem:[%s504] sm:$0xc] %v501
    %s506 = scalar_lea.vmem [#allocation0], 1628
    %507 = vst [vmem:[%s506] sm:$0x30] %v501
    %s508 = scalar_lea.vmem [#allocation0], 1642
    %509 = vst [vmem:[%s508] sm:$0xc0] %v501
    %s510 = scalar_lea.vmem %s0, 408
    %v511 = vld [vmem:[%s510] sm:$0xff]
    %s512 = scalar_lea.vmem [#allocation0], 1608
    %513 = vst [vmem:[%s512] sm:$0x3] %v511
    %s514 = scalar_lea.vmem [#allocation0], 1622
    %515 = vst [vmem:[%s514] sm:$0xc] %v511
    %s516 = scalar_lea.vmem [#allocation0], 1636
    %517 = vst [vmem:[%s516] sm:$0x30] %v511
    %s518 = scalar_lea.vmem [#allocation0], 1650
    %519 = vst [vmem:[%s518] sm:$0xc0] %v511
    %s520 = scalar_lea.vmem %s0, 416
    %v521 = vld [vmem:[%s520] sm:$0xff]
    %s522 = scalar_lea.vmem [#allocation0], 1664
    %523 = vst [vmem:[%s522] sm:$0x3] %v521
    %s524 = scalar_lea.vmem [#allocation0], 1678
    %525 = vst [vmem:[%s524] sm:$0xc] %v521
    %s526 = scalar_lea.vmem [#allocation0], 1692
    %527 = vst [vmem:[%s526] sm:$0x30] %v521
    %s528 = scalar_lea.vmem [#allocation0], 1706
    %529 = vst [vmem:[%s528] sm:$0xc0] %v521
    %s530 = scalar_lea.vmem %s0, 424
    %v531 = vld [vmem:[%s530] sm:$0xff]
    %s532 = scalar_lea.vmem [#allocation0], 1672
    %533 = vst [vmem:[%s532] sm:$0x3] %v531
    %s534 = scalar_lea.vmem [#allocation0], 1686
    %535 = vst [vmem:[%s534] sm:$0xc] %v531
    %s536 = scalar_lea.vmem [#allocation0], 1700
    %537 = vst [vmem:[%s536] sm:$0x30] %v531
    %s538 = scalar_lea.vmem [#allocation0], 1714
    %539 = vst [vmem:[%s538] sm:$0xc0] %v531
    %s540 = scalar_lea.vmem %s0, 432
    %v541 = vld [vmem:[%s540] sm:$0xff]
    %s542 = scalar_lea.vmem [#allocation0], 1728
    %543 = vst [vmem:[%s542] sm:$0x3] %v541
    %s544 = scalar_lea.vmem [#allocation0], 1742
    %545 = vst [vmem:[%s544] sm:$0xc] %v541
    %s546 = scalar_lea.vmem [#allocation0], 1756
    %547 = vst [vmem:[%s546] sm:$0x30] %v541
    %s548 = scalar_lea.vmem [#allocation0], 1770
    %549 = vst [vmem:[%s548] sm:$0xc0] %v541
    %s550 = scalar_lea.vmem %s0, 440
    %v551 = vld [vmem:[%s550] sm:$0xff]
    %s552 = scalar_lea.vmem [#allocation0], 1736
    %553 = vst [vmem:[%s552] sm:$0x3] %v551
    %s554 = scalar_lea.vmem [#allocation0], 1750
    %555 = vst [vmem:[%s554] sm:$0xc] %v551
    %s556 = scalar_lea.vmem [#allocation0], 1764
    %557 = vst [vmem:[%s556] sm:$0x30] %v551
    %s558 = scalar_lea.vmem [#allocation0], 1778
    %559 = vst [vmem:[%s558] sm:$0xc0] %v551
    %s560 = scalar_lea.vmem %s0, 448
    %v561 = vld [vmem:[%s560] sm:$0xff]
    %s562 = scalar_lea.vmem [#allocation0], 1792
    %563 = vst [vmem:[%s562] sm:$0x3] %v561
    %s564 = scalar_lea.vmem [#allocation0], 1806
    %565 = vst [vmem:[%s564] sm:$0xc] %v561
    %s566 = scalar_lea.vmem [#allocation0], 1820
    %567 = vst [vmem:[%s566] sm:$0x30] %v561
    %s568 = scalar_lea.vmem [#allocation0], 1834
    %569 = vst [vmem:[%s568] sm:$0xc0] %v561
    %s570 = scalar_lea.vmem %s0, 456
    %v571 = vld [vmem:[%s570] sm:$0xff]
    %s572 = scalar_lea.vmem [#allocation0], 1800
    %573 = vst [vmem:[%s572] sm:$0x3] %v571
    %s574 = scalar_lea.vmem [#allocation0], 1814
    %575 = vst [vmem:[%s574] sm:$0xc] %v571
    %s576 = scalar_lea.vmem [#allocation0], 1828
    %577 = vst [vmem:[%s576] sm:$0x30] %v571
    %s578 = scalar_lea.vmem [#allocation0], 1842
    %579 = vst [vmem:[%s578] sm:$0xc0] %v571
    %s580 = scalar_lea.vmem %s0, 464
    %v581 = vld [vmem:[%s580] sm:$0xff]
    %s582 = scalar_lea.vmem [#allocation0], 1856
    %583 = vst [vmem:[%s582] sm:$0x3] %v581
    %s584 = scalar_lea.vmem [#allocation0], 1870
    %585 = vst [vmem:[%s584] sm:$0xc] %v581
    %s586 = scalar_lea.vmem [#allocation0], 1884
    %587 = vst [vmem:[%s586] sm:$0x30] %v581
    %s588 = scalar_lea.vmem [#allocation0], 1898
    %589 = vst [vmem:[%s588] sm:$0xc0] %v581
    %s590 = scalar_lea.vmem %s0, 472
    %v591 = vld [vmem:[%s590] sm:$0xff]
    %s592 = scalar_lea.vmem [#allocation0], 1864
    %593 = vst [vmem:[%s592] sm:$0x3] %v591
    %s594 = scalar_lea.vmem [#allocation0], 1878
    %595 = vst [vmem:[%s594] sm:$0xc] %v591
    %s596 = scalar_lea.vmem [#allocation0], 1892
    %597 = vst [vmem:[%s596] sm:$0x30] %v591
    %s598 = scalar_lea.vmem [#allocation0], 1906
    %599 = vst [vmem:[%s598] sm:$0xc0] %v591
    %s600 = scalar_lea.vmem %s0, 480
    %v601 = vld [vmem:[%s600] sm:$0xff]
    %s602 = scalar_lea.vmem [#allocation0], 1920
    %603 = vst [vmem:[%s602] sm:$0x3] %v601
    %s604 = scalar_lea.vmem [#allocation0], 1934
    %605 = vst [vmem:[%s604] sm:$0xc] %v601
    %s606 = scalar_lea.vmem [#allocation0], 1948
    %607 = vst [vmem:[%s606] sm:$0x30] %v601
    %s608 = scalar_lea.vmem [#allocation0], 1962
    %609 = vst [vmem:[%s608] sm:$0xc0] %v601
    %s610 = scalar_lea.vmem %s0, 488
    %v611 = vld [vmem:[%s610] sm:$0xff]
    %s612 = scalar_lea.vmem [#allocation0], 1928
    %613 = vst [vmem:[%s612] sm:$0x3] %v611
    %s614 = scalar_lea.vmem [#allocation0], 1942
    %615 = vst [vmem:[%s614] sm:$0xc] %v611
    %s616 = scalar_lea.vmem [#allocation0], 1956
    %617 = vst [vmem:[%s616] sm:$0x30] %v611
    %s618 = scalar_lea.vmem [#allocation0], 1970
    %619 = vst [vmem:[%s618] sm:$0xc0] %v611
    %s620 = scalar_lea.vmem %s0, 496
    %v621 = vld [vmem:[%s620] sm:$0xff]
    %s622 = scalar_lea.vmem [#allocation0], 1984
    %623 = vst [vmem:[%s622] sm:$0x3] %v621
    %s624 = scalar_lea.vmem [#allocation0], 1998
    %625 = vst [vmem:[%s624] sm:$0xc] %v621
    %s626 = scalar_lea.vmem [#allocation0], 2012
    %627 = vst [vmem:[%s626] sm:$0x30] %v621
    %s628 = scalar_lea.vmem [#allocation0], 2026
    %629 = vst [vmem:[%s628] sm:$0xc0] %v621
    %s630 = scalar_lea.vmem %s0, 504
    %v631 = vld [vmem:[%s630] sm:$0xff]
    %s632 = scalar_lea.vmem [#allocation0], 1992
    %633 = vst [vmem:[%s632] sm:$0x3] %v631
    %s634 = scalar_lea.vmem [#allocation0], 2006
    %635 = vst [vmem:[%s634] sm:$0xc] %v631
    %s636 = scalar_lea.vmem [#allocation0], 2020
    %637 = vst [vmem:[%s636] sm:$0x30] %v631
    %s638 = scalar_lea.vmem [#allocation0], 2034
    %639 = vst [vmem:[%s638] sm:$0xc0] %v631
    %s641 = sshll.u32 1, 2
    %s642 = ssub.s32 %s641, 1
    %v644 = vld [vmem:[#allocation0] sm:%s642]
    %s645 = sshll.u32 1, 2
    %s646 = ssub.s32 %s645, 1
    %647 = vst [vmem:[%s1] sm:%s646] %v644
    %s648 = scalar_lea.vmem [#allocation0], 8
    %v649 = vld [vmem:[%s648] sm:%s642]
    %s650 = sshll.u32 1, 2
    %s651 = ssub.s32 %s650, 1
    %s652 = scalar_lea.vmem %s1, 2
    %653 = vst [vmem:[%s652] sm:%s651] %v649
    %s654 = scalar_lea.vmem [#allocation0], 16
    %v655 = vld [vmem:[%s654] sm:%s642]
    %s656 = sshll.u32 1, 2
    %s657 = ssub.s32 %s656, 1
    %s658 = smul.addr 2, 2
    %s659 = scalar_lea.vmem %s1, %s658
    %660 = vst [vmem:[%s659] sm:%s657] %v655
    %s661 = scalar_lea.vmem [#allocation0], 24
    %v662 = vld [vmem:[%s661] sm:%s642]
    %s663 = sshll.u32 1, 2
    %s664 = ssub.s32 %s663, 1
    %s665 = smul.addr 2, 3
    %s666 = scalar_lea.vmem %s1, %s665
    %667 = vst [vmem:[%s666] sm:%s664] %v662
    %s668 = scalar_lea.vmem [#allocation0], 32
    %v669 = vld [vmem:[%s668] sm:%s642]
    %s670 = sshll.u32 1, 2
    %s671 = ssub.s32 %s670, 1
    %s672 = smul.addr 2, 4
    %s673 = scalar_lea.vmem %s1, %s672
    %674 = vst [vmem:[%s673] sm:%s671] %v669
    %s675 = scalar_lea.vmem [#allocation0], 40
    %v676 = vld [vmem:[%s675] sm:%s642]
    %s677 = sshll.u32 1, 2
    %s678 = ssub.s32 %s677, 1
    %s679 = smul.addr 2, 5
    %s680 = scalar_lea.vmem %s1, %s679
    %681 = vst [vmem:[%s680] sm:%s678] %v676
    %s682 = scalar_lea.vmem [#allocation0], 48
    %v683 = vld [vmem:[%s682] sm:%s642]
    %s684 = sshll.u32 1, 2
    %s685 = ssub.s32 %s684, 1
    %s686 = smul.addr 2, 6
    %s687 = scalar_lea.vmem %s1, %s686
    %688 = vst [vmem:[%s687] sm:%s685] %v683
    %s689 = scalar_lea.vmem [#allocation0], 56
    %v690 = vld [vmem:[%s689] sm:%s642]
    %s691 = sshll.u32 1, 2
    %s692 = ssub.s32 %s691, 1
    %s693 = smul.addr 2, 7
    %s694 = scalar_lea.vmem %s1, %s693
    %695 = vst [vmem:[%s694] sm:%s692] %v690
    %s696 = scalar_lea.vmem [#allocation0], 64
    %v697 = vld [vmem:[%s696] sm:%s642]
    %s698 = sshll.u32 1, 2
    %s699 = ssub.s32 %s698, 1
    %s700 = smul.addr 2, 8
    %s701 = scalar_lea.vmem %s1, %s700
    %702 = vst [vmem:[%s701] sm:%s699] %v697
    %s703 = scalar_lea.vmem [#allocation0], 72
    %v704 = vld [vmem:[%s703] sm:%s642]
    %s705 = sshll.u32 1, 2
    %s706 = ssub.s32 %s705, 1
    %s707 = smul.addr 2, 9
    %s708 = scalar_lea.vmem %s1, %s707
    %709 = vst [vmem:[%s708] sm:%s706] %v704
    %s710 = scalar_lea.vmem [#allocation0], 80
    %v711 = vld [vmem:[%s710] sm:%s642]
    %s712 = sshll.u32 1, 2
    %s713 = ssub.s32 %s712, 1
    %s714 = smul.addr 2, 10
    %s715 = scalar_lea.vmem %s1, %s714
    %716 = vst [vmem:[%s715] sm:%s713] %v711
    %s717 = scalar_lea.vmem [#allocation0], 88
    %v718 = vld [vmem:[%s717] sm:%s642]
    %s719 = sshll.u32 1, 2
    %s720 = ssub.s32 %s719, 1
    %s721 = smul.addr 2, 11
    %s722 = scalar_lea.vmem %s1, %s721
    %723 = vst [vmem:[%s722] sm:%s720] %v718
    %s724 = scalar_lea.vmem [#allocation0], 96
    %v725 = vld [vmem:[%s724] sm:%s642]
    %s726 = sshll.u32 1, 2
    %s727 = ssub.s32 %s726, 1
    %s728 = smul.addr 2, 12
    %s729 = scalar_lea.vmem %s1, %s728
    %730 = vst [vmem:[%s729] sm:%s727] %v725
    %s731 = scalar_lea.vmem [#allocation0], 104
    %v732 = vld [vmem:[%s731] sm:%s642]
    %s733 = sshll.u32 1, 2
    %s734 = ssub.s32 %s733, 1
    %s735 = smul.addr 2, 13
    %s736 = scalar_lea.vmem %s1, %s735
    %737 = vst [vmem:[%s736] sm:%s734] %v732
    %s738 = scalar_lea.vmem [#allocation0], 112
    %v739 = vld [vmem:[%s738] sm:%s642]
    %s740 = sshll.u32 1, 2
    %s741 = ssub.s32 %s740, 1
    %s742 = smul.addr 2, 14
    %s743 = scalar_lea.vmem %s1, %s742
    %744 = vst [vmem:[%s743] sm:%s741] %v739
    %s745 = scalar_lea.vmem [#allocation0], 120
    %v746 = vld [vmem:[%s745] sm:%s642]
    %s747 = sshll.u32 1, 2
    %s748 = ssub.s32 %s747, 1
    %s749 = smul.addr 2, 15
    %s750 = scalar_lea.vmem %s1, %s749
    %751 = vst [vmem:[%s750] sm:%s748] %v746
    %s752 = scalar_lea.vmem [#allocation0], 128
    %v753 = vld [vmem:[%s752] sm:%s642]
    %s754 = sshll.u32 1, 2
    %s755 = ssub.s32 %s754, 1
    %s756 = smul.addr 2, 16
    %s757 = scalar_lea.vmem %s1, %s756
    %758 = vst [vmem:[%s757] sm:%s755] %v753
    %s759 = scalar_lea.vmem [#allocation0], 136
    %v760 = vld [vmem:[%s759] sm:%s642]
    %s761 = sshll.u32 1, 2
    %s762 = ssub.s32 %s761, 1
    %s763 = smul.addr 2, 17
    %s764 = scalar_lea.vmem %s1, %s763
    %765 = vst [vmem:[%s764] sm:%s762] %v760
    %s766 = scalar_lea.vmem [#allocation0], 144
    %v767 = vld [vmem:[%s766] sm:%s642]
    %s768 = sshll.u32 1, 2
    %s769 = ssub.s32 %s768, 1
    %s770 = smul.addr 2, 18
    %s771 = scalar_lea.vmem %s1, %s770
    %772 = vst [vmem:[%s771] sm:%s769] %v767
    %s773 = scalar_lea.vmem [#allocation0], 152
    %v774 = vld [vmem:[%s773] sm:%s642]
    %s775 = sshll.u32 1, 2
    %s776 = ssub.s32 %s775, 1
    %s777 = smul.addr 2, 19
    %s778 = scalar_lea.vmem %s1, %s777
    %779 = vst [vmem:[%s778] sm:%s776] %v774
    %s780 = scalar_lea.vmem [#allocation0], 160
    %v781 = vld [vmem:[%s780] sm:%s642]
    %s782 = sshll.u32 1, 2
    %s783 = ssub.s32 %s782, 1
    %s784 = smul.addr 2, 20
    %s785 = scalar_lea.vmem %s1, %s784
    %786 = vst [vmem:[%s785] sm:%s783] %v781
    %s787 = scalar_lea.vmem [#allocation0], 168
    %v788 = vld [vmem:[%s787] sm:%s642]
    %s789 = sshll.u32 1, 2
    %s790 = ssub.s32 %s789, 1
    %s791 = smul.addr 2, 21
    %s792 = scalar_lea.vmem %s1, %s791
    %793 = vst [vmem:[%s792] sm:%s790] %v788
    %s794 = scalar_lea.vmem [#allocation0], 176
    %v795 = vld [vmem:[%s794] sm:%s642]
    %s796 = sshll.u32 1, 2
    %s797 = ssub.s32 %s796, 1
    %s798 = smul.addr 2, 22
    %s799 = scalar_lea.vmem %s1, %s798
    %800 = vst [vmem:[%s799] sm:%s797] %v795
    %s801 = scalar_lea.vmem [#allocation0], 184
    %v802 = vld [vmem:[%s801] sm:%s642]
    %s803 = sshll.u32 1, 2
    %s804 = ssub.s32 %s803, 1
    %s805 = smul.addr 2, 23
    %s806 = scalar_lea.vmem %s1, %s805
    %807 = vst [vmem:[%s806] sm:%s804] %v802
    %s808 = scalar_lea.vmem [#allocation0], 192
    %v809 = vld [vmem:[%s808] sm:%s642]
    %s810 = sshll.u32 1, 2
    %s811 = ssub.s32 %s810, 1
    %s812 = smul.addr 2, 24
    %s813 = scalar_lea.vmem %s1, %s812
    %814 = vst [vmem:[%s813] sm:%s811] %v809
    %s815 = scalar_lea.vmem [#allocation0], 200
    %v816 = vld [vmem:[%s815] sm:%s642]
    %s817 = sshll.u32 1, 2
    %s818 = ssub.s32 %s817, 1
    %s819 = smul.addr 2, 25
    %s820 = scalar_lea.vmem %s1, %s819
    %821 = vst [vmem:[%s820] sm:%s818] %v816
    %s822 = scalar_lea.vmem [#allocation0], 208
    %v823 = vld [vmem:[%s822] sm:%s642]
    %s824 = sshll.u32 1, 2
    %s825 = ssub.s32 %s824, 1
    %s826 = smul.addr 2, 26
    %s827 = scalar_lea.vmem %s1, %s826
    %828 = vst [vmem:[%s827] sm:%s825] %v823
    %s829 = scalar_lea.vmem [#allocation0], 216
    %v830 = vld [vmem:[%s829] sm:%s642]
    %s831 = sshll.u32 1, 2
    %s832 = ssub.s32 %s831, 1
    %s833 = smul.addr 2, 27
    %s834 = scalar_lea.vmem %s1, %s833
    %835 = vst [vmem:[%s834] sm:%s832] %v830
    %s836 = scalar_lea.vmem [#allocation0], 224
    %v837 = vld [vmem:[%s836] sm:%s642]
    %s838 = sshll.u32 1, 2
    %s839 = ssub.s32 %s838, 1
    %s840 = smul.addr 2, 28
    %s841 = scalar_lea.vmem %s1, %s840
    %842 = vst [vmem:[%s841] sm:%s839] %v837
    %s843 = scalar_lea.vmem [#allocation0], 232
    %v844 = vld [vmem:[%s843] sm:%s642]
    %s845 = sshll.u32 1, 2
    %s846 = ssub.s32 %s845, 1
    %s847 = smul.addr 2, 29
    %s848 = scalar_lea.vmem %s1, %s847
    %849 = vst [vmem:[%s848] sm:%s846] %v844
    %s850 = scalar_lea.vmem [#allocation0], 240
    %v851 = vld [vmem:[%s850] sm:%s642]
    %s852 = sshll.u32 1, 2
    %s853 = ssub.s32 %s852, 1
    %s854 = smul.addr 2, 30
    %s855 = scalar_lea.vmem %s1, %s854
    %856 = vst [vmem:[%s855] sm:%s853] %v851
    %s857 = scalar_lea.vmem [#allocation0], 248
    %v858 = vld [vmem:[%s857] sm:%s642]
    %s859 = sshll.u32 1, 2
    %s860 = ssub.s32 %s859, 1
    %s861 = smul.addr 2, 31
    %s862 = scalar_lea.vmem %s1, %s861
    %863 = vst [vmem:[%s862] sm:%s860] %v858
    %s864 = scalar_lea.vmem [#allocation0], 256
    %v865 = vld [vmem:[%s864] sm:%s642]
    %s866 = sshll.u32 1, 2
    %s867 = ssub.s32 %s866, 1
    %s868 = smul.addr 2, 32
    %s869 = scalar_lea.vmem %s1, %s868
    %870 = vst [vmem:[%s869] sm:%s867] %v865
    %s871 = scalar_lea.vmem [#allocation0], 264
    %v872 = vld [vmem:[%s871] sm:%s642]
    %s873 = sshll.u32 1, 2
    %s874 = ssub.s32 %s873, 1
    %s875 = smul.addr 2, 33
    %s876 = scalar_lea.vmem %s1, %s875
    %877 = vst [vmem:[%s876] sm:%s874] %v872
    %s878 = scalar_lea.vmem [#allocation0], 272
    %v879 = vld [vmem:[%s878] sm:%s642]
    %s880 = sshll.u32 1, 2
    %s881 = ssub.s32 %s880, 1
    %s882 = smul.addr 2, 34
    %s883 = scalar_lea.vmem %s1, %s882
    %884 = vst [vmem:[%s883] sm:%s881] %v879
    %s885 = scalar_lea.vmem [#allocation0], 280
    %v886 = vld [vmem:[%s885] sm:%s642]
    %s887 = sshll.u32 1, 2
    %s888 = ssub.s32 %s887, 1
    %s889 = smul.addr 2, 35
    %s890 = scalar_lea.vmem %s1, %s889
    %891 = vst [vmem:[%s890] sm:%s888] %v886
    %s892 = scalar_lea.vmem [#allocation0], 288
    %v893 = vld [vmem:[%s892] sm:%s642]
    %s894 = sshll.u32 1, 2
    %s895 = ssub.s32 %s894, 1
    %s896 = smul.addr 2, 36
    %s897 = scalar_lea.vmem %s1, %s896
    %898 = vst [vmem:[%s897] sm:%s895] %v893
    %s899 = scalar_lea.vmem [#allocation0], 296
    %v900 = vld [vmem:[%s899] sm:%s642]
    %s901 = sshll.u32 1, 2
    %s902 = ssub.s32 %s901, 1
    %s903 = smul.addr 2, 37
    %s904 = scalar_lea.vmem %s1, %s903
    %905 = vst [vmem:[%s904] sm:%s902] %v900
    %s906 = scalar_lea.vmem [#allocation0], 304
    %v907 = vld [vmem:[%s906] sm:%s642]
    %s908 = sshll.u32 1, 2
    %s909 = ssub.s32 %s908, 1
    %s910 = smul.addr 2, 38
    %s911 = scalar_lea.vmem %s1, %s910
    %912 = vst [vmem:[%s911] sm:%s909] %v907
    %s913 = scalar_lea.vmem [#allocation0], 312
    %v914 = vld [vmem:[%s913] sm:%s642]
    %s915 = sshll.u32 1, 2
    %s916 = ssub.s32 %s915, 1
    %s917 = smul.addr 2, 39
    %s918 = scalar_lea.vmem %s1, %s917
    %919 = vst [vmem:[%s918] sm:%s916] %v914
    %s920 = scalar_lea.vmem [#allocation0], 320
    %v921 = vld [vmem:[%s920] sm:%s642]
    %s922 = sshll.u32 1, 2
    %s923 = ssub.s32 %s922, 1
    %s924 = smul.addr 2, 40
    %s925 = scalar_lea.vmem %s1, %s924
    %926 = vst [vmem:[%s925] sm:%s923] %v921
    %s927 = scalar_lea.vmem [#allocation0], 328
    %v928 = vld [vmem:[%s927] sm:%s642]
    %s929 = sshll.u32 1, 2
    %s930 = ssub.s32 %s929, 1
    %s931 = smul.addr 2, 41
    %s932 = scalar_lea.vmem %s1, %s931
    %933 = vst [vmem:[%s932] sm:%s930] %v928
    %s934 = scalar_lea.vmem [#allocation0], 336
    %v935 = vld [vmem:[%s934] sm:%s642]
    %s936 = sshll.u32 1, 2
    %s937 = ssub.s32 %s936, 1
    %s938 = smul.addr 2, 42
    %s939 = scalar_lea.vmem %s1, %s938
    %940 = vst [vmem:[%s939] sm:%s937] %v935
    %s941 = scalar_lea.vmem [#allocation0], 344
    %v942 = vld [vmem:[%s941] sm:%s642]
    %s943 = sshll.u32 1, 2
    %s944 = ssub.s32 %s943, 1
    %s945 = smul.addr 2, 43
    %s946 = scalar_lea.vmem %s1, %s945
    %947 = vst [vmem:[%s946] sm:%s944] %v942
    %s948 = scalar_lea.vmem [#allocation0], 352
    %v949 = vld [vmem:[%s948] sm:%s642]
    %s950 = sshll.u32 1, 2
    %s951 = ssub.s32 %s950, 1
    %s952 = smul.addr 2, 44
    %s953 = scalar_lea.vmem %s1, %s952
    %954 = vst [vmem:[%s953] sm:%s951] %v949
    %s955 = scalar_lea.vmem [#allocation0], 360
    %v956 = vld [vmem:[%s955] sm:%s642]
    %s957 = sshll.u32 1, 2
    %s958 = ssub.s32 %s957, 1
    %s959 = smul.addr 2, 45
    %s960 = scalar_lea.vmem %s1, %s959
    %961 = vst [vmem:[%s960] sm:%s958] %v956
    %s962 = scalar_lea.vmem [#allocation0], 368
    %v963 = vld [vmem:[%s962] sm:%s642]
    %s964 = sshll.u32 1, 2
    %s965 = ssub.s32 %s964, 1
    %s966 = smul.addr 2, 46
    %s967 = scalar_lea.vmem %s1, %s966
    %968 = vst [vmem:[%s967] sm:%s965] %v963
    %s969 = scalar_lea.vmem [#allocation0], 376
    %v970 = vld [vmem:[%s969] sm:%s642]
    %s971 = sshll.u32 1, 2
    %s972 = ssub.s32 %s971, 1
    %s973 = smul.addr 2, 47
    %s974 = scalar_lea.vmem %s1, %s973
    %975 = vst [vmem:[%s974] sm:%s972] %v970
    %s976 = scalar_lea.vmem [#allocation0], 384
    %v977 = vld [vmem:[%s976] sm:%s642]
    %s978 = sshll.u32 1, 2
    %s979 = ssub.s32 %s978, 1
    %s980 = smul.addr 2, 48
    %s981 = scalar_lea.vmem %s1, %s980
    %982 = vst [vmem:[%s981] sm:%s979] %v977
    %s983 = scalar_lea.vmem [#allocation0], 392
    %v984 = vld [vmem:[%s983] sm:%s642]
    %s985 = sshll.u32 1, 2
    %s986 = ssub.s32 %s985, 1
    %s987 = smul.addr 2, 49
    %s988 = scalar_lea.vmem %s1, %s987
    %989 = vst [vmem:[%s988] sm:%s986] %v984
    %s990 = scalar_lea.vmem [#allocation0], 400
    %v991 = vld [vmem:[%s990] sm:%s642]
    %s992 = sshll.u32 1, 2
    %s993 = ssub.s32 %s992, 1
    %s994 = smul.addr 2, 50
    %s995 = scalar_lea.vmem %s1, %s994
    %996 = vst [vmem:[%s995] sm:%s993] %v991
    %s997 = scalar_lea.vmem [#allocation0], 408
    %v998 = vld [vmem:[%s997] sm:%s642]
    %s999 = sshll.u32 1, 2
    %s1000 = ssub.s32 %s999, 1
    %s1001 = smul.addr 2, 51
    %s1002 = scalar_lea.vmem %s1, %s1001
    %1003 = vst [vmem:[%s1002] sm:%s1000] %v998
    %s1004 = scalar_lea.vmem [#allocation0], 416
    %v1005 = vld [vmem:[%s1004] sm:%s642]
    %s1006 = sshll.u32 1, 2
    %s1007 = ssub.s32 %s1006, 1
    %s1008 = smul.addr 2, 52
    %s1009 = scalar_lea.vmem %s1, %s1008
    %1010 = vst [vmem:[%s1009] sm:%s1007] %v1005
    %s1011 = scalar_lea.vmem [#allocation0], 424
    %v1012 = vld [vmem:[%s1011] sm:%s642]
    %s1013 = sshll.u32 1, 2
    %s1014 = ssub.s32 %s1013, 1
    %s1015 = smul.addr 2, 53
    %s1016 = scalar_lea.vmem %s1, %s1015
    %1017 = vst [vmem:[%s1016] sm:%s1014] %v1012
    %s1018 = scalar_lea.vmem [#allocation0], 432
    %v1019 = vld [vmem:[%s1018] sm:%s642]
    %s1020 = sshll.u32 1, 2
    %s1021 = ssub.s32 %s1020, 1
    %s1022 = smul.addr 2, 54
    %s1023 = scalar_lea.vmem %s1, %s1022
    %1024 = vst [vmem:[%s1023] sm:%s1021] %v1019
    %s1025 = scalar_lea.vmem [#allocation0], 440
    %v1026 = vld [vmem:[%s1025] sm:%s642]
    %s1027 = sshll.u32 1, 2
    %s1028 = ssub.s32 %s1027, 1
    %s1029 = smul.addr 2, 55
    %s1030 = scalar_lea.vmem %s1, %s1029
    %1031 = vst [vmem:[%s1030] sm:%s1028] %v1026
    %s1032 = scalar_lea.vmem [#allocation0], 448
    %v1033 = vld [vmem:[%s1032] sm:%s642]
    %s1034 = sshll.u32 1, 2
    %s1035 = ssub.s32 %s1034, 1
    %s1036 = smul.addr 2, 56
    %s1037 = scalar_lea.vmem %s1, %s1036
    %1038 = vst [vmem:[%s1037] sm:%s1035] %v1033
    %s1039 = scalar_lea.vmem [#allocation0], 456
    %v1040 = vld [vmem:[%s1039] sm:%s642]
    %s1041 = sshll.u32 1, 2
    %s1042 = ssub.s32 %s1041, 1
    %s1043 = smul.addr 2, 57
    %s1044 = scalar_lea.vmem %s1, %s1043
    %1045 = vst [vmem:[%s1044] sm:%s1042] %v1040
    %s1046 = scalar_lea.vmem [#allocation0], 464
    %v1047 = vld [vmem:[%s1046] sm:%s642]
    %s1048 = sshll.u32 1, 2
    %s1049 = ssub.s32 %s1048, 1
    %s1050 = smul.addr 2, 58
    %s1051 = scalar_lea.vmem %s1, %s1050
    %1052 = vst [vmem:[%s1051] sm:%s1049] %v1047
    %s1053 = scalar_lea.vmem [#allocation0], 472
    %v1054 = vld [vmem:[%s1053] sm:%s642]
    %s1055 = sshll.u32 1, 2
    %s1056 = ssub.s32 %s1055, 1
    %s1057 = smul.addr 2, 59
    %s1058 = scalar_lea.vmem %s1, %s1057
    %1059 = vst [vmem:[%s1058] sm:%s1056] %v1054
    %s1060 = scalar_lea.vmem [#allocation0], 480
    %v1061 = vld [vmem:[%s1060] sm:%s642]
    %s1062 = sshll.u32 1, 2
    %s1063 = ssub.s32 %s1062, 1
    %s1064 = smul.addr 2, 60
    %s1065 = scalar_lea.vmem %s1, %s1064
    %1066 = vst [vmem:[%s1065] sm:%s1063] %v1061
    %s1067 = scalar_lea.vmem [#allocation0], 488
    %v1068 = vld [vmem:[%s1067] sm:%s642]
    %s1069 = sshll.u32 1, 2
    %s1070 = ssub.s32 %s1069, 1
    %s1071 = smul.addr 2, 61
    %s1072 = scalar_lea.vmem %s1, %s1071
    %1073 = vst [vmem:[%s1072] sm:%s1070] %v1068
    %s1074 = scalar_lea.vmem [#allocation0], 496
    %v1075 = vld [vmem:[%s1074] sm:%s642]
    %s1076 = sshll.u32 1, 2
    %s1077 = ssub.s32 %s1076, 1
    %s1078 = smul.addr 2, 62
    %s1079 = scalar_lea.vmem %s1, %s1078
    %1080 = vst [vmem:[%s1079] sm:%s1077] %v1075
    %s1081 = scalar_lea.vmem [#allocation0], 504
    %v1082 = vld [vmem:[%s1081] sm:%s642]
    %s1083 = sshll.u32 1, 2
    %s1084 = ssub.s32 %s1083, 1
    %s1085 = smul.addr 2, 63
    %s1086 = scalar_lea.vmem %s1, %s1085
    %1087 = vst [vmem:[%s1086] sm:%s1084] %v1082
    %s1088 = scalar_lea.vmem [#allocation0], 512
    %v1089 = vld [vmem:[%s1088] sm:%s642]
    %s1090 = sshll.u32 1, 2
    %s1091 = ssub.s32 %s1090, 1
    %s1092 = smul.addr 2, 64
    %s1093 = scalar_lea.vmem %s1, %s1092
    %1094 = vst [vmem:[%s1093] sm:%s1091] %v1089
    %s1095 = scalar_lea.vmem [#allocation0], 520
    %v1096 = vld [vmem:[%s1095] sm:%s642]
    %s1097 = sshll.u32 1, 2
    %s1098 = ssub.s32 %s1097, 1
    %s1099 = smul.addr 2, 65
    %s1100 = scalar_lea.vmem %s1, %s1099
    %1101 = vst [vmem:[%s1100] sm:%s1098] %v1096
    %s1102 = scalar_lea.vmem [#allocation0], 528
    %v1103 = vld [vmem:[%s1102] sm:%s642]
    %s1104 = sshll.u32 1, 2
    %s1105 = ssub.s32 %s1104, 1
    %s1106 = smul.addr 2, 66
    %s1107 = scalar_lea.vmem %s1, %s1106
    %1108 = vst [vmem:[%s1107] sm:%s1105] %v1103
    %s1109 = scalar_lea.vmem [#allocation0], 536
    %v1110 = vld [vmem:[%s1109] sm:%s642]
    %s1111 = sshll.u32 1, 2
    %s1112 = ssub.s32 %s1111, 1
    %s1113 = smul.addr 2, 67
    %s1114 = scalar_lea.vmem %s1, %s1113
    %1115 = vst [vmem:[%s1114] sm:%s1112] %v1110
    %s1116 = scalar_lea.vmem [#allocation0], 544
    %v1117 = vld [vmem:[%s1116] sm:%s642]
    %s1118 = sshll.u32 1, 2
    %s1119 = ssub.s32 %s1118, 1
    %s1120 = smul.addr 2, 68
    %s1121 = scalar_lea.vmem %s1, %s1120
    %1122 = vst [vmem:[%s1121] sm:%s1119] %v1117
    %s1123 = scalar_lea.vmem [#allocation0], 552
    %v1124 = vld [vmem:[%s1123] sm:%s642]
    %s1125 = sshll.u32 1, 2
    %s1126 = ssub.s32 %s1125, 1
    %s1127 = smul.addr 2, 69
    %s1128 = scalar_lea.vmem %s1, %s1127
    %1129 = vst [vmem:[%s1128] sm:%s1126] %v1124
    %s1130 = scalar_lea.vmem [#allocation0], 560
    %v1131 = vld [vmem:[%s1130] sm:%s642]
    %s1132 = sshll.u32 1, 2
    %s1133 = ssub.s32 %s1132, 1
    %s1134 = smul.addr 2, 70
    %s1135 = scalar_lea.vmem %s1, %s1134
    %1136 = vst [vmem:[%s1135] sm:%s1133] %v1131
    %s1137 = scalar_lea.vmem [#allocation0], 568
    %v1138 = vld [vmem:[%s1137] sm:%s642]
    %s1139 = sshll.u32 1, 2
    %s1140 = ssub.s32 %s1139, 1
    %s1141 = smul.addr 2, 71
    %s1142 = scalar_lea.vmem %s1, %s1141
    %1143 = vst [vmem:[%s1142] sm:%s1140] %v1138
    %s1144 = scalar_lea.vmem [#allocation0], 576
    %v1145 = vld [vmem:[%s1144] sm:%s642]
    %s1146 = sshll.u32 1, 2
    %s1147 = ssub.s32 %s1146, 1
    %s1148 = smul.addr 2, 72
    %s1149 = scalar_lea.vmem %s1, %s1148
    %1150 = vst [vmem:[%s1149] sm:%s1147] %v1145
    %s1151 = scalar_lea.vmem [#allocation0], 584
    %v1152 = vld [vmem:[%s1151] sm:%s642]
    %s1153 = sshll.u32 1, 2
    %s1154 = ssub.s32 %s1153, 1
    %s1155 = smul.addr 2, 73
    %s1156 = scalar_lea.vmem %s1, %s1155
    %1157 = vst [vmem:[%s1156] sm:%s1154] %v1152
    %s1158 = scalar_lea.vmem [#allocation0], 592
    %v1159 = vld [vmem:[%s1158] sm:%s642]
    %s1160 = sshll.u32 1, 2
    %s1161 = ssub.s32 %s1160, 1
    %s1162 = smul.addr 2, 74
    %s1163 = scalar_lea.vmem %s1, %s1162
    %1164 = vst [vmem:[%s1163] sm:%s1161] %v1159
    %s1165 = scalar_lea.vmem [#allocation0], 600
    %v1166 = vld [vmem:[%s1165] sm:%s642]
    %s1167 = sshll.u32 1, 2
    %s1168 = ssub.s32 %s1167, 1
    %s1169 = smul.addr 2, 75
    %s1170 = scalar_lea.vmem %s1, %s1169
    %1171 = vst [vmem:[%s1170] sm:%s1168] %v1166
    %s1172 = scalar_lea.vmem [#allocation0], 608
    %v1173 = vld [vmem:[%s1172] sm:%s642]
    %s1174 = sshll.u32 1, 2
    %s1175 = ssub.s32 %s1174, 1
    %s1176 = smul.addr 2, 76
    %s1177 = scalar_lea.vmem %s1, %s1176
    %1178 = vst [vmem:[%s1177] sm:%s1175] %v1173
    %s1179 = scalar_lea.vmem [#allocation0], 616
    %v1180 = vld [vmem:[%s1179] sm:%s642]
    %s1181 = sshll.u32 1, 2
    %s1182 = ssub.s32 %s1181, 1
    %s1183 = smul.addr 2, 77
    %s1184 = scalar_lea.vmem %s1, %s1183
    %1185 = vst [vmem:[%s1184] sm:%s1182] %v1180
    %s1186 = scalar_lea.vmem [#allocation0], 624
    %v1187 = vld [vmem:[%s1186] sm:%s642]
    %s1188 = sshll.u32 1, 2
    %s1189 = ssub.s32 %s1188, 1
    %s1190 = smul.addr 2, 78
    %s1191 = scalar_lea.vmem %s1, %s1190
    %1192 = vst [vmem:[%s1191] sm:%s1189] %v1187
    %s1193 = scalar_lea.vmem [#allocation0], 632
    %v1194 = vld [vmem:[%s1193] sm:%s642]
    %s1195 = sshll.u32 1, 2
    %s1196 = ssub.s32 %s1195, 1
    %s1197 = smul.addr 2, 79
    %s1198 = scalar_lea.vmem %s1, %s1197
    %1199 = vst [vmem:[%s1198] sm:%s1196] %v1194
    %s1200 = scalar_lea.vmem [#allocation0], 640
    %v1201 = vld [vmem:[%s1200] sm:%s642]
    %s1202 = sshll.u32 1, 2
    %s1203 = ssub.s32 %s1202, 1
    %s1204 = smul.addr 2, 80
    %s1205 = scalar_lea.vmem %s1, %s1204
    %1206 = vst [vmem:[%s1205] sm:%s1203] %v1201
    %s1207 = scalar_lea.vmem [#allocation0], 648
    %v1208 = vld [vmem:[%s1207] sm:%s642]
    %s1209 = sshll.u32 1, 2
    %s1210 = ssub.s32 %s1209, 1
    %s1211 = smul.addr 2, 81
    %s1212 = scalar_lea.vmem %s1, %s1211
    %1213 = vst [vmem:[%s1212] sm:%s1210] %v1208
    %s1214 = scalar_lea.vmem [#allocation0], 656
    %v1215 = vld [vmem:[%s1214] sm:%s642]
    %s1216 = sshll.u32 1, 2
    %s1217 = ssub.s32 %s1216, 1
    %s1218 = smul.addr 2, 82
    %s1219 = scalar_lea.vmem %s1, %s1218
    %1220 = vst [vmem:[%s1219] sm:%s1217] %v1215
    %s1221 = scalar_lea.vmem [#allocation0], 664
    %v1222 = vld [vmem:[%s1221] sm:%s642]
    %s1223 = sshll.u32 1, 2
    %s1224 = ssub.s32 %s1223, 1
    %s1225 = smul.addr 2, 83
    %s1226 = scalar_lea.vmem %s1, %s1225
    %1227 = vst [vmem:[%s1226] sm:%s1224] %v1222
    %s1228 = scalar_lea.vmem [#allocation0], 672
    %v1229 = vld [vmem:[%s1228] sm:%s642]
    %s1230 = sshll.u32 1, 2
    %s1231 = ssub.s32 %s1230, 1
    %s1232 = smul.addr 2, 84
    %s1233 = scalar_lea.vmem %s1, %s1232
    %1234 = vst [vmem:[%s1233] sm:%s1231] %v1229
    %s1235 = scalar_lea.vmem [#allocation0], 680
    %v1236 = vld [vmem:[%s1235] sm:%s642]
    %s1237 = sshll.u32 1, 2
    %s1238 = ssub.s32 %s1237, 1
    %s1239 = smul.addr 2, 85
    %s1240 = scalar_lea.vmem %s1, %s1239
    %1241 = vst [vmem:[%s1240] sm:%s1238] %v1236
    %s1242 = scalar_lea.vmem [#allocation0], 688
    %v1243 = vld [vmem:[%s1242] sm:%s642]
    %s1244 = sshll.u32 1, 2
    %s1245 = ssub.s32 %s1244, 1
    %s1246 = smul.addr 2, 86
    %s1247 = scalar_lea.vmem %s1, %s1246
    %1248 = vst [vmem:[%s1247] sm:%s1245] %v1243
    %s1249 = scalar_lea.vmem [#allocation0], 696
    %v1250 = vld [vmem:[%s1249] sm:%s642]
    %s1251 = sshll.u32 1, 2
    %s1252 = ssub.s32 %s1251, 1
    %s1253 = smul.addr 2, 87
    %s1254 = scalar_lea.vmem %s1, %s1253
    %1255 = vst [vmem:[%s1254] sm:%s1252] %v1250
    %s1256 = scalar_lea.vmem [#allocation0], 704
    %v1257 = vld [vmem:[%s1256] sm:%s642]
    %s1258 = sshll.u32 1, 2
    %s1259 = ssub.s32 %s1258, 1
    %s1260 = smul.addr 2, 88
    %s1261 = scalar_lea.vmem %s1, %s1260
    %1262 = vst [vmem:[%s1261] sm:%s1259] %v1257
    %s1263 = scalar_lea.vmem [#allocation0], 712
    %v1264 = vld [vmem:[%s1263] sm:%s642]
    %s1265 = sshll.u32 1, 2
    %s1266 = ssub.s32 %s1265, 1
    %s1267 = smul.addr 2, 89
    %s1268 = scalar_lea.vmem %s1, %s1267
    %1269 = vst [vmem:[%s1268] sm:%s1266] %v1264
    %s1270 = scalar_lea.vmem [#allocation0], 720
    %v1271 = vld [vmem:[%s1270] sm:%s642]
    %s1272 = sshll.u32 1, 2
    %s1273 = ssub.s32 %s1272, 1
    %s1274 = smul.addr 2, 90
    %s1275 = scalar_lea.vmem %s1, %s1274
    %1276 = vst [vmem:[%s1275] sm:%s1273] %v1271
    %s1277 = scalar_lea.vmem [#allocation0], 728
    %v1278 = vld [vmem:[%s1277] sm:%s642]
    %s1279 = sshll.u32 1, 2
    %s1280 = ssub.s32 %s1279, 1
    %s1281 = smul.addr 2, 91
    %s1282 = scalar_lea.vmem %s1, %s1281
    %1283 = vst [vmem:[%s1282] sm:%s1280] %v1278
    %s1284 = scalar_lea.vmem [#allocation0], 736
    %v1285 = vld [vmem:[%s1284] sm:%s642]
    %s1286 = sshll.u32 1, 2
    %s1287 = ssub.s32 %s1286, 1
    %s1288 = smul.addr 2, 92
    %s1289 = scalar_lea.vmem %s1, %s1288
    %1290 = vst [vmem:[%s1289] sm:%s1287] %v1285
    %s1291 = scalar_lea.vmem [#allocation0], 744
    %v1292 = vld [vmem:[%s1291] sm:%s642]
    %s1293 = sshll.u32 1, 2
    %s1294 = ssub.s32 %s1293, 1
    %s1295 = smul.addr 2, 93
    %s1296 = scalar_lea.vmem %s1, %s1295
    %1297 = vst [vmem:[%s1296] sm:%s1294] %v1292
    %s1298 = scalar_lea.vmem [#allocation0], 752
    %v1299 = vld [vmem:[%s1298] sm:%s642]
    %s1300 = sshll.u32 1, 2
    %s1301 = ssub.s32 %s1300, 1
    %s1302 = smul.addr 2, 94
    %s1303 = scalar_lea.vmem %s1, %s1302
    %1304 = vst [vmem:[%s1303] sm:%s1301] %v1299
    %s1305 = scalar_lea.vmem [#allocation0], 760
    %v1306 = vld [vmem:[%s1305] sm:%s642]
    %s1307 = sshll.u32 1, 2
    %s1308 = ssub.s32 %s1307, 1
    %s1309 = smul.addr 2, 95
    %s1310 = scalar_lea.vmem %s1, %s1309
    %1311 = vst [vmem:[%s1310] sm:%s1308] %v1306
    %s1312 = scalar_lea.vmem [#allocation0], 768
    %v1313 = vld [vmem:[%s1312] sm:%s642]
    %s1314 = sshll.u32 1, 2
    %s1315 = ssub.s32 %s1314, 1
    %s1316 = smul.addr 2, 96
    %s1317 = scalar_lea.vmem %s1, %s1316
    %1318 = vst [vmem:[%s1317] sm:%s1315] %v1313
    %s1319 = scalar_lea.vmem [#allocation0], 776
    %v1320 = vld [vmem:[%s1319] sm:%s642]
    %s1321 = sshll.u32 1, 2
    %s1322 = ssub.s32 %s1321, 1
    %s1323 = smul.addr 2, 97
    %s1324 = scalar_lea.vmem %s1, %s1323
    %1325 = vst [vmem:[%s1324] sm:%s1322] %v1320
    %s1326 = scalar_lea.vmem [#allocation0], 784
    %v1327 = vld [vmem:[%s1326] sm:%s642]
    %s1328 = sshll.u32 1, 2
    %s1329 = ssub.s32 %s1328, 1
    %s1330 = smul.addr 2, 98
    %s1331 = scalar_lea.vmem %s1, %s1330
    %1332 = vst [vmem:[%s1331] sm:%s1329] %v1327
    %s1333 = scalar_lea.vmem [#allocation0], 792
    %v1334 = vld [vmem:[%s1333] sm:%s642]
    %s1335 = sshll.u32 1, 2
    %s1336 = ssub.s32 %s1335, 1
    %s1337 = smul.addr 2, 99
    %s1338 = scalar_lea.vmem %s1, %s1337
    %1339 = vst [vmem:[%s1338] sm:%s1336] %v1334
    %s1340 = scalar_lea.vmem [#allocation0], 800
    %v1341 = vld [vmem:[%s1340] sm:%s642]
    %s1342 = sshll.u32 1, 2
    %s1343 = ssub.s32 %s1342, 1
    %s1344 = smul.addr 2, 100
    %s1345 = scalar_lea.vmem %s1, %s1344
    %1346 = vst [vmem:[%s1345] sm:%s1343] %v1341
    %s1347 = scalar_lea.vmem [#allocation0], 808
    %v1348 = vld [vmem:[%s1347] sm:%s642]
    %s1349 = sshll.u32 1, 2
    %s1350 = ssub.s32 %s1349, 1
    %s1351 = smul.addr 2, 101
    %s1352 = scalar_lea.vmem %s1, %s1351
    %1353 = vst [vmem:[%s1352] sm:%s1350] %v1348
    %s1354 = scalar_lea.vmem [#allocation0], 816
    %v1355 = vld [vmem:[%s1354] sm:%s642]
    %s1356 = sshll.u32 1, 2
    %s1357 = ssub.s32 %s1356, 1
    %s1358 = smul.addr 2, 102
    %s1359 = scalar_lea.vmem %s1, %s1358
    %1360 = vst [vmem:[%s1359] sm:%s1357] %v1355
    %s1361 = scalar_lea.vmem [#allocation0], 824
    %v1362 = vld [vmem:[%s1361] sm:%s642]
    %s1363 = sshll.u32 1, 2
    %s1364 = ssub.s32 %s1363, 1
    %s1365 = smul.addr 2, 103
    %s1366 = scalar_lea.vmem %s1, %s1365
    %1367 = vst [vmem:[%s1366] sm:%s1364] %v1362
    %s1368 = scalar_lea.vmem [#allocation0], 832
    %v1369 = vld [vmem:[%s1368] sm:%s642]
    %s1370 = sshll.u32 1, 2
    %s1371 = ssub.s32 %s1370, 1
    %s1372 = smul.addr 2, 104
    %s1373 = scalar_lea.vmem %s1, %s1372
    %1374 = vst [vmem:[%s1373] sm:%s1371] %v1369
    %s1375 = scalar_lea.vmem [#allocation0], 840
    %v1376 = vld [vmem:[%s1375] sm:%s642]
    %s1377 = sshll.u32 1, 2
    %s1378 = ssub.s32 %s1377, 1
    %s1379 = smul.addr 2, 105
    %s1380 = scalar_lea.vmem %s1, %s1379
    %1381 = vst [vmem:[%s1380] sm:%s1378] %v1376
    %s1382 = scalar_lea.vmem [#allocation0], 848
    %v1383 = vld [vmem:[%s1382] sm:%s642]
    %s1384 = sshll.u32 1, 2
    %s1385 = ssub.s32 %s1384, 1
    %s1386 = smul.addr 2, 106
    %s1387 = scalar_lea.vmem %s1, %s1386
    %1388 = vst [vmem:[%s1387] sm:%s1385] %v1383
    %s1389 = scalar_lea.vmem [#allocation0], 856
    %v1390 = vld [vmem:[%s1389] sm:%s642]
    %s1391 = sshll.u32 1, 2
    %s1392 = ssub.s32 %s1391, 1
    %s1393 = smul.addr 2, 107
    %s1394 = scalar_lea.vmem %s1, %s1393
    %1395 = vst [vmem:[%s1394] sm:%s1392] %v1390
    %s1396 = scalar_lea.vmem [#allocation0], 864
    %v1397 = vld [vmem:[%s1396] sm:%s642]
    %s1398 = sshll.u32 1, 2
    %s1399 = ssub.s32 %s1398, 1
    %s1400 = smul.addr 2, 108
    %s1401 = scalar_lea.vmem %s1, %s1400
    %1402 = vst [vmem:[%s1401] sm:%s1399] %v1397
    %s1403 = scalar_lea.vmem [#allocation0], 872
    %v1404 = vld [vmem:[%s1403] sm:%s642]
    %s1405 = sshll.u32 1, 2
    %s1406 = ssub.s32 %s1405, 1
    %s1407 = smul.addr 2, 109
    %s1408 = scalar_lea.vmem %s1, %s1407
    %1409 = vst [vmem:[%s1408] sm:%s1406] %v1404
    %s1410 = scalar_lea.vmem [#allocation0], 880
    %v1411 = vld [vmem:[%s1410] sm:%s642]
    %s1412 = sshll.u32 1, 2
    %s1413 = ssub.s32 %s1412, 1
    %s1414 = smul.addr 2, 110
    %s1415 = scalar_lea.vmem %s1, %s1414
    %1416 = vst [vmem:[%s1415] sm:%s1413] %v1411
    %s1417 = scalar_lea.vmem [#allocation0], 888
    %v1418 = vld [vmem:[%s1417] sm:%s642]
    %s1419 = sshll.u32 1, 2
    %s1420 = ssub.s32 %s1419, 1
    %s1421 = smul.addr 2, 111
    %s1422 = scalar_lea.vmem %s1, %s1421
    %1423 = vst [vmem:[%s1422] sm:%s1420] %v1418
    %s1424 = scalar_lea.vmem [#allocation0], 896
    %v1425 = vld [vmem:[%s1424] sm:%s642]
    %s1426 = sshll.u32 1, 2
    %s1427 = ssub.s32 %s1426, 1
    %s1428 = smul.addr 2, 112
    %s1429 = scalar_lea.vmem %s1, %s1428
    %1430 = vst [vmem:[%s1429] sm:%s1427] %v1425
    %s1431 = scalar_lea.vmem [#allocation0], 904
    %v1432 = vld [vmem:[%s1431] sm:%s642]
    %s1433 = sshll.u32 1, 2
    %s1434 = ssub.s32 %s1433, 1
    %s1435 = smul.addr 2, 113
    %s1436 = scalar_lea.vmem %s1, %s1435
    %1437 = vst [vmem:[%s1436] sm:%s1434] %v1432
    %s1438 = scalar_lea.vmem [#allocation0], 912
    %v1439 = vld [vmem:[%s1438] sm:%s642]
    %s1440 = sshll.u32 1, 2
    %s1441 = ssub.s32 %s1440, 1
    %s1442 = smul.addr 2, 114
    %s1443 = scalar_lea.vmem %s1, %s1442
    %1444 = vst [vmem:[%s1443] sm:%s1441] %v1439
    %s1445 = scalar_lea.vmem [#allocation0], 920
    %v1446 = vld [vmem:[%s1445] sm:%s642]
    %s1447 = sshll.u32 1, 2
    %s1448 = ssub.s32 %s1447, 1
    %s1449 = smul.addr 2, 115
    %s1450 = scalar_lea.vmem %s1, %s1449
    %1451 = vst [vmem:[%s1450] sm:%s1448] %v1446
    %s1452 = scalar_lea.vmem [#allocation0], 928
    %v1453 = vld [vmem:[%s1452] sm:%s642]
    %s1454 = sshll.u32 1, 2
    %s1455 = ssub.s32 %s1454, 1
    %s1456 = smul.addr 2, 116
    %s1457 = scalar_lea.vmem %s1, %s1456
    %1458 = vst [vmem:[%s1457] sm:%s1455] %v1453
    %s1459 = scalar_lea.vmem [#allocation0], 936
    %v1460 = vld [vmem:[%s1459] sm:%s642]
    %s1461 = sshll.u32 1, 2
    %s1462 = ssub.s32 %s1461, 1
    %s1463 = smul.addr 2, 117
    %s1464 = scalar_lea.vmem %s1, %s1463
    %1465 = vst [vmem:[%s1464] sm:%s1462] %v1460
    %s1466 = scalar_lea.vmem [#allocation0], 944
    %v1467 = vld [vmem:[%s1466] sm:%s642]
    %s1468 = sshll.u32 1, 2
    %s1469 = ssub.s32 %s1468, 1
    %s1470 = smul.addr 2, 118
    %s1471 = scalar_lea.vmem %s1, %s1470
    %1472 = vst [vmem:[%s1471] sm:%s1469] %v1467
    %s1473 = scalar_lea.vmem [#allocation0], 952
    %v1474 = vld [vmem:[%s1473] sm:%s642]
    %s1475 = sshll.u32 1, 2
    %s1476 = ssub.s32 %s1475, 1
    %s1477 = smul.addr 2, 119
    %s1478 = scalar_lea.vmem %s1, %s1477
    %1479 = vst [vmem:[%s1478] sm:%s1476] %v1474
    %s1480 = scalar_lea.vmem [#allocation0], 960
    %v1481 = vld [vmem:[%s1480] sm:%s642]
    %s1482 = sshll.u32 1, 2
    %s1483 = ssub.s32 %s1482, 1
    %s1484 = smul.addr 2, 120
    %s1485 = scalar_lea.vmem %s1, %s1484
    %1486 = vst [vmem:[%s1485] sm:%s1483] %v1481
    %s1487 = scalar_lea.vmem [#allocation0], 968
    %v1488 = vld [vmem:[%s1487] sm:%s642]
    %s1489 = sshll.u32 1, 2
    %s1490 = ssub.s32 %s1489, 1
    %s1491 = smul.addr 2, 121
    %s1492 = scalar_lea.vmem %s1, %s1491
    %1493 = vst [vmem:[%s1492] sm:%s1490] %v1488
    %s1494 = scalar_lea.vmem [#allocation0], 976
    %v1495 = vld [vmem:[%s1494] sm:%s642]
    %s1496 = sshll.u32 1, 2
    %s1497 = ssub.s32 %s1496, 1
    %s1498 = smul.addr 2, 122
    %s1499 = scalar_lea.vmem %s1, %s1498
    %1500 = vst [vmem:[%s1499] sm:%s1497] %v1495
    %s1501 = scalar_lea.vmem [#allocation0], 984
    %v1502 = vld [vmem:[%s1501] sm:%s642]
    %s1503 = sshll.u32 1, 2
    %s1504 = ssub.s32 %s1503, 1
    %s1505 = smul.addr 2, 123
    %s1506 = scalar_lea.vmem %s1, %s1505
    %1507 = vst [vmem:[%s1506] sm:%s1504] %v1502
    %s1508 = scalar_lea.vmem [#allocation0], 992
    %v1509 = vld [vmem:[%s1508] sm:%s642]
    %s1510 = sshll.u32 1, 2
    %s1511 = ssub.s32 %s1510, 1
    %s1512 = smul.addr 2, 124
    %s1513 = scalar_lea.vmem %s1, %s1512
    %1514 = vst [vmem:[%s1513] sm:%s1511] %v1509
    %s1515 = scalar_lea.vmem [#allocation0], 1000
    %v1516 = vld [vmem:[%s1515] sm:%s642]
    %s1517 = sshll.u32 1, 2
    %s1518 = ssub.s32 %s1517, 1
    %s1519 = smul.addr 2, 125
    %s1520 = scalar_lea.vmem %s1, %s1519
    %1521 = vst [vmem:[%s1520] sm:%s1518] %v1516
    %s1522 = scalar_lea.vmem [#allocation0], 1008
    %v1523 = vld [vmem:[%s1522] sm:%s642]
    %s1524 = sshll.u32 1, 2
    %s1525 = ssub.s32 %s1524, 1
    %s1526 = smul.addr 2, 126
    %s1527 = scalar_lea.vmem %s1, %s1526
    %1528 = vst [vmem:[%s1527] sm:%s1525] %v1523
    %s1529 = scalar_lea.vmem [#allocation0], 1016
    %v1530 = vld [vmem:[%s1529] sm:%s642]
    %s1531 = sshll.u32 1, 2
    %s1532 = ssub.s32 %s1531, 1
    %s1533 = smul.addr 2, 127
    %s1534 = scalar_lea.vmem %s1, %s1533
    %1535 = vst [vmem:[%s1534] sm:%s1532] %v1530
    %s1536 = scalar_lea.vmem [#allocation0], 1024
    %v1537 = vld [vmem:[%s1536] sm:%s642]
    %s1538 = sshll.u32 1, 2
    %s1539 = ssub.s32 %s1538, 1
    %s1540 = smul.addr 2, 128
    %s1541 = scalar_lea.vmem %s1, %s1540
    %1542 = vst [vmem:[%s1541] sm:%s1539] %v1537
    %s1543 = scalar_lea.vmem [#allocation0], 1032
    %v1544 = vld [vmem:[%s1543] sm:%s642]
    %s1545 = sshll.u32 1, 2
    %s1546 = ssub.s32 %s1545, 1
    %s1547 = smul.addr 2, 129
    %s1548 = scalar_lea.vmem %s1, %s1547
    %1549 = vst [vmem:[%s1548] sm:%s1546] %v1544
    %s1550 = scalar_lea.vmem [#allocation0], 1040
    %v1551 = vld [vmem:[%s1550] sm:%s642]
    %s1552 = sshll.u32 1, 2
    %s1553 = ssub.s32 %s1552, 1
    %s1554 = smul.addr 2, 130
    %s1555 = scalar_lea.vmem %s1, %s1554
    %1556 = vst [vmem:[%s1555] sm:%s1553] %v1551
    %s1557 = scalar_lea.vmem [#allocation0], 1048
    %v1558 = vld [vmem:[%s1557] sm:%s642]
    %s1559 = sshll.u32 1, 2
    %s1560 = ssub.s32 %s1559, 1
    %s1561 = smul.addr 2, 131
    %s1562 = scalar_lea.vmem %s1, %s1561
    %1563 = vst [vmem:[%s1562] sm:%s1560] %v1558
    %s1564 = scalar_lea.vmem [#allocation0], 1056
    %v1565 = vld [vmem:[%s1564] sm:%s642]
    %s1566 = sshll.u32 1, 2
    %s1567 = ssub.s32 %s1566, 1
    %s1568 = smul.addr 2, 132
    %s1569 = scalar_lea.vmem %s1, %s1568
    %1570 = vst [vmem:[%s1569] sm:%s1567] %v1565
    %s1571 = scalar_lea.vmem [#allocation0], 1064
    %v1572 = vld [vmem:[%s1571] sm:%s642]
    %s1573 = sshll.u32 1, 2
    %s1574 = ssub.s32 %s1573, 1
    %s1575 = smul.addr 2, 133
    %s1576 = scalar_lea.vmem %s1, %s1575
    %1577 = vst [vmem:[%s1576] sm:%s1574] %v1572
    %s1578 = scalar_lea.vmem [#allocation0], 1072
    %v1579 = vld [vmem:[%s1578] sm:%s642]
    %s1580 = sshll.u32 1, 2
    %s1581 = ssub.s32 %s1580, 1
    %s1582 = smul.addr 2, 134
    %s1583 = scalar_lea.vmem %s1, %s1582
    %1584 = vst [vmem:[%s1583] sm:%s1581] %v1579
    %s1585 = scalar_lea.vmem [#allocation0], 1080
    %v1586 = vld [vmem:[%s1585] sm:%s642]
    %s1587 = sshll.u32 1, 2
    %s1588 = ssub.s32 %s1587, 1
    %s1589 = smul.addr 2, 135
    %s1590 = scalar_lea.vmem %s1, %s1589
    %1591 = vst [vmem:[%s1590] sm:%s1588] %v1586
    %s1592 = scalar_lea.vmem [#allocation0], 1088
    %v1593 = vld [vmem:[%s1592] sm:%s642]
    %s1594 = sshll.u32 1, 2
    %s1595 = ssub.s32 %s1594, 1
    %s1596 = smul.addr 2, 136
    %s1597 = scalar_lea.vmem %s1, %s1596
    %1598 = vst [vmem:[%s1597] sm:%s1595] %v1593
    %s1599 = scalar_lea.vmem [#allocation0], 1096
    %v1600 = vld [vmem:[%s1599] sm:%s642]
    %s1601 = sshll.u32 1, 2
    %s1602 = ssub.s32 %s1601, 1
    %s1603 = smul.addr 2, 137
    %s1604 = scalar_lea.vmem %s1, %s1603
    %1605 = vst [vmem:[%s1604] sm:%s1602] %v1600
    %s1606 = scalar_lea.vmem [#allocation0], 1104
    %v1607 = vld [vmem:[%s1606] sm:%s642]
    %s1608 = sshll.u32 1, 2
    %s1609 = ssub.s32 %s1608, 1
    %s1610 = smul.addr 2, 138
    %s1611 = scalar_lea.vmem %s1, %s1610
    %1612 = vst [vmem:[%s1611] sm:%s1609] %v1607
    %s1613 = scalar_lea.vmem [#allocation0], 1112
    %v1614 = vld [vmem:[%s1613] sm:%s642]
    %s1615 = sshll.u32 1, 2
    %s1616 = ssub.s32 %s1615, 1
    %s1617 = smul.addr 2, 139
    %s1618 = scalar_lea.vmem %s1, %s1617
    %1619 = vst [vmem:[%s1618] sm:%s1616] %v1614
    %s1620 = scalar_lea.vmem [#allocation0], 1120
    %v1621 = vld [vmem:[%s1620] sm:%s642]
    %s1622 = sshll.u32 1, 2
    %s1623 = ssub.s32 %s1622, 1
    %s1624 = smul.addr 2, 140
    %s1625 = scalar_lea.vmem %s1, %s1624
    %1626 = vst [vmem:[%s1625] sm:%s1623] %v1621
    %s1627 = scalar_lea.vmem [#allocation0], 1128
    %v1628 = vld [vmem:[%s1627] sm:%s642]
    %s1629 = sshll.u32 1, 2
    %s1630 = ssub.s32 %s1629, 1
    %s1631 = smul.addr 2, 141
    %s1632 = scalar_lea.vmem %s1, %s1631
    %1633 = vst [vmem:[%s1632] sm:%s1630] %v1628
    %s1634 = scalar_lea.vmem [#allocation0], 1136
    %v1635 = vld [vmem:[%s1634] sm:%s642]
    %s1636 = sshll.u32 1, 2
    %s1637 = ssub.s32 %s1636, 1
    %s1638 = smul.addr 2, 142
    %s1639 = scalar_lea.vmem %s1, %s1638
    %1640 = vst [vmem:[%s1639] sm:%s1637] %v1635
    %s1641 = scalar_lea.vmem [#allocation0], 1144
    %v1642 = vld [vmem:[%s1641] sm:%s642]
    %s1643 = sshll.u32 1, 2
    %s1644 = ssub.s32 %s1643, 1
    %s1645 = smul.addr 2, 143
    %s1646 = scalar_lea.vmem %s1, %s1645
    %1647 = vst [vmem:[%s1646] sm:%s1644] %v1642
    %s1648 = scalar_lea.vmem [#allocation0], 1152
    %v1649 = vld [vmem:[%s1648] sm:%s642]
    %s1650 = sshll.u32 1, 2
    %s1651 = ssub.s32 %s1650, 1
    %s1652 = smul.addr 2, 144
    %s1653 = scalar_lea.vmem %s1, %s1652
    %1654 = vst [vmem:[%s1653] sm:%s1651] %v1649
    %s1655 = scalar_lea.vmem [#allocation0], 1160
    %v1656 = vld [vmem:[%s1655] sm:%s642]
    %s1657 = sshll.u32 1, 2
    %s1658 = ssub.s32 %s1657, 1
    %s1659 = smul.addr 2, 145
    %s1660 = scalar_lea.vmem %s1, %s1659
    %1661 = vst [vmem:[%s1660] sm:%s1658] %v1656
    %s1662 = scalar_lea.vmem [#allocation0], 1168
    %v1663 = vld [vmem:[%s1662] sm:%s642]
    %s1664 = sshll.u32 1, 2
    %s1665 = ssub.s32 %s1664, 1
    %s1666 = smul.addr 2, 146
    %s1667 = scalar_lea.vmem %s1, %s1666
    %1668 = vst [vmem:[%s1667] sm:%s1665] %v1663
    %s1669 = scalar_lea.vmem [#allocation0], 1176
    %v1670 = vld [vmem:[%s1669] sm:%s642]
    %s1671 = sshll.u32 1, 2
    %s1672 = ssub.s32 %s1671, 1
    %s1673 = smul.addr 2, 147
    %s1674 = scalar_lea.vmem %s1, %s1673
    %1675 = vst [vmem:[%s1674] sm:%s1672] %v1670
    %s1676 = scalar_lea.vmem [#allocation0], 1184
    %v1677 = vld [vmem:[%s1676] sm:%s642]
    %s1678 = sshll.u32 1, 2
    %s1679 = ssub.s32 %s1678, 1
    %s1680 = smul.addr 2, 148
    %s1681 = scalar_lea.vmem %s1, %s1680
    %1682 = vst [vmem:[%s1681] sm:%s1679] %v1677
    %s1683 = scalar_lea.vmem [#allocation0], 1192
    %v1684 = vld [vmem:[%s1683] sm:%s642]
    %s1685 = sshll.u32 1, 2
    %s1686 = ssub.s32 %s1685, 1
    %s1687 = smul.addr 2, 149
    %s1688 = scalar_lea.vmem %s1, %s1687
    %1689 = vst [vmem:[%s1688] sm:%s1686] %v1684
    %s1690 = scalar_lea.vmem [#allocation0], 1200
    %v1691 = vld [vmem:[%s1690] sm:%s642]
    %s1692 = sshll.u32 1, 2
    %s1693 = ssub.s32 %s1692, 1
    %s1694 = smul.addr 2, 150
    %s1695 = scalar_lea.vmem %s1, %s1694
    %1696 = vst [vmem:[%s1695] sm:%s1693] %v1691
    %s1697 = scalar_lea.vmem [#allocation0], 1208
    %v1698 = vld [vmem:[%s1697] sm:%s642]
    %s1699 = sshll.u32 1, 2
    %s1700 = ssub.s32 %s1699, 1
    %s1701 = smul.addr 2, 151
    %s1702 = scalar_lea.vmem %s1, %s1701
    %1703 = vst [vmem:[%s1702] sm:%s1700] %v1698
    %s1704 = scalar_lea.vmem [#allocation0], 1216
    %v1705 = vld [vmem:[%s1704] sm:%s642]
    %s1706 = sshll.u32 1, 2
    %s1707 = ssub.s32 %s1706, 1
    %s1708 = smul.addr 2, 152
    %s1709 = scalar_lea.vmem %s1, %s1708
    %1710 = vst [vmem:[%s1709] sm:%s1707] %v1705
    %s1711 = scalar_lea.vmem [#allocation0], 1224
    %v1712 = vld [vmem:[%s1711] sm:%s642]
    %s1713 = sshll.u32 1, 2
    %s1714 = ssub.s32 %s1713, 1
    %s1715 = smul.addr 2, 153
    %s1716 = scalar_lea.vmem %s1, %s1715
    %1717 = vst [vmem:[%s1716] sm:%s1714] %v1712
    %s1718 = scalar_lea.vmem [#allocation0], 1232
    %v1719 = vld [vmem:[%s1718] sm:%s642]
    %s1720 = sshll.u32 1, 2
    %s1721 = ssub.s32 %s1720, 1
    %s1722 = smul.addr 2, 154
    %s1723 = scalar_lea.vmem %s1, %s1722
    %1724 = vst [vmem:[%s1723] sm:%s1721] %v1719
    %s1725 = scalar_lea.vmem [#allocation0], 1240
    %v1726 = vld [vmem:[%s1725] sm:%s642]
    %s1727 = sshll.u32 1, 2
    %s1728 = ssub.s32 %s1727, 1
    %s1729 = smul.addr 2, 155
    %s1730 = scalar_lea.vmem %s1, %s1729
    %1731 = vst [vmem:[%s1730] sm:%s1728] %v1726
    %s1732 = scalar_lea.vmem [#allocation0], 1248
    %v1733 = vld [vmem:[%s1732] sm:%s642]
    %s1734 = sshll.u32 1, 2
    %s1735 = ssub.s32 %s1734, 1
    %s1736 = smul.addr 2, 156
    %s1737 = scalar_lea.vmem %s1, %s1736
    %1738 = vst [vmem:[%s1737] sm:%s1735] %v1733
    %s1739 = scalar_lea.vmem [#allocation0], 1256
    %v1740 = vld [vmem:[%s1739] sm:%s642]
    %s1741 = sshll.u32 1, 2
    %s1742 = ssub.s32 %s1741, 1
    %s1743 = smul.addr 2, 157
    %s1744 = scalar_lea.vmem %s1, %s1743
    %1745 = vst [vmem:[%s1744] sm:%s1742] %v1740
    %s1746 = scalar_lea.vmem [#allocation0], 1264
    %v1747 = vld [vmem:[%s1746] sm:%s642]
    %s1748 = sshll.u32 1, 2
    %s1749 = ssub.s32 %s1748, 1
    %s1750 = smul.addr 2, 158
    %s1751 = scalar_lea.vmem %s1, %s1750
    %1752 = vst [vmem:[%s1751] sm:%s1749] %v1747
    %s1753 = scalar_lea.vmem [#allocation0], 1272
    %v1754 = vld [vmem:[%s1753] sm:%s642]
    %s1755 = sshll.u32 1, 2
    %s1756 = ssub.s32 %s1755, 1
    %s1757 = smul.addr 2, 159
    %s1758 = scalar_lea.vmem %s1, %s1757
    %1759 = vst [vmem:[%s1758] sm:%s1756] %v1754
    %s1760 = scalar_lea.vmem [#allocation0], 1280
    %v1761 = vld [vmem:[%s1760] sm:%s642]
    %s1762 = sshll.u32 1, 2
    %s1763 = ssub.s32 %s1762, 1
    %s1764 = smul.addr 2, 160
    %s1765 = scalar_lea.vmem %s1, %s1764
    %1766 = vst [vmem:[%s1765] sm:%s1763] %v1761
    %s1767 = scalar_lea.vmem [#allocation0], 1288
    %v1768 = vld [vmem:[%s1767] sm:%s642]
    %s1769 = sshll.u32 1, 2
    %s1770 = ssub.s32 %s1769, 1
    %s1771 = smul.addr 2, 161
    %s1772 = scalar_lea.vmem %s1, %s1771
    %1773 = vst [vmem:[%s1772] sm:%s1770] %v1768
    %s1774 = scalar_lea.vmem [#allocation0], 1296
    %v1775 = vld [vmem:[%s1774] sm:%s642]
    %s1776 = sshll.u32 1, 2
    %s1777 = ssub.s32 %s1776, 1
    %s1778 = smul.addr 2, 162
    %s1779 = scalar_lea.vmem %s1, %s1778
    %1780 = vst [vmem:[%s1779] sm:%s1777] %v1775
    %s1781 = scalar_lea.vmem [#allocation0], 1304
    %v1782 = vld [vmem:[%s1781] sm:%s642]
    %s1783 = sshll.u32 1, 2
    %s1784 = ssub.s32 %s1783, 1
    %s1785 = smul.addr 2, 163
    %s1786 = scalar_lea.vmem %s1, %s1785
    %1787 = vst [vmem:[%s1786] sm:%s1784] %v1782
    %s1788 = scalar_lea.vmem [#allocation0], 1312
    %v1789 = vld [vmem:[%s1788] sm:%s642]
    %s1790 = sshll.u32 1, 2
    %s1791 = ssub.s32 %s1790, 1
    %s1792 = smul.addr 2, 164
    %s1793 = scalar_lea.vmem %s1, %s1792
    %1794 = vst [vmem:[%s1793] sm:%s1791] %v1789
    %s1795 = scalar_lea.vmem [#allocation0], 1320
    %v1796 = vld [vmem:[%s1795] sm:%s642]
    %s1797 = sshll.u32 1, 2
    %s1798 = ssub.s32 %s1797, 1
    %s1799 = smul.addr 2, 165
    %s1800 = scalar_lea.vmem %s1, %s1799
    %1801 = vst [vmem:[%s1800] sm:%s1798] %v1796
    %s1802 = scalar_lea.vmem [#allocation0], 1328
    %v1803 = vld [vmem:[%s1802] sm:%s642]
    %s1804 = sshll.u32 1, 2
    %s1805 = ssub.s32 %s1804, 1
    %s1806 = smul.addr 2, 166
    %s1807 = scalar_lea.vmem %s1, %s1806
    %1808 = vst [vmem:[%s1807] sm:%s1805] %v1803
    %s1809 = scalar_lea.vmem [#allocation0], 1336
    %v1810 = vld [vmem:[%s1809] sm:%s642]
    %s1811 = sshll.u32 1, 2
    %s1812 = ssub.s32 %s1811, 1
    %s1813 = smul.addr 2, 167
    %s1814 = scalar_lea.vmem %s1, %s1813
    %1815 = vst [vmem:[%s1814] sm:%s1812] %v1810
    %s1816 = scalar_lea.vmem [#allocation0], 1344
    %v1817 = vld [vmem:[%s1816] sm:%s642]
    %s1818 = sshll.u32 1, 2
    %s1819 = ssub.s32 %s1818, 1
    %s1820 = smul.addr 2, 168
    %s1821 = scalar_lea.vmem %s1, %s1820
    %1822 = vst [vmem:[%s1821] sm:%s1819] %v1817
    %s1823 = scalar_lea.vmem [#allocation0], 1352
    %v1824 = vld [vmem:[%s1823] sm:%s642]
    %s1825 = sshll.u32 1, 2
    %s1826 = ssub.s32 %s1825, 1
    %s1827 = smul.addr 2, 169
    %s1828 = scalar_lea.vmem %s1, %s1827
    %1829 = vst [vmem:[%s1828] sm:%s1826] %v1824
    %s1830 = scalar_lea.vmem [#allocation0], 1360
    %v1831 = vld [vmem:[%s1830] sm:%s642]
    %s1832 = sshll.u32 1, 2
    %s1833 = ssub.s32 %s1832, 1
    %s1834 = smul.addr 2, 170
    %s1835 = scalar_lea.vmem %s1, %s1834
    %1836 = vst [vmem:[%s1835] sm:%s1833] %v1831
    %s1837 = scalar_lea.vmem [#allocation0], 1368
    %v1838 = vld [vmem:[%s1837] sm:%s642]
    %s1839 = sshll.u32 1, 2
    %s1840 = ssub.s32 %s1839, 1
    %s1841 = smul.addr 2, 171
    %s1842 = scalar_lea.vmem %s1, %s1841
    %1843 = vst [vmem:[%s1842] sm:%s1840] %v1838
    %s1844 = scalar_lea.vmem [#allocation0], 1376
    %v1845 = vld [vmem:[%s1844] sm:%s642]
    %s1846 = sshll.u32 1, 2
    %s1847 = ssub.s32 %s1846, 1
    %s1848 = smul.addr 2, 172
    %s1849 = scalar_lea.vmem %s1, %s1848
    %1850 = vst [vmem:[%s1849] sm:%s1847] %v1845
    %s1851 = scalar_lea.vmem [#allocation0], 1384
    %v1852 = vld [vmem:[%s1851] sm:%s642]
    %s1853 = sshll.u32 1, 2
    %s1854 = ssub.s32 %s1853, 1
    %s1855 = smul.addr 2, 173
    %s1856 = scalar_lea.vmem %s1, %s1855
    %1857 = vst [vmem:[%s1856] sm:%s1854] %v1852
    %s1858 = scalar_lea.vmem [#allocation0], 1392
    %v1859 = vld [vmem:[%s1858] sm:%s642]
    %s1860 = sshll.u32 1, 2
    %s1861 = ssub.s32 %s1860, 1
    %s1862 = smul.addr 2, 174
    %s1863 = scalar_lea.vmem %s1, %s1862
    %1864 = vst [vmem:[%s1863] sm:%s1861] %v1859
    %s1865 = scalar_lea.vmem [#allocation0], 1400
    %v1866 = vld [vmem:[%s1865] sm:%s642]
    %s1867 = sshll.u32 1, 2
    %s1868 = ssub.s32 %s1867, 1
    %s1869 = smul.addr 2, 175
    %s1870 = scalar_lea.vmem %s1, %s1869
    %1871 = vst [vmem:[%s1870] sm:%s1868] %v1866
    %s1872 = scalar_lea.vmem [#allocation0], 1408
    %v1873 = vld [vmem:[%s1872] sm:%s642]
    %s1874 = sshll.u32 1, 2
    %s1875 = ssub.s32 %s1874, 1
    %s1876 = smul.addr 2, 176
    %s1877 = scalar_lea.vmem %s1, %s1876
    %1878 = vst [vmem:[%s1877] sm:%s1875] %v1873
    %s1879 = scalar_lea.vmem [#allocation0], 1416
    %v1880 = vld [vmem:[%s1879] sm:%s642]
    %s1881 = sshll.u32 1, 2
    %s1882 = ssub.s32 %s1881, 1
    %s1883 = smul.addr 2, 177
    %s1884 = scalar_lea.vmem %s1, %s1883
    %1885 = vst [vmem:[%s1884] sm:%s1882] %v1880
    %s1886 = scalar_lea.vmem [#allocation0], 1424
    %v1887 = vld [vmem:[%s1886] sm:%s642]
    %s1888 = sshll.u32 1, 2
    %s1889 = ssub.s32 %s1888, 1
    %s1890 = smul.addr 2, 178
    %s1891 = scalar_lea.vmem %s1, %s1890
    %1892 = vst [vmem:[%s1891] sm:%s1889] %v1887
    %s1893 = scalar_lea.vmem [#allocation0], 1432
    %v1894 = vld [vmem:[%s1893] sm:%s642]
    %s1895 = sshll.u32 1, 2
    %s1896 = ssub.s32 %s1895, 1
    %s1897 = smul.addr 2, 179
    %s1898 = scalar_lea.vmem %s1, %s1897
    %1899 = vst [vmem:[%s1898] sm:%s1896] %v1894
    %s1900 = scalar_lea.vmem [#allocation0], 1440
    %v1901 = vld [vmem:[%s1900] sm:%s642]
    %s1902 = sshll.u32 1, 2
    %s1903 = ssub.s32 %s1902, 1
    %s1904 = smul.addr 2, 180
    %s1905 = scalar_lea.vmem %s1, %s1904
    %1906 = vst [vmem:[%s1905] sm:%s1903] %v1901
    %s1907 = scalar_lea.vmem [#allocation0], 1448
    %v1908 = vld [vmem:[%s1907] sm:%s642]
    %s1909 = sshll.u32 1, 2
    %s1910 = ssub.s32 %s1909, 1
    %s1911 = smul.addr 2, 181
    %s1912 = scalar_lea.vmem %s1, %s1911
    %1913 = vst [vmem:[%s1912] sm:%s1910] %v1908
    %s1914 = scalar_lea.vmem [#allocation0], 1456
    %v1915 = vld [vmem:[%s1914] sm:%s642]
    %s1916 = sshll.u32 1, 2
    %s1917 = ssub.s32 %s1916, 1
    %s1918 = smul.addr 2, 182
    %s1919 = scalar_lea.vmem %s1, %s1918
    %1920 = vst [vmem:[%s1919] sm:%s1917] %v1915
    %s1921 = scalar_lea.vmem [#allocation0], 1464
    %v1922 = vld [vmem:[%s1921] sm:%s642]
    %s1923 = sshll.u32 1, 2
    %s1924 = ssub.s32 %s1923, 1
    %s1925 = smul.addr 2, 183
    %s1926 = scalar_lea.vmem %s1, %s1925
    %1927 = vst [vmem:[%s1926] sm:%s1924] %v1922
    %s1928 = scalar_lea.vmem [#allocation0], 1472
    %v1929 = vld [vmem:[%s1928] sm:%s642]
    %s1930 = sshll.u32 1, 2
    %s1931 = ssub.s32 %s1930, 1
    %s1932 = smul.addr 2, 184
    %s1933 = scalar_lea.vmem %s1, %s1932
    %1934 = vst [vmem:[%s1933] sm:%s1931] %v1929
    %s1935 = scalar_lea.vmem [#allocation0], 1480
    %v1936 = vld [vmem:[%s1935] sm:%s642]
    %s1937 = sshll.u32 1, 2
    %s1938 = ssub.s32 %s1937, 1
    %s1939 = smul.addr 2, 185
    %s1940 = scalar_lea.vmem %s1, %s1939
    %1941 = vst [vmem:[%s1940] sm:%s1938] %v1936
    %s1942 = scalar_lea.vmem [#allocation0], 1488
    %v1943 = vld [vmem:[%s1942] sm:%s642]
    %s1944 = sshll.u32 1, 2
    %s1945 = ssub.s32 %s1944, 1
    %s1946 = smul.addr 2, 186
    %s1947 = scalar_lea.vmem %s1, %s1946
    %1948 = vst [vmem:[%s1947] sm:%s1945] %v1943
    %s1949 = scalar_lea.vmem [#allocation0], 1496
    %v1950 = vld [vmem:[%s1949] sm:%s642]
    %s1951 = sshll.u32 1, 2
    %s1952 = ssub.s32 %s1951, 1
    %s1953 = smul.addr 2, 187
    %s1954 = scalar_lea.vmem %s1, %s1953
    %1955 = vst [vmem:[%s1954] sm:%s1952] %v1950
    %s1956 = scalar_lea.vmem [#allocation0], 1504
    %v1957 = vld [vmem:[%s1956] sm:%s642]
    %s1958 = sshll.u32 1, 2
    %s1959 = ssub.s32 %s1958, 1
    %s1960 = smul.addr 2, 188
    %s1961 = scalar_lea.vmem %s1, %s1960
    %1962 = vst [vmem:[%s1961] sm:%s1959] %v1957
    %s1963 = scalar_lea.vmem [#allocation0], 1512
    %v1964 = vld [vmem:[%s1963] sm:%s642]
    %s1965 = sshll.u32 1, 2
    %s1966 = ssub.s32 %s1965, 1
    %s1967 = smul.addr 2, 189
    %s1968 = scalar_lea.vmem %s1, %s1967
    %1969 = vst [vmem:[%s1968] sm:%s1966] %v1964
    %s1970 = scalar_lea.vmem [#allocation0], 1520
    %v1971 = vld [vmem:[%s1970] sm:%s642]
    %s1972 = sshll.u32 1, 2
    %s1973 = ssub.s32 %s1972, 1
    %s1974 = smul.addr 2, 190
    %s1975 = scalar_lea.vmem %s1, %s1974
    %1976 = vst [vmem:[%s1975] sm:%s1973] %v1971
    %s1977 = scalar_lea.vmem [#allocation0], 1528
    %v1978 = vld [vmem:[%s1977] sm:%s642]
    %s1979 = sshll.u32 1, 2
    %s1980 = ssub.s32 %s1979, 1
    %s1981 = smul.addr 2, 191
    %s1982 = scalar_lea.vmem %s1, %s1981
    %1983 = vst [vmem:[%s1982] sm:%s1980] %v1978
    %s1984 = scalar_lea.vmem [#allocation0], 1536
    %v1985 = vld [vmem:[%s1984] sm:%s642]
    %s1986 = sshll.u32 1, 2
    %s1987 = ssub.s32 %s1986, 1
    %s1988 = smul.addr 2, 192
    %s1989 = scalar_lea.vmem %s1, %s1988
    %1990 = vst [vmem:[%s1989] sm:%s1987] %v1985
    %s1991 = scalar_lea.vmem [#allocation0], 1544
    %v1992 = vld [vmem:[%s1991] sm:%s642]
    %s1993 = sshll.u32 1, 2
    %s1994 = ssub.s32 %s1993, 1
    %s1995 = smul.addr 2, 193
    %s1996 = scalar_lea.vmem %s1, %s1995
    %1997 = vst [vmem:[%s1996] sm:%s1994] %v1992
    %s1998 = scalar_lea.vmem [#allocation0], 1552
    %v1999 = vld [vmem:[%s1998] sm:%s642]
    %s2000 = sshll.u32 1, 2
    %s2001 = ssub.s32 %s2000, 1
    %s2002 = smul.addr 2, 194
    %s2003 = scalar_lea.vmem %s1, %s2002
    %2004 = vst [vmem:[%s2003] sm:%s2001] %v1999
    %s2005 = scalar_lea.vmem [#allocation0], 1560
    %v2006 = vld [vmem:[%s2005] sm:%s642]
    %s2007 = sshll.u32 1, 2
    %s2008 = ssub.s32 %s2007, 1
    %s2009 = smul.addr 2, 195
    %s2010 = scalar_lea.vmem %s1, %s2009
    %2011 = vst [vmem:[%s2010] sm:%s2008] %v2006
    %s2012 = scalar_lea.vmem [#allocation0], 1568
    %v2013 = vld [vmem:[%s2012] sm:%s642]
    %s2014 = sshll.u32 1, 2
    %s2015 = ssub.s32 %s2014, 1
    %s2016 = smul.addr 2, 196
    %s2017 = scalar_lea.vmem %s1, %s2016
    %2018 = vst [vmem:[%s2017] sm:%s2015] %v2013
    %s2019 = scalar_lea.vmem [#allocation0], 1576
    %v2020 = vld [vmem:[%s2019] sm:%s642]
    %s2021 = sshll.u32 1, 2
    %s2022 = ssub.s32 %s2021, 1
    %s2023 = smul.addr 2, 197
    %s2024 = scalar_lea.vmem %s1, %s2023
    %2025 = vst [vmem:[%s2024] sm:%s2022] %v2020
    %s2026 = scalar_lea.vmem [#allocation0], 1584
    %v2027 = vld [vmem:[%s2026] sm:%s642]
    %s2028 = sshll.u32 1, 2
    %s2029 = ssub.s32 %s2028, 1
    %s2030 = smul.addr 2, 198
    %s2031 = scalar_lea.vmem %s1, %s2030
    %2032 = vst [vmem:[%s2031] sm:%s2029] %v2027
    %s2033 = scalar_lea.vmem [#allocation0], 1592
    %v2034 = vld [vmem:[%s2033] sm:%s642]
    %s2035 = sshll.u32 1, 2
    %s2036 = ssub.s32 %s2035, 1
    %s2037 = smul.addr 2, 199
    %s2038 = scalar_lea.vmem %s1, %s2037
    %2039 = vst [vmem:[%s2038] sm:%s2036] %v2034
    %s2040 = scalar_lea.vmem [#allocation0], 1600
    %v2041 = vld [vmem:[%s2040] sm:%s642]
    %s2042 = sshll.u32 1, 2
    %s2043 = ssub.s32 %s2042, 1
    %s2044 = smul.addr 2, 200
    %s2045 = scalar_lea.vmem %s1, %s2044
    %2046 = vst [vmem:[%s2045] sm:%s2043] %v2041
    %s2047 = scalar_lea.vmem [#allocation0], 1608
    %v2048 = vld [vmem:[%s2047] sm:%s642]
    %s2049 = sshll.u32 1, 2
    %s2050 = ssub.s32 %s2049, 1
    %s2051 = smul.addr 2, 201
    %s2052 = scalar_lea.vmem %s1, %s2051
    %2053 = vst [vmem:[%s2052] sm:%s2050] %v2048
    %s2054 = scalar_lea.vmem [#allocation0], 1616
    %v2055 = vld [vmem:[%s2054] sm:%s642]
    %s2056 = sshll.u32 1, 2
    %s2057 = ssub.s32 %s2056, 1
    %s2058 = smul.addr 2, 202
    %s2059 = scalar_lea.vmem %s1, %s2058
    %2060 = vst [vmem:[%s2059] sm:%s2057] %v2055
    %s2061 = scalar_lea.vmem [#allocation0], 1624
    %v2062 = vld [vmem:[%s2061] sm:%s642]
    %s2063 = sshll.u32 1, 2
    %s2064 = ssub.s32 %s2063, 1
    %s2065 = smul.addr 2, 203
    %s2066 = scalar_lea.vmem %s1, %s2065
    %2067 = vst [vmem:[%s2066] sm:%s2064] %v2062
    %s2068 = scalar_lea.vmem [#allocation0], 1632
    %v2069 = vld [vmem:[%s2068] sm:%s642]
    %s2070 = sshll.u32 1, 2
    %s2071 = ssub.s32 %s2070, 1
    %s2072 = smul.addr 2, 204
    %s2073 = scalar_lea.vmem %s1, %s2072
    %2074 = vst [vmem:[%s2073] sm:%s2071] %v2069
    %s2075 = scalar_lea.vmem [#allocation0], 1640
    %v2076 = vld [vmem:[%s2075] sm:%s642]
    %s2077 = sshll.u32 1, 2
    %s2078 = ssub.s32 %s2077, 1
    %s2079 = smul.addr 2, 205
    %s2080 = scalar_lea.vmem %s1, %s2079
    %2081 = vst [vmem:[%s2080] sm:%s2078] %v2076
    %s2082 = scalar_lea.vmem [#allocation0], 1648
    %v2083 = vld [vmem:[%s2082] sm:%s642]
    %s2084 = sshll.u32 1, 2
    %s2085 = ssub.s32 %s2084, 1
    %s2086 = smul.addr 2, 206
    %s2087 = scalar_lea.vmem %s1, %s2086
    %2088 = vst [vmem:[%s2087] sm:%s2085] %v2083
    %s2089 = scalar_lea.vmem [#allocation0], 1656
    %v2090 = vld [vmem:[%s2089] sm:%s642]
    %s2091 = sshll.u32 1, 2
    %s2092 = ssub.s32 %s2091, 1
    %s2093 = smul.addr 2, 207
    %s2094 = scalar_lea.vmem %s1, %s2093
    %2095 = vst [vmem:[%s2094] sm:%s2092] %v2090
    %s2096 = scalar_lea.vmem [#allocation0], 1664
    %v2097 = vld [vmem:[%s2096] sm:%s642]
    %s2098 = sshll.u32 1, 2
    %s2099 = ssub.s32 %s2098, 1
    %s2100 = smul.addr 2, 208
    %s2101 = scalar_lea.vmem %s1, %s2100
    %2102 = vst [vmem:[%s2101] sm:%s2099] %v2097
    %s2103 = scalar_lea.vmem [#allocation0], 1672
    %v2104 = vld [vmem:[%s2103] sm:%s642]
    %s2105 = sshll.u32 1, 2
    %s2106 = ssub.s32 %s2105, 1
    %s2107 = smul.addr 2, 209
    %s2108 = scalar_lea.vmem %s1, %s2107
    %2109 = vst [vmem:[%s2108] sm:%s2106] %v2104
    %s2110 = scalar_lea.vmem [#allocation0], 1680
    %v2111 = vld [vmem:[%s2110] sm:%s642]
    %s2112 = sshll.u32 1, 2
    %s2113 = ssub.s32 %s2112, 1
    %s2114 = smul.addr 2, 210
    %s2115 = scalar_lea.vmem %s1, %s2114
    %2116 = vst [vmem:[%s2115] sm:%s2113] %v2111
    %s2117 = scalar_lea.vmem [#allocation0], 1688
    %v2118 = vld [vmem:[%s2117] sm:%s642]
    %s2119 = sshll.u32 1, 2
    %s2120 = ssub.s32 %s2119, 1
    %s2121 = smul.addr 2, 211
    %s2122 = scalar_lea.vmem %s1, %s2121
    %2123 = vst [vmem:[%s2122] sm:%s2120] %v2118
    %s2124 = scalar_lea.vmem [#allocation0], 1696
    %v2125 = vld [vmem:[%s2124] sm:%s642]
    %s2126 = sshll.u32 1, 2
    %s2127 = ssub.s32 %s2126, 1
    %s2128 = smul.addr 2, 212
    %s2129 = scalar_lea.vmem %s1, %s2128
    %2130 = vst [vmem:[%s2129] sm:%s2127] %v2125
    %s2131 = scalar_lea.vmem [#allocation0], 1704
    %v2132 = vld [vmem:[%s2131] sm:%s642]
    %s2133 = sshll.u32 1, 2
    %s2134 = ssub.s32 %s2133, 1
    %s2135 = smul.addr 2, 213
    %s2136 = scalar_lea.vmem %s1, %s2135
    %2137 = vst [vmem:[%s2136] sm:%s2134] %v2132
    %s2138 = scalar_lea.vmem [#allocation0], 1712
    %v2139 = vld [vmem:[%s2138] sm:%s642]
    %s2140 = sshll.u32 1, 2
    %s2141 = ssub.s32 %s2140, 1
    %s2142 = smul.addr 2, 214
    %s2143 = scalar_lea.vmem %s1, %s2142
    %2144 = vst [vmem:[%s2143] sm:%s2141] %v2139
    %s2145 = scalar_lea.vmem [#allocation0], 1720
    %v2146 = vld [vmem:[%s2145] sm:%s642]
    %s2147 = sshll.u32 1, 2
    %s2148 = ssub.s32 %s2147, 1
    %s2149 = smul.addr 2, 215
    %s2150 = scalar_lea.vmem %s1, %s2149
    %2151 = vst [vmem:[%s2150] sm:%s2148] %v2146
    %s2152 = scalar_lea.vmem [#allocation0], 1728
    %v2153 = vld [vmem:[%s2152] sm:%s642]
    %s2154 = sshll.u32 1, 2
    %s2155 = ssub.s32 %s2154, 1
    %s2156 = smul.addr 2, 216
    %s2157 = scalar_lea.vmem %s1, %s2156
    %2158 = vst [vmem:[%s2157] sm:%s2155] %v2153
    %s2159 = scalar_lea.vmem [#allocation0], 1736
    %v2160 = vld [vmem:[%s2159] sm:%s642]
    %s2161 = sshll.u32 1, 2
    %s2162 = ssub.s32 %s2161, 1
    %s2163 = smul.addr 2, 217
    %s2164 = scalar_lea.vmem %s1, %s2163
    %2165 = vst [vmem:[%s2164] sm:%s2162] %v2160
    %s2166 = scalar_lea.vmem [#allocation0], 1744
    %v2167 = vld [vmem:[%s2166] sm:%s642]
    %s2168 = sshll.u32 1, 2
    %s2169 = ssub.s32 %s2168, 1
    %s2170 = smul.addr 2, 218
    %s2171 = scalar_lea.vmem %s1, %s2170
    %2172 = vst [vmem:[%s2171] sm:%s2169] %v2167
    %s2173 = scalar_lea.vmem [#allocation0], 1752
    %v2174 = vld [vmem:[%s2173] sm:%s642]
    %s2175 = sshll.u32 1, 2
    %s2176 = ssub.s32 %s2175, 1
    %s2177 = smul.addr 2, 219
    %s2178 = scalar_lea.vmem %s1, %s2177
    %2179 = vst [vmem:[%s2178] sm:%s2176] %v2174
    %s2180 = scalar_lea.vmem [#allocation0], 1760
    %v2181 = vld [vmem:[%s2180] sm:%s642]
    %s2182 = sshll.u32 1, 2
    %s2183 = ssub.s32 %s2182, 1
    %s2184 = smul.addr 2, 220
    %s2185 = scalar_lea.vmem %s1, %s2184
    %2186 = vst [vmem:[%s2185] sm:%s2183] %v2181
    %s2187 = scalar_lea.vmem [#allocation0], 1768
    %v2188 = vld [vmem:[%s2187] sm:%s642]
    %s2189 = sshll.u32 1, 2
    %s2190 = ssub.s32 %s2189, 1
    %s2191 = smul.addr 2, 221
    %s2192 = scalar_lea.vmem %s1, %s2191
    %2193 = vst [vmem:[%s2192] sm:%s2190] %v2188
    %s2194 = scalar_lea.vmem [#allocation0], 1776
    %v2195 = vld [vmem:[%s2194] sm:%s642]
    %s2196 = sshll.u32 1, 2
    %s2197 = ssub.s32 %s2196, 1
    %s2198 = smul.addr 2, 222
    %s2199 = scalar_lea.vmem %s1, %s2198
    %2200 = vst [vmem:[%s2199] sm:%s2197] %v2195
    %s2201 = scalar_lea.vmem [#allocation0], 1784
    %v2202 = vld [vmem:[%s2201] sm:%s642]
    %s2203 = sshll.u32 1, 2
    %s2204 = ssub.s32 %s2203, 1
    %s2205 = smul.addr 2, 223
    %s2206 = scalar_lea.vmem %s1, %s2205
    %2207 = vst [vmem:[%s2206] sm:%s2204] %v2202
    %s2208 = scalar_lea.vmem [#allocation0], 1792
    %v2209 = vld [vmem:[%s2208] sm:%s642]
    %s2210 = sshll.u32 1, 2
    %s2211 = ssub.s32 %s2210, 1
    %s2212 = smul.addr 2, 224
    %s2213 = scalar_lea.vmem %s1, %s2212
    %2214 = vst [vmem:[%s2213] sm:%s2211] %v2209
    %s2215 = scalar_lea.vmem [#allocation0], 1800
    %v2216 = vld [vmem:[%s2215] sm:%s642]
    %s2217 = sshll.u32 1, 2
    %s2218 = ssub.s32 %s2217, 1
    %s2219 = smul.addr 2, 225
    %s2220 = scalar_lea.vmem %s1, %s2219
    %2221 = vst [vmem:[%s2220] sm:%s2218] %v2216
    %s2222 = scalar_lea.vmem [#allocation0], 1808
    %v2223 = vld [vmem:[%s2222] sm:%s642]
    %s2224 = sshll.u32 1, 2
    %s2225 = ssub.s32 %s2224, 1
    %s2226 = smul.addr 2, 226
    %s2227 = scalar_lea.vmem %s1, %s2226
    %2228 = vst [vmem:[%s2227] sm:%s2225] %v2223
    %s2229 = scalar_lea.vmem [#allocation0], 1816
    %v2230 = vld [vmem:[%s2229] sm:%s642]
    %s2231 = sshll.u32 1, 2
    %s2232 = ssub.s32 %s2231, 1
    %s2233 = smul.addr 2, 227
    %s2234 = scalar_lea.vmem %s1, %s2233
    %2235 = vst [vmem:[%s2234] sm:%s2232] %v2230
    %s2236 = scalar_lea.vmem [#allocation0], 1824
    %v2237 = vld [vmem:[%s2236] sm:%s642]
    %s2238 = sshll.u32 1, 2
    %s2239 = ssub.s32 %s2238, 1
    %s2240 = smul.addr 2, 228
    %s2241 = scalar_lea.vmem %s1, %s2240
    %2242 = vst [vmem:[%s2241] sm:%s2239] %v2237
    %s2243 = scalar_lea.vmem [#allocation0], 1832
    %v2244 = vld [vmem:[%s2243] sm:%s642]
    %s2245 = sshll.u32 1, 2
    %s2246 = ssub.s32 %s2245, 1
    %s2247 = smul.addr 2, 229
    %s2248 = scalar_lea.vmem %s1, %s2247
    %2249 = vst [vmem:[%s2248] sm:%s2246] %v2244
    %s2250 = scalar_lea.vmem [#allocation0], 1840
    %v2251 = vld [vmem:[%s2250] sm:%s642]
    %s2252 = sshll.u32 1, 2
    %s2253 = ssub.s32 %s2252, 1
    %s2254 = smul.addr 2, 230
    %s2255 = scalar_lea.vmem %s1, %s2254
    %2256 = vst [vmem:[%s2255] sm:%s2253] %v2251
    %s2257 = scalar_lea.vmem [#allocation0], 1848
    %v2258 = vld [vmem:[%s2257] sm:%s642]
    %s2259 = sshll.u32 1, 2
    %s2260 = ssub.s32 %s2259, 1
    %s2261 = smul.addr 2, 231
    %s2262 = scalar_lea.vmem %s1, %s2261
    %2263 = vst [vmem:[%s2262] sm:%s2260] %v2258
    %s2264 = scalar_lea.vmem [#allocation0], 1856
    %v2265 = vld [vmem:[%s2264] sm:%s642]
    %s2266 = sshll.u32 1, 2
    %s2267 = ssub.s32 %s2266, 1
    %s2268 = smul.addr 2, 232
    %s2269 = scalar_lea.vmem %s1, %s2268
    %2270 = vst [vmem:[%s2269] sm:%s2267] %v2265
    %s2271 = scalar_lea.vmem [#allocation0], 1864
    %v2272 = vld [vmem:[%s2271] sm:%s642]
    %s2273 = sshll.u32 1, 2
    %s2274 = ssub.s32 %s2273, 1
    %s2275 = smul.addr 2, 233
    %s2276 = scalar_lea.vmem %s1, %s2275
    %2277 = vst [vmem:[%s2276] sm:%s2274] %v2272
    %s2278 = scalar_lea.vmem [#allocation0], 1872
    %v2279 = vld [vmem:[%s2278] sm:%s642]
    %s2280 = sshll.u32 1, 2
    %s2281 = ssub.s32 %s2280, 1
    %s2282 = smul.addr 2, 234
    %s2283 = scalar_lea.vmem %s1, %s2282
    %2284 = vst [vmem:[%s2283] sm:%s2281] %v2279
    %s2285 = scalar_lea.vmem [#allocation0], 1880
    %v2286 = vld [vmem:[%s2285] sm:%s642]
    %s2287 = sshll.u32 1, 2
    %s2288 = ssub.s32 %s2287, 1
    %s2289 = smul.addr 2, 235
    %s2290 = scalar_lea.vmem %s1, %s2289
    %2291 = vst [vmem:[%s2290] sm:%s2288] %v2286
    %s2292 = scalar_lea.vmem [#allocation0], 1888
    %v2293 = vld [vmem:[%s2292] sm:%s642]
    %s2294 = sshll.u32 1, 2
    %s2295 = ssub.s32 %s2294, 1
    %s2296 = smul.addr 2, 236
    %s2297 = scalar_lea.vmem %s1, %s2296
    %2298 = vst [vmem:[%s2297] sm:%s2295] %v2293
    %s2299 = scalar_lea.vmem [#allocation0], 1896
    %v2300 = vld [vmem:[%s2299] sm:%s642]
    %s2301 = sshll.u32 1, 2
    %s2302 = ssub.s32 %s2301, 1
    %s2303 = smul.addr 2, 237
    %s2304 = scalar_lea.vmem %s1, %s2303
    %2305 = vst [vmem:[%s2304] sm:%s2302] %v2300
    %s2306 = scalar_lea.vmem [#allocation0], 1904
    %v2307 = vld [vmem:[%s2306] sm:%s642]
    %s2308 = sshll.u32 1, 2
    %s2309 = ssub.s32 %s2308, 1
    %s2310 = smul.addr 2, 238
    %s2311 = scalar_lea.vmem %s1, %s2310
    %2312 = vst [vmem:[%s2311] sm:%s2309] %v2307
    %s2313 = scalar_lea.vmem [#allocation0], 1912
    %v2314 = vld [vmem:[%s2313] sm:%s642]
    %s2315 = sshll.u32 1, 2
    %s2316 = ssub.s32 %s2315, 1
    %s2317 = smul.addr 2, 239
    %s2318 = scalar_lea.vmem %s1, %s2317
    %2319 = vst [vmem:[%s2318] sm:%s2316] %v2314
    %s2320 = scalar_lea.vmem [#allocation0], 1920
    %v2321 = vld [vmem:[%s2320] sm:%s642]
    %s2322 = sshll.u32 1, 2
    %s2323 = ssub.s32 %s2322, 1
    %s2324 = smul.addr 2, 240
    %s2325 = scalar_lea.vmem %s1, %s2324
    %2326 = vst [vmem:[%s2325] sm:%s2323] %v2321
    %s2327 = scalar_lea.vmem [#allocation0], 1928
    %v2328 = vld [vmem:[%s2327] sm:%s642]
    %s2329 = sshll.u32 1, 2
    %s2330 = ssub.s32 %s2329, 1
    %s2331 = smul.addr 2, 241
    %s2332 = scalar_lea.vmem %s1, %s2331
    %2333 = vst [vmem:[%s2332] sm:%s2330] %v2328
    %s2334 = scalar_lea.vmem [#allocation0], 1936
    %v2335 = vld [vmem:[%s2334] sm:%s642]
    %s2336 = sshll.u32 1, 2
    %s2337 = ssub.s32 %s2336, 1
    %s2338 = smul.addr 2, 242
    %s2339 = scalar_lea.vmem %s1, %s2338
    %2340 = vst [vmem:[%s2339] sm:%s2337] %v2335
    %s2341 = scalar_lea.vmem [#allocation0], 1944
    %v2342 = vld [vmem:[%s2341] sm:%s642]
    %s2343 = sshll.u32 1, 2
    %s2344 = ssub.s32 %s2343, 1
    %s2345 = smul.addr 2, 243
    %s2346 = scalar_lea.vmem %s1, %s2345
    %2347 = vst [vmem:[%s2346] sm:%s2344] %v2342
    %s2348 = scalar_lea.vmem [#allocation0], 1952
    %v2349 = vld [vmem:[%s2348] sm:%s642]
    %s2350 = sshll.u32 1, 2
    %s2351 = ssub.s32 %s2350, 1
    %s2352 = smul.addr 2, 244
    %s2353 = scalar_lea.vmem %s1, %s2352
    %2354 = vst [vmem:[%s2353] sm:%s2351] %v2349
    %s2355 = scalar_lea.vmem [#allocation0], 1960
    %v2356 = vld [vmem:[%s2355] sm:%s642]
    %s2357 = sshll.u32 1, 2
    %s2358 = ssub.s32 %s2357, 1
    %s2359 = smul.addr 2, 245
    %s2360 = scalar_lea.vmem %s1, %s2359
    %2361 = vst [vmem:[%s2360] sm:%s2358] %v2356
    %s2362 = scalar_lea.vmem [#allocation0], 1968
    %v2363 = vld [vmem:[%s2362] sm:%s642]
    %s2364 = sshll.u32 1, 2
    %s2365 = ssub.s32 %s2364, 1
    %s2366 = smul.addr 2, 246
    %s2367 = scalar_lea.vmem %s1, %s2366
    %2368 = vst [vmem:[%s2367] sm:%s2365] %v2363
    %s2369 = scalar_lea.vmem [#allocation0], 1976
    %v2370 = vld [vmem:[%s2369] sm:%s642]
    %s2371 = sshll.u32 1, 2
    %s2372 = ssub.s32 %s2371, 1
    %s2373 = smul.addr 2, 247
    %s2374 = scalar_lea.vmem %s1, %s2373
    %2375 = vst [vmem:[%s2374] sm:%s2372] %v2370
    %s2376 = scalar_lea.vmem [#allocation0], 1984
    %v2377 = vld [vmem:[%s2376] sm:%s642]
    %s2378 = sshll.u32 1, 2
    %s2379 = ssub.s32 %s2378, 1
    %s2380 = smul.addr 2, 248
    %s2381 = scalar_lea.vmem %s1, %s2380
    %2382 = vst [vmem:[%s2381] sm:%s2379] %v2377
    %s2383 = scalar_lea.vmem [#allocation0], 1992
    %v2384 = vld [vmem:[%s2383] sm:%s642]
    %s2385 = sshll.u32 1, 2
    %s2386 = ssub.s32 %s2385, 1
    %s2387 = smul.addr 2, 249
    %s2388 = scalar_lea.vmem %s1, %s2387
    %2389 = vst [vmem:[%s2388] sm:%s2386] %v2384
    %s2390 = scalar_lea.vmem [#allocation0], 2000
    %v2391 = vld [vmem:[%s2390] sm:%s642]
    %s2392 = sshll.u32 1, 2
    %s2393 = ssub.s32 %s2392, 1
    %s2394 = smul.addr 2, 250
    %s2395 = scalar_lea.vmem %s1, %s2394
    %2396 = vst [vmem:[%s2395] sm:%s2393] %v2391
    %s2397 = scalar_lea.vmem [#allocation0], 2008
    %v2398 = vld [vmem:[%s2397] sm:%s642]
    %s2399 = sshll.u32 1, 2
    %s2400 = ssub.s32 %s2399, 1
    %s2401 = smul.addr 2, 251
    %s2402 = scalar_lea.vmem %s1, %s2401
    %2403 = vst [vmem:[%s2402] sm:%s2400] %v2398
    %s2404 = scalar_lea.vmem [#allocation0], 2016
    %v2405 = vld [vmem:[%s2404] sm:%s642]
    %s2406 = sshll.u32 1, 2
    %s2407 = ssub.s32 %s2406, 1
    %s2408 = smul.addr 2, 252
    %s2409 = scalar_lea.vmem %s1, %s2408
    %2410 = vst [vmem:[%s2409] sm:%s2407] %v2405
    %s2411 = scalar_lea.vmem [#allocation0], 2024
    %v2412 = vld [vmem:[%s2411] sm:%s642]
    %s2413 = sshll.u32 1, 2
    %s2414 = ssub.s32 %s2413, 1
    %s2415 = smul.addr 2, 253
    %s2416 = scalar_lea.vmem %s1, %s2415
    %2417 = vst [vmem:[%s2416] sm:%s2414] %v2412
    %s2418 = scalar_lea.vmem [#allocation0], 2032
    %v2419 = vld [vmem:[%s2418] sm:%s642]
    %s2420 = sshll.u32 1, 2
    %s2421 = ssub.s32 %s2420, 1
    %s2422 = smul.addr 2, 254
    %s2423 = scalar_lea.vmem %s1, %s2422
    %2424 = vst [vmem:[%s2423] sm:%s2421] %v2419
    %s2425 = scalar_lea.vmem [#allocation0], 2040
    %v2426 = vld [vmem:[%s2425] sm:%s642]
    %s2427 = sshll.u32 1, 2
    %s2428 = ssub.s32 %s2427, 1
    %s2429 = smul.addr 2, 255
    %s2430 = scalar_lea.vmem %s1, %s2429
    %2431 = vst [vmem:[%s2430] sm:%s2428] %v2426

// kernel: _gridconv_core.2
$region0: #{_gridconv_core.2}
  #allocation0 [shape = 'u32[]', space=smem, size = 0x4, offset = 0x4, fixed_abs, tag = 'smem constant byte address 0x4 - core index']
  #allocation1 [shape = 'u32[144,128]{1,0:T(1,128)}', space=vmem, size = 0x12000, scoped, tag = 'internal scratch']
  %s0 = inlined_call_operand.vmem [shape: f32[64,256], index: 0, kind: input, shape index: {}]
  %s1 = inlined_call_operand.vmem [shape: f32[256,256], index: 1, kind: input, shape index: {}]
  %s2 = inlined_call_operand.vmem [shape: f32[256,256], index: 2, kind: input, shape index: {}]
  %s3 = inlined_call_operand.vmem [shape: bf16[64,256], index: 3, kind: output, shape index: {}]
  %s4 = sld [smem:[#allocation0]]
  $region22: #{_gridconv_core.2} parent=0
    _
  %s6 = ssub.s32 1, %s4
  %s7 = scalar_select 0, %s6, %s4
  // Predicated region
  $region2: #{_gridconv_core.2} parent=0 // pred_check
    _
  $region3: #{_gridconv_core.2} parent=0 // pred_check_branch
    %9 = sbr.rel (0) target = $region5
  $region4: #{_gridconv_core.2} parent=0 // pred_region
    _
  $region5: #{_gridconv_core.2} parent=0 // pred_fallthru
    _
  // Predicated region
  $region6: #{_gridconv_core.2} parent=0 // pred_check
    _
  $region7: #{_gridconv_core.2} parent=0 // pred_check_branch
    %11 = sbr.rel (0) target = $region9
  $region8: #{_gridconv_core.2} parent=0 // pred_region
    _
  $region9: #{_gridconv_core.2} parent=0 // pred_fallthru
    _
  // Predicated region
  $region10: #{_gridconv_core.2} parent=0 // pred_check
    _
  $region11: #{_gridconv_core.2} parent=0 // pred_check_branch
    %13 = sbr.rel (0) target = $region13
  $region12: #{_gridconv_core.2} parent=0 // pred_region
    _
  $region13: #{_gridconv_core.2} parent=0 // pred_fallthru
    _
  %v15 = vld [vmem:[%s0] sm:$0xff]
  %v16 = vld [vmem:[%s0 + $0x8] sm:$0xff]
  %v17 = vld [vmem:[%s0 + $0x10] sm:$0xff]
  %v18 = vld [vmem:[%s0 + $0x18] sm:$0xff]
  %v19 = vld [vmem:[%s0 + $0x20] sm:$0xff]
  %v20 = vld [vmem:[%s0 + $0x28] sm:$0xff]
  %v21 = vld [vmem:[%s0 + $0x30] sm:$0xff]
  %v22 = vld [vmem:[%s0 + $0x38] sm:$0xff]
  %v23 = vld [vmem:[%s0 + $0x40] sm:$0xff]
  %v24 = vld [vmem:[%s0 + $0x48] sm:$0xff]
  %v25 = vld [vmem:[%s0 + $0x50] sm:$0xff]
  %v26 = vld [vmem:[%s0 + $0x58] sm:$0xff]
  %v27 = vld [vmem:[%s0 + $0x60] sm:$0xff]
  %v28 = vld [vmem:[%s0 + $0x68] sm:$0xff]
  %v29 = vld [vmem:[%s0 + $0x70] sm:$0xff]
  %v30 = vld [vmem:[%s0 + $0x78] sm:$0xff]
  %v31 = vpack.c.bf16 %v17, %v15
  %v32 = vpack.c.bf16 %v18, %v16
  %v33 = vpack.c.bf16 %v21, %v19
  %v34 = vpack.c.bf16 %v22, %v20
  %v35 = vpack.c.bf16 %v25, %v23
  %v36 = vpack.c.bf16 %v26, %v24
  %v37 = vpack.c.bf16 %v29, %v27
  %v38 = vpack.c.bf16 %v30, %v28
  %39 = vxpose.xlu0.c.b16.start [1/8] %v31, 128
  %40 = vxpose.xlu0.c.b16.cont [2/8] %v33, 128
  %41 = vxpose.xlu0.c.b16.cont [3/8] %v35, 128
  %42 = vxpose.xlu0.c.b16.cont [4/8] %v37, 128
  %43 = vxpose.xlu0.c.b16.cont [5/8] 0, 128
  %44 = vxpose.xlu0.c.b16.cont [6/8] 0, 128
  %45 = vxpose.xlu0.c.b16.cont [7/8] 0, 128
  %46 = vxpose.xlu0.c.b16.end [8/8] 0, 128
  %v47 = vpop.trf.xlu0
  %v48 = vpop.trf.xlu0
  %v49 = vpop.trf.xlu0
  %v50 = vpop.trf.xlu0
  %v51 = vpop.trf.xlu0
  %v52 = vpop.trf.xlu0
  %v53 = vpop.trf.xlu0
  %v54 = vpop.trf.xlu0
  %55 = vxpose.xlu0.c.b16.start [1/8] %v32, 128
  %56 = vxpose.xlu0.c.b16.cont [2/8] %v34, 128
  %57 = vxpose.xlu0.c.b16.cont [3/8] %v36, 128
  %58 = vxpose.xlu0.c.b16.cont [4/8] %v38, 128
  %59 = vxpose.xlu0.c.b16.cont [5/8] 0, 128
  %60 = vxpose.xlu0.c.b16.cont [6/8] 0, 128
  %61 = vxpose.xlu0.c.b16.cont [7/8] 0, 128
  %62 = vxpose.xlu0.c.b16.end [8/8] 0, 128
  %v63 = vpop.trf.xlu0
  %v64 = vpop.trf.xlu0
  %v65 = vpop.trf.xlu0
  %v66 = vpop.trf.xlu0
  %v67 = vpop.trf.xlu0
  %v68 = vpop.trf.xlu0
  %v69 = vpop.trf.xlu0
  %v70 = vpop.trf.xlu0
  %vm71 = vcmask 523264
  %v73 = vsel %vm71, %v47, 0
  %v76 = vsel %vm71, %v48, 0
  %v79 = vsel %vm71, %v49, 0
  %v82 = vsel %vm71, %v50, 0
  %v85 = vsel %vm71, %v51, 0
  %v88 = vsel %vm71, %v52, 0
  %v91 = vsel %vm71, %v53, 0
  %v94 = vsel %vm71, %v54, 0
  %v97 = vsel %vm71, %v63, 0
  %v100 = vsel %vm71, %v64, 0
  %v103 = vsel %vm71, %v65, 0
  %v106 = vsel %vm71, %v66, 0
  %v109 = vsel %vm71, %v67, 0
  %v112 = vsel %vm71, %v68, 0
  %v115 = vsel %vm71, %v69, 0
  %v118 = vsel %vm71, %v70, 0
  %120 = vmatprep.subr.bf16.mxu0 0
  %121 = vmatpush1.bf16.msra.mxu0 0
  %122 = vmatprep.subr.bf16.mxu0 0
  %123 = vmatpush1.bf16.msra.mxu0 0
  %124 = vmatprep.subr.bf16.mxu0 0
  %125 = vmatpush1.bf16.msra.mxu0 0
  %126 = vmatprep.subr.bf16.mxu0 0
  %127 = vmatpush1.bf16.msra.mxu0 0
  %128 = vmatprep.subr.bf16.mxu0 %v38
  %129 = vmatpush1.bf16.msra.mxu0 %v37
  %130 = vmatprep.subr.bf16.mxu0 %v36
  %131 = vmatpush1.bf16.msra.mxu0 %v35
  %132 = vmatprep.subr.bf16.mxu0 %v34
  %133 = vmatpush1.bf16.msra.mxu0 %v33
  %134 = vmatprep.subr.bf16.mxu0 %v32
  %135 = vmatpush1.bf16.msra.mxu0 %v31
  %136 = vmatprep.subr.bf16.mxu0 0
  %137 = vmatpush2.bf16.msra.mxu0 0
  %138 = vmatprep.subr.bf16.mxu0 0
  %139 = vmatpush2.bf16.msra.mxu0 0
  %140 = vmatprep.subr.bf16.mxu0 0
  %141 = vmatpush2.bf16.msra.mxu0 0
  %142 = vmatprep.subr.bf16.mxu0 0
  %143 = vmatpush2.bf16.msra.mxu0 0
  %144 = vmatprep.subr.bf16.mxu0 0
  %145 = vmatpush2.bf16.msra.mxu0 0
  %146 = vmatprep.subr.bf16.mxu0 0
  %147 = vmatpush2.bf16.msra.mxu0 0
  %148 = vmatprep.subr.bf16.mxu0 0
  %149 = vmatpush2.bf16.msra.mxu0 0
  %150 = vmatprep.subr.bf16.mxu0 0
  %151 = vmatpush2.bf16.msra.mxu0 0
  %152 = vmatprep.mubr.bf16.mxu0 0
  %153 = vmatmul.mubr.bf16.gmra.mxu0 %v73
  %v154 = vpop.f32.mrf.mxu0
  %v155 = vadd.f32 0.0, %v154
  %v156 = vpop.f32.mrf.mxu0
  %v157 = vadd.f32 0.0, %v156
  %v158 = vpop.f32.mrf.mxu0
  %v159 = vadd.f32 0.0, %v158
  %v160 = vpop.f32.mrf.mxu0
  %v161 = vadd.f32 0.0, %v160
  %162 = vmatprep.mubr.bf16.mxu0 0
  %163 = vmatmul.mubr.bf16.gmra.mxu0 %v76
  %v164 = vpop.f32.mrf.mxu0
  %v165 = vadd.f32 0.0, %v164
  %v166 = vpop.f32.mrf.mxu0
  %v167 = vadd.f32 0.0, %v166
  %v168 = vpop.f32.mrf.mxu0
  %v169 = vadd.f32 0.0, %v168
  %v170 = vpop.f32.mrf.mxu0
  %v171 = vadd.f32 0.0, %v170
  %172 = vmatprep.mubr.bf16.mxu0 0
  %173 = vmatmul.mubr.bf16.gmra.mxu0 %v79
  %v174 = vpop.f32.mrf.mxu0
  %v175 = vadd.f32 0.0, %v174
  %v176 = vpop.f32.mrf.mxu0
  %v177 = vadd.f32 0.0, %v176
  %v178 = vpop.f32.mrf.mxu0
  %v179 = vadd.f32 0.0, %v178
  %v180 = vpop.f32.mrf.mxu0
  %v181 = vadd.f32 0.0, %v180
  %182 = vmatprep.mubr.bf16.mxu0 0
  %183 = vmatmul.mubr.bf16.gmra.mxu0 %v82
  %v184 = vpop.f32.mrf.mxu0
  %v185 = vadd.f32 0.0, %v184
  %v186 = vpop.f32.mrf.mxu0
  %v187 = vadd.f32 0.0, %v186
  %v188 = vpop.f32.mrf.mxu0
  %v189 = vadd.f32 0.0, %v188
  %v190 = vpop.f32.mrf.mxu0
  %v191 = vadd.f32 0.0, %v190
  %192 = vmatprep.mubr.bf16.mxu0 0
  %193 = vmatmul.mubr.bf16.gmra.mxu0 %v85
  %v194 = vpop.f32.mrf.mxu0
  %v195 = vadd.f32 0.0, %v194
  %v196 = vpop.f32.mrf.mxu0
  %v197 = vadd.f32 0.0, %v196
  %v198 = vpop.f32.mrf.mxu0
  %v199 = vadd.f32 0.0, %v198
  %v200 = vpop.f32.mrf.mxu0
  %v201 = vadd.f32 0.0, %v200
  %202 = vmatprep.mubr.bf16.mxu0 0
  %203 = vmatmul.mubr.bf16.gmra.mxu0 %v88
  %v204 = vpop.f32.mrf.mxu0
  %v205 = vadd.f32 0.0, %v204
  %v206 = vpop.f32.mrf.mxu0
  %v207 = vadd.f32 0.0, %v206
  %v208 = vpop.f32.mrf.mxu0
  %v209 = vadd.f32 0.0, %v208
  %v210 = vpop.f32.mrf.mxu0
  %v211 = vadd.f32 0.0, %v210
  %212 = vmatprep.mubr.bf16.mxu0 0
  %213 = vmatmul.mubr.bf16.gmra.mxu0 %v91
  %v214 = vpop.f32.mrf.mxu0
  %v215 = vadd.f32 0.0, %v214
  %v216 = vpop.f32.mrf.mxu0
  %v217 = vadd.f32 0.0, %v216
  %v218 = vpop.f32.mrf.mxu0
  %v219 = vadd.f32 0.0, %v218
  %v220 = vpop.f32.mrf.mxu0
  %v221 = vadd.f32 0.0, %v220
  %222 = vmatprep.mubr.bf16.mxu0 0
  %223 = vmatmul.mubr.bf16.gmra.mxu0 %v94
  %v224 = vpop.f32.mrf.mxu0
  %v225 = vadd.f32 0.0, %v224
  %v226 = vpop.f32.mrf.mxu0
  %v227 = vadd.f32 0.0, %v226
  %v228 = vpop.f32.mrf.mxu0
  %v229 = vadd.f32 0.0, %v228
  %v230 = vpop.f32.mrf.mxu0
  %v231 = vadd.f32 0.0, %v230
  %232 = vmatprep.mubr.bf16.mxu0 0
  %233 = vmatmul.mubr.bf16.gmra.mxu0 %v97
  %v234 = vpop.f32.mrf.mxu0
  %v235 = vadd.f32 0.0, %v234
  %v236 = vpop.f32.mrf.mxu0
  %v237 = vadd.f32 0.0, %v236
  %v238 = vpop.f32.mrf.mxu0
  %v239 = vadd.f32 0.0, %v238
  %v240 = vpop.f32.mrf.mxu0
  %v241 = vadd.f32 0.0, %v240
  %242 = vmatprep.mubr.bf16.mxu0 0
  %243 = vmatmul.mubr.bf16.gmra.mxu0 %v100
  %v244 = vpop.f32.mrf.mxu0
  %v245 = vadd.f32 0.0, %v244
  %v246 = vpop.f32.mrf.mxu0
  %v247 = vadd.f32 0.0, %v246
  %v248 = vpop.f32.mrf.mxu0
  %v249 = vadd.f32 0.0, %v248
  %v250 = vpop.f32.mrf.mxu0
  %v251 = vadd.f32 0.0, %v250
  %252 = vmatprep.mubr.bf16.mxu0 0
  %253 = vmatmul.mubr.bf16.gmra.mxu0 %v103
  %v254 = vpop.f32.mrf.mxu0
  %v255 = vadd.f32 0.0, %v254
  %v256 = vpop.f32.mrf.mxu0
  %v257 = vadd.f32 0.0, %v256
  %v258 = vpop.f32.mrf.mxu0
  %v259 = vadd.f32 0.0, %v258
  %v260 = vpop.f32.mrf.mxu0
  %v261 = vadd.f32 0.0, %v260
  %262 = vmatprep.mubr.bf16.mxu0 0
  %263 = vmatmul.mubr.bf16.gmra.mxu0 %v106
  %v264 = vpop.f32.mrf.mxu0
  %v265 = vadd.f32 0.0, %v264
  %v266 = vpop.f32.mrf.mxu0
  %v267 = vadd.f32 0.0, %v266
  %v268 = vpop.f32.mrf.mxu0
  %v269 = vadd.f32 0.0, %v268
  %v270 = vpop.f32.mrf.mxu0
  %v271 = vadd.f32 0.0, %v270
  %272 = vmatprep.mubr.bf16.mxu0 0
  %273 = vmatmul.mubr.bf16.gmra.mxu0 %v109
  %v274 = vpop.f32.mrf.mxu0
  %v275 = vadd.f32 0.0, %v274
  %v276 = vpop.f32.mrf.mxu0
  %v277 = vadd.f32 0.0, %v276
  %v278 = vpop.f32.mrf.mxu0
  %v279 = vadd.f32 0.0, %v278
  %v280 = vpop.f32.mrf.mxu0
  %v281 = vadd.f32 0.0, %v280
  %282 = vmatprep.mubr.bf16.mxu0 0
  %283 = vmatmul.mubr.bf16.gmra.mxu0 %v112
  %v284 = vpop.f32.mrf.mxu0
  %v285 = vadd.f32 0.0, %v284
  %v286 = vpop.f32.mrf.mxu0
  %v287 = vadd.f32 0.0, %v286
  %v288 = vpop.f32.mrf.mxu0
  %v289 = vadd.f32 0.0, %v288
  %v290 = vpop.f32.mrf.mxu0
  %v291 = vadd.f32 0.0, %v290
  %292 = vmatprep.mubr.bf16.mxu0 0
  %293 = vmatmul.mubr.bf16.gmra.mxu0 %v115
  %v294 = vpop.f32.mrf.mxu0
  %v295 = vadd.f32 0.0, %v294
  %v296 = vpop.f32.mrf.mxu0
  %v297 = vadd.f32 0.0, %v296
  %v298 = vpop.f32.mrf.mxu0
  %v299 = vadd.f32 0.0, %v298
  %v300 = vpop.f32.mrf.mxu0
  %v301 = vadd.f32 0.0, %v300
  %302 = vmatprep.mubr.bf16.mxu0 0
  %303 = vmatmul.mubr.bf16.gmra.mxu0 %v118
  %v304 = vpop.f32.mrf.mxu0
  %v305 = vadd.f32 0.0, %v304
  %v306 = vpop.f32.mrf.mxu0
  %v307 = vadd.f32 0.0, %v306
  %v308 = vpop.f32.mrf.mxu0
  %v309 = vadd.f32 0.0, %v308
  %v310 = vpop.f32.mrf.mxu0
  %v311 = vadd.f32 0.0, %v310
  %312 = vdwg.mxu0
  %v313 = vmax.f32 %v155, %v157
  %314 = vmax.xlane.f32.xlu0 %v313
  %v315 = vpop.xlane.xlu0 %314
  %v316 = vmax.f32 %v159, %v161
  %317 = vmax.xlane.f32.xlu0 %v316
  %v318 = vpop.xlane.xlu0 %317
  %v319 = vmax.f32 %v165, %v167
  %320 = vmax.xlane.f32.xlu0 %v319
  %v321 = vpop.xlane.xlu0 %320
  %v322 = vmax.f32 %v169, %v171
  %323 = vmax.xlane.f32.xlu0 %v322
  %v324 = vpop.xlane.xlu0 %323
  %v325 = vmax.f32 %v175, %v177
  %326 = vmax.xlane.f32.xlu0 %v325
  %v327 = vpop.xlane.xlu0 %326
  %v328 = vmax.f32 %v179, %v181
  %329 = vmax.xlane.f32.xlu0 %v328
  %v330 = vpop.xlane.xlu0 %329
  %v331 = vmax.f32 %v185, %v187
  %332 = vmax.xlane.f32.xlu0 %v331
  %v333 = vpop.xlane.xlu0 %332
  %v334 = vmax.f32 %v189, %v191
  %335 = vmax.xlane.f32.xlu0 %v334
  %v336 = vpop.xlane.xlu0 %335
  %v337 = vmax.f32 %v195, %v197
  %338 = vmax.xlane.f32.xlu0 %v337
  %v339 = vpop.xlane.xlu0 %338
  %v340 = vmax.f32 %v199, %v201
  %341 = vmax.xlane.f32.xlu0 %v340
  %v342 = vpop.xlane.xlu0 %341
  %v343 = vmax.f32 %v205, %v207
  %344 = vmax.xlane.f32.xlu0 %v343
  %v345 = vpop.xlane.xlu0 %344
  %v346 = vmax.f32 %v209, %v211
  %347 = vmax.xlane.f32.xlu0 %v346
  %v348 = vpop.xlane.xlu0 %347
  %v349 = vmax.f32 %v215, %v217
  %350 = vmax.xlane.f32.xlu0 %v349
  %v351 = vpop.xlane.xlu0 %350
  %v352 = vmax.f32 %v219, %v221
  %353 = vmax.xlane.f32.xlu0 %v352
  %v354 = vpop.xlane.xlu0 %353
  %v355 = vmax.f32 %v225, %v227
  %356 = vmax.xlane.f32.xlu0 %v355
  %v357 = vpop.xlane.xlu0 %356
  %v358 = vmax.f32 %v229, %v231
  %359 = vmax.xlane.f32.xlu0 %v358
  %v360 = vpop.xlane.xlu0 %359
  %v361 = vmax.f32 %v235, %v237
  %362 = vmax.xlane.f32.xlu0 %v361
  %v363 = vpop.xlane.xlu0 %362
  %v364 = vmax.f32 %v239, %v241
  %365 = vmax.xlane.f32.xlu0 %v364
  %v366 = vpop.xlane.xlu0 %365
  %v367 = vmax.f32 %v245, %v247
  %368 = vmax.xlane.f32.xlu0 %v367
  %v369 = vpop.xlane.xlu0 %368
  %v370 = vmax.f32 %v249, %v251
  %371 = vmax.xlane.f32.xlu0 %v370
  %v372 = vpop.xlane.xlu0 %371
  %v373 = vmax.f32 %v255, %v257
  %374 = vmax.xlane.f32.xlu0 %v373
  %v375 = vpop.xlane.xlu0 %374
  %v376 = vmax.f32 %v259, %v261
  %377 = vmax.xlane.f32.xlu0 %v376
  %v378 = vpop.xlane.xlu0 %377
  %v379 = vmax.f32 %v265, %v267
  %380 = vmax.xlane.f32.xlu0 %v379
  %v381 = vpop.xlane.xlu0 %380
  %v382 = vmax.f32 %v269, %v271
  %383 = vmax.xlane.f32.xlu0 %v382
  %v384 = vpop.xlane.xlu0 %383
  %v385 = vmax.f32 %v275, %v277
  %386 = vmax.xlane.f32.xlu0 %v385
  %v387 = vpop.xlane.xlu0 %386
  %v388 = vmax.f32 %v279, %v281
  %389 = vmax.xlane.f32.xlu0 %v388
  %v390 = vpop.xlane.xlu0 %389
  %v391 = vmax.f32 %v285, %v287
  %392 = vmax.xlane.f32.xlu0 %v391
  %v393 = vpop.xlane.xlu0 %392
  %v394 = vmax.f32 %v289, %v291
  %395 = vmax.xlane.f32.xlu0 %v394
  %v396 = vpop.xlane.xlu0 %395
  %v397 = vmax.f32 %v295, %v297
  %398 = vmax.xlane.f32.xlu0 %v397
  %v399 = vpop.xlane.xlu0 %398
  %v400 = vmax.f32 %v299, %v301
  %401 = vmax.xlane.f32.xlu0 %v400
  %v402 = vpop.xlane.xlu0 %401
  %v403 = vmax.f32 %v305, %v307
  %404 = vmax.xlane.f32.xlu0 %v403
  %v405 = vpop.xlane.xlu0 %404
  %v406 = vmax.f32 %v309, %v311
  %407 = vmax.xlane.f32.xlu0 %v406
  %v408 = vpop.xlane.xlu0 %407
  %v409 = vsub.f32 %v155, %v315
  %v410 = vsub.f32 %v157, %v315
  %v411 = vsub.f32 %v159, %v318
  %v412 = vsub.f32 %v161, %v318
  %v413 = vsub.f32 %v165, %v321
  %v414 = vsub.f32 %v167, %v321
  %v415 = vsub.f32 %v169, %v324
  %v416 = vsub.f32 %v171, %v324
  %v417 = vsub.f32 %v175, %v327
  %v418 = vsub.f32 %v177, %v327
  %v419 = vsub.f32 %v179, %v330
  %v420 = vsub.f32 %v181, %v330
  %v421 = vsub.f32 %v185, %v333
  %v422 = vsub.f32 %v187, %v333
  %v423 = vsub.f32 %v189, %v336
  %v424 = vsub.f32 %v191, %v336
  %v425 = vsub.f32 %v195, %v339
  %v426 = vsub.f32 %v197, %v339
  %v427 = vsub.f32 %v199, %v342
  %v428 = vsub.f32 %v201, %v342
  %v429 = vsub.f32 %v205, %v345
  %v430 = vsub.f32 %v207, %v345
  %v431 = vsub.f32 %v209, %v348
  %v432 = vsub.f32 %v211, %v348
  %v433 = vsub.f32 %v215, %v351
  %v434 = vsub.f32 %v217, %v351
  %v435 = vsub.f32 %v219, %v354
  %v436 = vsub.f32 %v221, %v354
  %v437 = vsub.f32 %v225, %v357
  %v438 = vsub.f32 %v227, %v357
  %v439 = vsub.f32 %v229, %v360
  %v440 = vsub.f32 %v231, %v360
  %v441 = vsub.f32 %v235, %v363
  %v442 = vsub.f32 %v237, %v363
  %v443 = vsub.f32 %v239, %v366
  %v444 = vsub.f32 %v241, %v366
  %v445 = vsub.f32 %v245, %v369
  %v446 = vsub.f32 %v247, %v369
  %v447 = vsub.f32 %v249, %v372
  %v448 = vsub.f32 %v251, %v372
  %v449 = vsub.f32 %v255, %v375
  %v450 = vsub.f32 %v257, %v375
  %v451 = vsub.f32 %v259, %v378
  %v452 = vsub.f32 %v261, %v378
  %v453 = vsub.f32 %v265, %v381
  %v454 = vsub.f32 %v267, %v381
  %v455 = vsub.f32 %v269, %v384
  %v456 = vsub.f32 %v271, %v384
  %v457 = vsub.f32 %v275, %v387
  %v458 = vsub.f32 %v277, %v387
  %v459 = vsub.f32 %v279, %v390
  %v460 = vsub.f32 %v281, %v390
  %v461 = vsub.f32 %v285, %v393
  %v462 = vsub.f32 %v287, %v393
  %v463 = vsub.f32 %v289, %v396
  %v464 = vsub.f32 %v291, %v396
  %v465 = vsub.f32 %v295, %v399
  %v466 = vsub.f32 %v297, %v399
  %v467 = vsub.f32 %v299, %v402
  %v468 = vsub.f32 %v301, %v402
  %v469 = vsub.f32 %v305, %v405
  %v470 = vsub.f32 %v307, %v405
  %v471 = vsub.f32 %v309, %v408
  %v472 = vsub.f32 %v311, %v408
  %v473 = vmul.f32 %v409, 1.442695
  %v474 = vpow.pop %v473
  %v475 = vmul.f32 %v410, 1.442695
  %v476 = vpow.pop %v475
  %v477 = vmul.f32 %v411, 1.442695
  %v478 = vpow.pop %v477
  %v479 = vmul.f32 %v412, 1.442695
  %v480 = vpow.pop %v479
  %v481 = vmul.f32 %v413, 1.442695
  %v482 = vpow.pop %v481
  %v483 = vmul.f32 %v414, 1.442695
  %v484 = vpow.pop %v483
  %v485 = vmul.f32 %v415, 1.442695
  %v486 = vpow.pop %v485
  %v487 = vmul.f32 %v416, 1.442695
  %v488 = vpow.pop %v487
  %v489 = vmul.f32 %v417, 1.442695
  %v490 = vpow.pop %v489
  %v491 = vmul.f32 %v418, 1.442695
  %v492 = vpow.pop %v491
  %v493 = vmul.f32 %v419, 1.442695
  %v494 = vpow.pop %v493
  %v495 = vmul.f32 %v420, 1.442695
  %v496 = vpow.pop %v495
  %v497 = vmul.f32 %v421, 1.442695
  %v498 = vpow.pop %v497
  %v499 = vmul.f32 %v422, 1.442695
  %v500 = vpow.pop %v499
  %v501 = vmul.f32 %v423, 1.442695
  %v502 = vpow.pop %v501
  %v503 = vmul.f32 %v424, 1.442695
  %v504 = vpow.pop %v503
  %v505 = vmul.f32 %v425, 1.442695
  %v506 = vpow.pop %v505
  %v507 = vmul.f32 %v426, 1.442695
  %v508 = vpow.pop %v507
  %v509 = vmul.f32 %v427, 1.442695
  %v510 = vpow.pop %v509
  %v511 = vmul.f32 %v428, 1.442695
  %v512 = vpow.pop %v511
  %v513 = vmul.f32 %v429, 1.442695
  %v514 = vpow.pop %v513
  %v515 = vmul.f32 %v430, 1.442695
  %v516 = vpow.pop %v515
  %v517 = vmul.f32 %v431, 1.442695
  %v518 = vpow.pop %v517
  %v519 = vmul.f32 %v432, 1.442695
  %v520 = vpow.pop %v519
  %v521 = vmul.f32 %v433, 1.442695
  %v522 = vpow.pop %v521
  %v523 = vmul.f32 %v434, 1.442695
  %v524 = vpow.pop %v523
  %v525 = vmul.f32 %v435, 1.442695
  %v526 = vpow.pop %v525
  %v527 = vmul.f32 %v436, 1.442695
  %v528 = vpow.pop %v527
  %v529 = vmul.f32 %v437, 1.442695
  %v530 = vpow.pop %v529
  %v531 = vmul.f32 %v438, 1.442695
  %v532 = vpow.pop %v531
  %v533 = vmul.f32 %v439, 1.442695
  %v534 = vpow.pop %v533
  %v535 = vmul.f32 %v440, 1.442695
  %v536 = vpow.pop %v535
  %v537 = vmul.f32 %v441, 1.442695
  %v538 = vpow.pop %v537
  %v539 = vmul.f32 %v442, 1.442695
  %v540 = vpow.pop %v539
  %v541 = vmul.f32 %v443, 1.442695
  %v542 = vpow.pop %v541
  %v543 = vmul.f32 %v444, 1.442695
  %v544 = vpow.pop %v543
  %v545 = vmul.f32 %v445, 1.442695
  %v546 = vpow.pop %v545
  %v547 = vmul.f32 %v446, 1.442695
  %v548 = vpow.pop %v547
  %v549 = vmul.f32 %v447, 1.442695
  %v550 = vpow.pop %v549
  %v551 = vmul.f32 %v448, 1.442695
  %v552 = vpow.pop %v551
  %v553 = vmul.f32 %v449, 1.442695
  %v554 = vpow.pop %v553
  %v555 = vmul.f32 %v450, 1.442695
  %v556 = vpow.pop %v555
  %v557 = vmul.f32 %v451, 1.442695
  %v558 = vpow.pop %v557
  %v559 = vmul.f32 %v452, 1.442695
  %v560 = vpow.pop %v559
  %v561 = vmul.f32 %v453, 1.442695
  %v562 = vpow.pop %v561
  %v563 = vmul.f32 %v454, 1.442695
  %v564 = vpow.pop %v563
  %v565 = vmul.f32 %v455, 1.442695
  %v566 = vpow.pop %v565
  %v567 = vmul.f32 %v456, 1.442695
  %v568 = vpow.pop %v567
  %v569 = vmul.f32 %v457, 1.442695
  %v570 = vpow.pop %v569
  %v571 = vmul.f32 %v458, 1.442695
  %v572 = vpow.pop %v571
  %v573 = vmul.f32 %v459, 1.442695
  %v574 = vpow.pop %v573
  %v575 = vmul.f32 %v460, 1.442695
  %v576 = vpow.pop %v575
  %v577 = vmul.f32 %v461, 1.442695
  %v578 = vpow.pop %v577
  %v579 = vmul.f32 %v462, 1.442695
  %v580 = vpow.pop %v579
  %v581 = vmul.f32 %v463, 1.442695
  %v582 = vpow.pop %v581
  %v583 = vmul.f32 %v464, 1.442695
  %v584 = vpow.pop %v583
  %v585 = vmul.f32 %v465, 1.442695
  %v586 = vpow.pop %v585
  %v587 = vmul.f32 %v466, 1.442695
  %v588 = vpow.pop %v587
  %v589 = vmul.f32 %v467, 1.442695
  %v590 = vpow.pop %v589
  %v591 = vmul.f32 %v468, 1.442695
  %v592 = vpow.pop %v591
  %v593 = vmul.f32 %v469, 1.442695
  %v594 = vpow.pop %v593
  %v595 = vmul.f32 %v470, 1.442695
  %v596 = vpow.pop %v595
  %v597 = vmul.f32 %v471, 1.442695
  %v598 = vpow.pop %v597
  %v599 = vmul.f32 %v472, 1.442695
  %v600 = vpow.pop %v599
  %v601 = vadd.f32 %v474, %v476
  %602 = vadd.xlane.f32.xlu0 %v601
  %v603 = vpop.xlane.xlu0 %602
  %v604 = vadd.f32 %v478, %v480
  %605 = vadd.xlane.f32.xlu0 %v604
  %v606 = vpop.xlane.xlu0 %605
  %v607 = vadd.f32 %v482, %v484
  %608 = vadd.xlane.f32.xlu0 %v607
  %v609 = vpop.xlane.xlu0 %608
  %v610 = vadd.f32 %v486, %v488
  %611 = vadd.xlane.f32.xlu0 %v610
  %v612 = vpop.xlane.xlu0 %611
  %v613 = vadd.f32 %v490, %v492
  %614 = vadd.xlane.f32.xlu0 %v613
  %v615 = vpop.xlane.xlu0 %614
  %v616 = vadd.f32 %v494, %v496
  %617 = vadd.xlane.f32.xlu0 %v616
  %v618 = vpop.xlane.xlu0 %617
  %v619 = vadd.f32 %v498, %v500
  %620 = vadd.xlane.f32.xlu0 %v619
  %v621 = vpop.xlane.xlu0 %620
  %v622 = vadd.f32 %v502, %v504
  %623 = vadd.xlane.f32.xlu0 %v622
  %v624 = vpop.xlane.xlu0 %623
  %v625 = vadd.f32 %v506, %v508
  %626 = vadd.xlane.f32.xlu0 %v625
  %v627 = vpop.xlane.xlu0 %626
  %v628 = vadd.f32 %v510, %v512
  %629 = vadd.xlane.f32.xlu0 %v628
  %v630 = vpop.xlane.xlu0 %629
  %v631 = vadd.f32 %v514, %v516
  %632 = vadd.xlane.f32.xlu0 %v631
  %v633 = vpop.xlane.xlu0 %632
  %v634 = vadd.f32 %v518, %v520
  %635 = vadd.xlane.f32.xlu0 %v634
  %v636 = vpop.xlane.xlu0 %635
  %v637 = vadd.f32 %v522, %v524
  %638 = vadd.xlane.f32.xlu0 %v637
  %v639 = vpop.xlane.xlu0 %638
  %v640 = vadd.f32 %v526, %v528
  %641 = vadd.xlane.f32.xlu0 %v640
  %v642 = vpop.xlane.xlu0 %641
  %v643 = vadd.f32 %v530, %v532
  %644 = vadd.xlane.f32.xlu0 %v643
  %v645 = vpop.xlane.xlu0 %644
  %v646 = vadd.f32 %v534, %v536
  %647 = vadd.xlane.f32.xlu0 %v646
  %v648 = vpop.xlane.xlu0 %647
  %v649 = vadd.f32 %v538, %v540
  %650 = vadd.xlane.f32.xlu0 %v649
  %v651 = vpop.xlane.xlu0 %650
  %v652 = vadd.f32 %v542, %v544
  %653 = vadd.xlane.f32.xlu0 %v652
  %v654 = vpop.xlane.xlu0 %653
  %v655 = vadd.f32 %v546, %v548
  %656 = vadd.xlane.f32.xlu0 %v655
  %v657 = vpop.xlane.xlu0 %656
  %v658 = vadd.f32 %v550, %v552
  %659 = vadd.xlane.f32.xlu0 %v658
  %v660 = vpop.xlane.xlu0 %659
  %v661 = vadd.f32 %v554, %v556
  %662 = vadd.xlane.f32.xlu0 %v661
  %v663 = vpop.xlane.xlu0 %662
  %v664 = vadd.f32 %v558, %v560
  %665 = vadd.xlane.f32.xlu0 %v664
  %v666 = vpop.xlane.xlu0 %665
  %v667 = vadd.f32 %v562, %v564
  %668 = vadd.xlane.f32.xlu0 %v667
  %v669 = vpop.xlane.xlu0 %668
  %v670 = vadd.f32 %v566, %v568
  %671 = vadd.xlane.f32.xlu0 %v670
  %v672 = vpop.xlane.xlu0 %671
  %v673 = vadd.f32 %v570, %v572
  %674 = vadd.xlane.f32.xlu0 %v673
  %v675 = vpop.xlane.xlu0 %674
  %v676 = vadd.f32 %v574, %v576
  %677 = vadd.xlane.f32.xlu0 %v676
  %v678 = vpop.xlane.xlu0 %677
  %v679 = vadd.f32 %v578, %v580
  %680 = vadd.xlane.f32.xlu0 %v679
  %v681 = vpop.xlane.xlu0 %680
  %v682 = vadd.f32 %v582, %v584
  %683 = vadd.xlane.f32.xlu0 %v682
  %v684 = vpop.xlane.xlu0 %683
  %v685 = vadd.f32 %v586, %v588
  %686 = vadd.xlane.f32.xlu0 %v685
  %v687 = vpop.xlane.xlu0 %686
  %v688 = vadd.f32 %v590, %v592
  %689 = vadd.xlane.f32.xlu0 %v688
  %v690 = vpop.xlane.xlu0 %689
  %v691 = vadd.f32 %v594, %v596
  %692 = vadd.xlane.f32.xlu0 %v691
  %v693 = vpop.xlane.xlu0 %692
  %v694 = vadd.f32 %v598, %v600
  %695 = vadd.xlane.f32.xlu0 %v694
  %v696 = vpop.xlane.xlu0 %695
  %v697 = vrcp.pop %v603
  %v698 = vmul.f32 %v474, %v697
  %v699 = vmul.f32 %v476, %v697
  %v700 = vrcp.pop %v606
  %v701 = vmul.f32 %v478, %v700
  %v702 = vmul.f32 %v480, %v700
  %v703 = vrcp.pop %v609
  %v704 = vmul.f32 %v482, %v703
  %v705 = vmul.f32 %v484, %v703
  %v706 = vrcp.pop %v612
  %v707 = vmul.f32 %v486, %v706
  %v708 = vmul.f32 %v488, %v706
  %v709 = vrcp.pop %v615
  %v710 = vmul.f32 %v490, %v709
  %v711 = vmul.f32 %v492, %v709
  %v712 = vrcp.pop %v618
  %v713 = vmul.f32 %v494, %v712
  %v714 = vmul.f32 %v496, %v712
  %v715 = vrcp.pop %v621
  %v716 = vmul.f32 %v498, %v715
  %v717 = vmul.f32 %v500, %v715
  %v718 = vrcp.pop %v624
  %v719 = vmul.f32 %v502, %v718
  %v720 = vmul.f32 %v504, %v718
  %v721 = vrcp.pop %v627
  %v722 = vmul.f32 %v506, %v721
  %v723 = vmul.f32 %v508, %v721
  %v724 = vrcp.pop %v630
  %v725 = vmul.f32 %v510, %v724
  %v726 = vmul.f32 %v512, %v724
  %v727 = vrcp.pop %v633
  %v728 = vmul.f32 %v514, %v727
  %v729 = vmul.f32 %v516, %v727
  %v730 = vrcp.pop %v636
  %v731 = vmul.f32 %v518, %v730
  %v732 = vmul.f32 %v520, %v730
  %v733 = vrcp.pop %v639
  %v734 = vmul.f32 %v522, %v733
  %v735 = vmul.f32 %v524, %v733
  %v736 = vrcp.pop %v642
  %v737 = vmul.f32 %v526, %v736
  %v738 = vmul.f32 %v528, %v736
  %v739 = vrcp.pop %v645
  %v740 = vmul.f32 %v530, %v739
  %v741 = vmul.f32 %v532, %v739
  %v742 = vrcp.pop %v648
  %v743 = vmul.f32 %v534, %v742
  %v744 = vmul.f32 %v536, %v742
  %v745 = vrcp.pop %v651
  %v746 = vmul.f32 %v538, %v745
  %v747 = vmul.f32 %v540, %v745
  %v748 = vrcp.pop %v654
  %v749 = vmul.f32 %v542, %v748
  %v750 = vmul.f32 %v544, %v748
  %v751 = vrcp.pop %v657
  %v752 = vmul.f32 %v546, %v751
  %v753 = vmul.f32 %v548, %v751
  %v754 = vrcp.pop %v660
  %v755 = vmul.f32 %v550, %v754
  %v756 = vmul.f32 %v552, %v754
  %v757 = vrcp.pop %v663
  %v758 = vmul.f32 %v554, %v757
  %v759 = vmul.f32 %v556, %v757
  %v760 = vrcp.pop %v666
  %v761 = vmul.f32 %v558, %v760
  %v762 = vmul.f32 %v560, %v760
  %v763 = vrcp.pop %v669
  %v764 = vmul.f32 %v562, %v763
  %v765 = vmul.f32 %v564, %v763
  %v766 = vrcp.pop %v672
  %v767 = vmul.f32 %v566, %v766
  %v768 = vmul.f32 %v568, %v766
  %v769 = vrcp.pop %v675
  %v770 = vmul.f32 %v570, %v769
  %v771 = vmul.f32 %v572, %v769
  %v772 = vrcp.pop %v678
  %v773 = vmul.f32 %v574, %v772
  %v774 = vmul.f32 %v576, %v772
  %v775 = vrcp.pop %v681
  %v776 = vmul.f32 %v578, %v775
  %v777 = vmul.f32 %v580, %v775
  %v778 = vrcp.pop %v684
  %v779 = vmul.f32 %v582, %v778
  %v780 = vmul.f32 %v584, %v778
  %v781 = vrcp.pop %v687
  %v782 = vmul.f32 %v586, %v781
  %v783 = vmul.f32 %v588, %v781
  %v784 = vrcp.pop %v690
  %v785 = vmul.f32 %v590, %v784
  %v786 = vmul.f32 %v592, %v784
  %v787 = vrcp.pop %v693
  %v788 = vmul.f32 %v594, %v787
  %v789 = vmul.f32 %v596, %v787
  %v790 = vrcp.pop %v696
  %v791 = vmul.f32 %v598, %v790
  %v792 = vmul.f32 %v600, %v790
  %v793 = vld [vmem:[%s1] sm:$0xff]
  %v794 = vld [vmem:[%s1 + $0x8] sm:$0xff]
  %v795 = vld [vmem:[%s1 + $0x10] sm:$0xff]
  %v796 = vld [vmem:[%s1 + $0x18] sm:$0xff]
  %v797 = vld [vmem:[%s1 + $0x20] sm:$0xff]
  %v798 = vld [vmem:[%s1 + $0x28] sm:$0xff]
  %v799 = vld [vmem:[%s1 + $0x30] sm:$0xff]
  %v800 = vld [vmem:[%s1 + $0x38] sm:$0xff]
  %v801 = vld [vmem:[%s1 + $0x40] sm:$0xff]
  %v802 = vld [vmem:[%s1 + $0x48] sm:$0xff]
  %v803 = vld [vmem:[%s1 + $0x50] sm:$0xff]
  %v804 = vld [vmem:[%s1 + $0x58] sm:$0xff]
  %v805 = vld [vmem:[%s1 + $0x60] sm:$0xff]
  %v806 = vld [vmem:[%s1 + $0x68] sm:$0xff]
  %v807 = vld [vmem:[%s1 + $0x70] sm:$0xff]
  %v808 = vld [vmem:[%s1 + $0x78] sm:$0xff]
  %v809 = vld [vmem:[%s1 + $0x80] sm:$0xff]
  %v810 = vld [vmem:[%s1 + $0x88] sm:$0xff]
  %v811 = vld [vmem:[%s1 + $0x90] sm:$0xff]
  %v812 = vld [vmem:[%s1 + $0x98] sm:$0xff]
  %v813 = vld [vmem:[%s1 + $0xa0] sm:$0xff]
  %v814 = vld [vmem:[%s1 + $0xa8] sm:$0xff]
  %v815 = vld [vmem:[%s1 + $0xb0] sm:$0xff]
  %v816 = vld [vmem:[%s1 + $0xb8] sm:$0xff]
  %v817 = vld [vmem:[%s1 + $0xc0] sm:$0xff]
  %v818 = vld [vmem:[%s1 + $0xc8] sm:$0xff]
  %v819 = vld [vmem:[%s1 + $0xd0] sm:$0xff]
  %v820 = vld [vmem:[%s1 + $0xd8] sm:$0xff]
  %v821 = vld [vmem:[%s1 + $0xe0] sm:$0xff]
  %v822 = vld [vmem:[%s1 + $0xe8] sm:$0xff]
  %v823 = vld [vmem:[%s1 + $0xf0] sm:$0xff]
  %v824 = vld [vmem:[%s1 + $0xf8] sm:$0xff]
  %v825 = vld [vmem:[%s1 + $0x100] sm:$0xff]
  %v826 = vld [vmem:[%s1 + $0x108] sm:$0xff]
  %v827 = vld [vmem:[%s1 + $0x110] sm:$0xff]
  %v828 = vld [vmem:[%s1 + $0x118] sm:$0xff]
  %v829 = vld [vmem:[%s1 + $0x120] sm:$0xff]
  %v830 = vld [vmem:[%s1 + $0x128] sm:$0xff]
  %v831 = vld [vmem:[%s1 + $0x130] sm:$0xff]
  %v832 = vld [vmem:[%s1 + $0x138] sm:$0xff]
  %v833 = vld [vmem:[%s1 + $0x140] sm:$0xff]
  %v834 = vld [vmem:[%s1 + $0x148] sm:$0xff]
  %v835 = vld [vmem:[%s1 + $0x150] sm:$0xff]
  %v836 = vld [vmem:[%s1 + $0x158] sm:$0xff]
  %v837 = vld [vmem:[%s1 + $0x160] sm:$0xff]
  %v838 = vld [vmem:[%s1 + $0x168] sm:$0xff]
  %v839 = vld [vmem:[%s1 + $0x170] sm:$0xff]
  %v840 = vld [vmem:[%s1 + $0x178] sm:$0xff]
  %v841 = vld [vmem:[%s1 + $0x180] sm:$0xff]
  %v842 = vld [vmem:[%s1 + $0x188] sm:$0xff]
  %v843 = vld [vmem:[%s1 + $0x190] sm:$0xff]
  %v844 = vld [vmem:[%s1 + $0x198] sm:$0xff]
  %v845 = vld [vmem:[%s1 + $0x1a0] sm:$0xff]
  %v846 = vld [vmem:[%s1 + $0x1a8] sm:$0xff]
  %v847 = vld [vmem:[%s1 + $0x1b0] sm:$0xff]
  %v848 = vld [vmem:[%s1 + $0x1b8] sm:$0xff]
  %v849 = vld [vmem:[%s1 + $0x1c0] sm:$0xff]
  %v850 = vld [vmem:[%s1 + $0x1c8] sm:$0xff]
  %v851 = vld [vmem:[%s1 + $0x1d0] sm:$0xff]
  %v852 = vld [vmem:[%s1 + $0x1d8] sm:$0xff]
  %v853 = vld [vmem:[%s1 + $0x1e0] sm:$0xff]
  %v854 = vld [vmem:[%s1 + $0x1e8] sm:$0xff]
  %v855 = vld [vmem:[%s1 + $0x1f0] sm:$0xff]
  %v856 = vld [vmem:[%s1 + $0x1f8] sm:$0xff]
  %v857 = vmul.f32 %v793, %v698
  %v858 = vmul.f32 %v794, %v699
  %v859 = vmul.f32 %v795, %v701
  %v860 = vmul.f32 %v796, %v702
  %v861 = vmul.f32 %v797, %v704
  %v862 = vmul.f32 %v798, %v705
  %v863 = vmul.f32 %v799, %v707
  %v864 = vmul.f32 %v800, %v708
  %v865 = vmul.f32 %v801, %v710
  %v866 = vmul.f32 %v802, %v711
  %v867 = vmul.f32 %v803, %v713
  %v868 = vmul.f32 %v804, %v714
  %v869 = vmul.f32 %v805, %v716
  %v870 = vmul.f32 %v806, %v717
  %v871 = vmul.f32 %v807, %v719
  %v872 = vmul.f32 %v808, %v720
  %v873 = vmul.f32 %v809, %v722
  %v874 = vmul.f32 %v810, %v723
  %v875 = vmul.f32 %v811, %v725
  %v876 = vmul.f32 %v812, %v726
  %v877 = vmul.f32 %v813, %v728
  %v878 = vmul.f32 %v814, %v729
  %v879 = vmul.f32 %v815, %v731
  %v880 = vmul.f32 %v816, %v732
  %v881 = vmul.f32 %v817, %v734
  %v882 = vmul.f32 %v818, %v735
  %v883 = vmul.f32 %v819, %v737
  %v884 = vmul.f32 %v820, %v738
  %v885 = vmul.f32 %v821, %v740
  %v886 = vmul.f32 %v822, %v741
  %v887 = vmul.f32 %v823, %v743
  %v888 = vmul.f32 %v824, %v744
  %v889 = vmul.f32 %v825, %v746
  %v890 = vmul.f32 %v826, %v747
  %v891 = vmul.f32 %v827, %v749
  %v892 = vmul.f32 %v828, %v750
  %v893 = vmul.f32 %v829, %v752
  %v894 = vmul.f32 %v830, %v753
  %v895 = vmul.f32 %v831, %v755
  %v896 = vmul.f32 %v832, %v756
  %v897 = vmul.f32 %v833, %v758
  %v898 = vmul.f32 %v834, %v759
  %v899 = vmul.f32 %v835, %v761
  %v900 = vmul.f32 %v836, %v762
  %v901 = vmul.f32 %v837, %v764
  %v902 = vmul.f32 %v838, %v765
  %v903 = vmul.f32 %v839, %v767
  %v904 = vmul.f32 %v840, %v768
  %v905 = vmul.f32 %v841, %v770
  %v906 = vmul.f32 %v842, %v771
  %v907 = vmul.f32 %v843, %v773
  %v908 = vmul.f32 %v844, %v774
  %v909 = vmul.f32 %v845, %v776
  %v910 = vmul.f32 %v846, %v777
  %v911 = vmul.f32 %v847, %v779
  %v912 = vmul.f32 %v848, %v780
  %v913 = vmul.f32 %v849, %v782
  %v914 = vmul.f32 %v850, %v783
  %v915 = vmul.f32 %v851, %v785
  %v916 = vmul.f32 %v852, %v786
  %v917 = vmul.f32 %v853, %v788
  %v918 = vmul.f32 %v854, %v789
  %v919 = vmul.f32 %v855, %v791
  %v920 = vmul.f32 %v856, %v792
  %v921 = vadd.f32 %v857, 1.0
  %v922 = vadd.f32 %v858, 1.0
  %v923 = vadd.f32 %v859, 1.0
  %v924 = vadd.f32 %v860, 1.0
  %v925 = vadd.f32 %v861, 1.0
  %v926 = vadd.f32 %v862, 1.0
  %v927 = vadd.f32 %v863, 1.0
  %v928 = vadd.f32 %v864, 1.0
  %v929 = vadd.f32 %v865, 1.0
  %v930 = vadd.f32 %v866, 1.0
  %v931 = vadd.f32 %v867, 1.0
  %v932 = vadd.f32 %v868, 1.0
  %v933 = vadd.f32 %v869, 1.0
  %v934 = vadd.f32 %v870, 1.0
  %v935 = vadd.f32 %v871, 1.0
  %v936 = vadd.f32 %v872, 1.0
  %v937 = vadd.f32 %v873, 1.0
  %v938 = vadd.f32 %v874, 1.0
  %v939 = vadd.f32 %v875, 1.0
  %v940 = vadd.f32 %v876, 1.0
  %v941 = vadd.f32 %v877, 1.0
  %v942 = vadd.f32 %v878, 1.0
  %v943 = vadd.f32 %v879, 1.0
  %v944 = vadd.f32 %v880, 1.0
  %v945 = vadd.f32 %v881, 1.0
  %v946 = vadd.f32 %v882, 1.0
  %v947 = vadd.f32 %v883, 1.0
  %v948 = vadd.f32 %v884, 1.0
  %v949 = vadd.f32 %v885, 1.0
  %v950 = vadd.f32 %v886, 1.0
  %v951 = vadd.f32 %v887, 1.0
  %v952 = vadd.f32 %v888, 1.0
  %v953 = vadd.f32 %v889, 1.0
  %v954 = vadd.f32 %v890, 1.0
  %v955 = vadd.f32 %v891, 1.0
  %v956 = vadd.f32 %v892, 1.0
  %v957 = vadd.f32 %v893, 1.0
  %v958 = vadd.f32 %v894, 1.0
  %v959 = vadd.f32 %v895, 1.0
  %v960 = vadd.f32 %v896, 1.0
  %v961 = vadd.f32 %v897, 1.0
  %v962 = vadd.f32 %v898, 1.0
  %v963 = vadd.f32 %v899, 1.0
  %v964 = vadd.f32 %v900, 1.0
  %v965 = vadd.f32 %v901, 1.0
  %v966 = vadd.f32 %v902, 1.0
  %v967 = vadd.f32 %v903, 1.0
  %v968 = vadd.f32 %v904, 1.0
  %v969 = vadd.f32 %v905, 1.0
  %v970 = vadd.f32 %v906, 1.0
  %v971 = vadd.f32 %v907, 1.0
  %v972 = vadd.f32 %v908, 1.0
  %v973 = vadd.f32 %v909, 1.0
  %v974 = vadd.f32 %v910, 1.0
  %v975 = vadd.f32 %v911, 1.0
  %v976 = vadd.f32 %v912, 1.0
  %v977 = vadd.f32 %v913, 1.0
  %v978 = vadd.f32 %v914, 1.0
  %v979 = vadd.f32 %v915, 1.0
  %v980 = vadd.f32 %v916, 1.0
  %v981 = vadd.f32 %v917, 1.0
  %v982 = vadd.f32 %v918, 1.0
  %v983 = vadd.f32 %v919, 1.0
  %v984 = vadd.f32 %v920, 1.0
  %v985 = vld [vmem:[%s2] sm:$0xff]
  %v986 = vld [vmem:[%s2 + $0x8] sm:$0xff]
  %v987 = vld [vmem:[%s2 + $0x10] sm:$0xff]
  %v988 = vld [vmem:[%s2 + $0x18] sm:$0xff]
  %v989 = vld [vmem:[%s2 + $0x20] sm:$0xff]
  %v990 = vld [vmem:[%s2 + $0x28] sm:$0xff]
  %v991 = vld [vmem:[%s2 + $0x30] sm:$0xff]
  %v992 = vld [vmem:[%s2 + $0x38] sm:$0xff]
  %v993 = vld [vmem:[%s2 + $0x40] sm:$0xff]
  %v994 = vld [vmem:[%s2 + $0x48] sm:$0xff]
  %v995 = vld [vmem:[%s2 + $0x50] sm:$0xff]
  %v996 = vld [vmem:[%s2 + $0x58] sm:$0xff]
  %v997 = vld [vmem:[%s2 + $0x60] sm:$0xff]
  %v998 = vld [vmem:[%s2 + $0x68] sm:$0xff]
  %v999 = vld [vmem:[%s2 + $0x70] sm:$0xff]
  %v1000 = vld [vmem:[%s2 + $0x78] sm:$0xff]
  %v1001 = vld [vmem:[%s2 + $0x80] sm:$0xff]
  %v1002 = vld [vmem:[%s2 + $0x88] sm:$0xff]
  %v1003 = vld [vmem:[%s2 + $0x90] sm:$0xff]
  %v1004 = vld [vmem:[%s2 + $0x98] sm:$0xff]
  %v1005 = vld [vmem:[%s2 + $0xa0] sm:$0xff]
  %v1006 = vld [vmem:[%s2 + $0xa8] sm:$0xff]
  %v1007 = vld [vmem:[%s2 + $0xb0] sm:$0xff]
  %v1008 = vld [vmem:[%s2 + $0xb8] sm:$0xff]
  %v1009 = vld [vmem:[%s2 + $0xc0] sm:$0xff]
  %v1010 = vld [vmem:[%s2 + $0xc8] sm:$0xff]
  %v1011 = vld [vmem:[%s2 + $0xd0] sm:$0xff]
  %v1012 = vld [vmem:[%s2 + $0xd8] sm:$0xff]
  %v1013 = vld [vmem:[%s2 + $0xe0] sm:$0xff]
  %v1014 = vld [vmem:[%s2 + $0xe8] sm:$0xff]
  %v1015 = vld [vmem:[%s2 + $0xf0] sm:$0xff]
  %v1016 = vld [vmem:[%s2 + $0xf8] sm:$0xff]
  %v1017 = vld [vmem:[%s2 + $0x100] sm:$0xff]
  %v1018 = vld [vmem:[%s2 + $0x108] sm:$0xff]
  %v1019 = vld [vmem:[%s2 + $0x110] sm:$0xff]
  %v1020 = vld [vmem:[%s2 + $0x118] sm:$0xff]
  %v1021 = vld [vmem:[%s2 + $0x120] sm:$0xff]
  %v1022 = vld [vmem:[%s2 + $0x128] sm:$0xff]
  %v1023 = vld [vmem:[%s2 + $0x130] sm:$0xff]
  %v1024 = vld [vmem:[%s2 + $0x138] sm:$0xff]
  %v1025 = vld [vmem:[%s2 + $0x140] sm:$0xff]
  %v1026 = vld [vmem:[%s2 + $0x148] sm:$0xff]
  %v1027 = vld [vmem:[%s2 + $0x150] sm:$0xff]
  %v1028 = vld [vmem:[%s2 + $0x158] sm:$0xff]
  %v1029 = vld [vmem:[%s2 + $0x160] sm:$0xff]
  %v1030 = vld [vmem:[%s2 + $0x168] sm:$0xff]
  %v1031 = vld [vmem:[%s2 + $0x170] sm:$0xff]
  %v1032 = vld [vmem:[%s2 + $0x178] sm:$0xff]
  %v1033 = vld [vmem:[%s2 + $0x180] sm:$0xff]
  %v1034 = vld [vmem:[%s2 + $0x188] sm:$0xff]
  %v1035 = vld [vmem:[%s2 + $0x190] sm:$0xff]
  %v1036 = vld [vmem:[%s2 + $0x198] sm:$0xff]
  %v1037 = vld [vmem:[%s2 + $0x1a0] sm:$0xff]
  %v1038 = vld [vmem:[%s2 + $0x1a8] sm:$0xff]
  %v1039 = vld [vmem:[%s2 + $0x1b0] sm:$0xff]
  %v1040 = vld [vmem:[%s2 + $0x1b8] sm:$0xff]
  %v1041 = vld [vmem:[%s2 + $0x1c0] sm:$0xff]
  %v1042 = vld [vmem:[%s2 + $0x1c8] sm:$0xff]
  %v1043 = vld [vmem:[%s2 + $0x1d0] sm:$0xff]
  %v1044 = vld [vmem:[%s2 + $0x1d8] sm:$0xff]
  %v1045 = vld [vmem:[%s2 + $0x1e0] sm:$0xff]
  %v1046 = vld [vmem:[%s2 + $0x1e8] sm:$0xff]
  %v1047 = vld [vmem:[%s2 + $0x1f0] sm:$0xff]
  %v1048 = vld [vmem:[%s2 + $0x1f8] sm:$0xff]
  %v1049 = vmul.f32 %v921, %v985
  %v1050 = vmul.f32 %v922, %v986
  %v1051 = vmul.f32 %v923, %v987
  %v1052 = vmul.f32 %v924, %v988
  %v1053 = vmul.f32 %v925, %v989
  %v1054 = vmul.f32 %v926, %v990
  %v1055 = vmul.f32 %v927, %v991
  %v1056 = vmul.f32 %v928, %v992
  %v1057 = vmul.f32 %v929, %v993
  %v1058 = vmul.f32 %v930, %v994
  %v1059 = vmul.f32 %v931, %v995
  %v1060 = vmul.f32 %v932, %v996
  %v1061 = vmul.f32 %v933, %v997
  %v1062 = vmul.f32 %v934, %v998
  %v1063 = vmul.f32 %v935, %v999
  %v1064 = vmul.f32 %v936, %v1000
  %v1065 = vmul.f32 %v937, %v1001
  %v1066 = vmul.f32 %v938, %v1002
  %v1067 = vmul.f32 %v939, %v1003
  %v1068 = vmul.f32 %v940, %v1004
  %v1069 = vmul.f32 %v941, %v1005
  %v1070 = vmul.f32 %v942, %v1006
  %v1071 = vmul.f32 %v943, %v1007
  %v1072 = vmul.f32 %v944, %v1008
  %v1073 = vmul.f32 %v945, %v1009
  %v1074 = vmul.f32 %v946, %v1010
  %v1075 = vmul.f32 %v947, %v1011
  %v1076 = vmul.f32 %v948, %v1012
  %v1077 = vmul.f32 %v949, %v1013
  %v1078 = vmul.f32 %v950, %v1014
  %v1079 = vmul.f32 %v951, %v1015
  %v1080 = vmul.f32 %v952, %v1016
  %v1081 = vmul.f32 %v953, %v1017
  %v1082 = vmul.f32 %v954, %v1018
  %v1083 = vmul.f32 %v955, %v1019
  %v1084 = vmul.f32 %v956, %v1020
  %v1085 = vmul.f32 %v957, %v1021
  %v1086 = vmul.f32 %v958, %v1022
  %v1087 = vmul.f32 %v959, %v1023
  %v1088 = vmul.f32 %v960, %v1024
  %v1089 = vmul.f32 %v961, %v1025
  %v1090 = vmul.f32 %v962, %v1026
  %v1091 = vmul.f32 %v963, %v1027
  %v1092 = vmul.f32 %v964, %v1028
  %v1093 = vmul.f32 %v965, %v1029
  %v1094 = vmul.f32 %v966, %v1030
  %v1095 = vmul.f32 %v967, %v1031
  %v1096 = vmul.f32 %v968, %v1032
  %v1097 = vmul.f32 %v969, %v1033
  %v1098 = vmul.f32 %v970, %v1034
  %v1099 = vmul.f32 %v971, %v1035
  %v1100 = vmul.f32 %v972, %v1036
  %v1101 = vmul.f32 %v973, %v1037
  %v1102 = vmul.f32 %v974, %v1038
  %v1103 = vmul.f32 %v975, %v1039
  %v1104 = vmul.f32 %v976, %v1040
  %v1105 = vmul.f32 %v977, %v1041
  %v1106 = vmul.f32 %v978, %v1042
  %v1107 = vmul.f32 %v979, %v1043
  %v1108 = vmul.f32 %v980, %v1044
  %v1109 = vmul.f32 %v981, %v1045
  %v1110 = vmul.f32 %v982, %v1046
  %v1111 = vmul.f32 %v983, %v1047
  %v1112 = vmul.f32 %v984, %v1048
  %v1113 = vpack.c.bf16 %v1051, %v1049
  %v1114 = vpack.c.bf16 %v1052, %v1050
  %v1115 = vpack.c.bf16 %v1055, %v1053
  %v1116 = vpack.c.bf16 %v1056, %v1054
  %v1117 = vpack.c.bf16 %v1059, %v1057
  %v1118 = vpack.c.bf16 %v1060, %v1058
  %v1119 = vpack.c.bf16 %v1063, %v1061
  %v1120 = vpack.c.bf16 %v1064, %v1062
  %v1121 = vpack.c.bf16 %v1067, %v1065
  %v1122 = vpack.c.bf16 %v1068, %v1066
  %v1123 = vpack.c.bf16 %v1071, %v1069
  %v1124 = vpack.c.bf16 %v1072, %v1070
  %v1125 = vpack.c.bf16 %v1075, %v1073
  %v1126 = vpack.c.bf16 %v1076, %v1074
  %v1127 = vpack.c.bf16 %v1079, %v1077
  %v1128 = vpack.c.bf16 %v1080, %v1078
  %v1129 = vpack.c.bf16 %v1083, %v1081
  %v1130 = vpack.c.bf16 %v1084, %v1082
  %v1131 = vpack.c.bf16 %v1087, %v1085
  %v1132 = vpack.c.bf16 %v1088, %v1086
  %v1133 = vpack.c.bf16 %v1091, %v1089
  %v1134 = vpack.c.bf16 %v1092, %v1090
  %v1135 = vpack.c.bf16 %v1095, %v1093
  %v1136 = vpack.c.bf16 %v1096, %v1094
  %v1137 = vpack.c.bf16 %v1099, %v1097
  %v1138 = vpack.c.bf16 %v1100, %v1098
  %v1139 = vpack.c.bf16 %v1103, %v1101
  %v1140 = vpack.c.bf16 %v1104, %v1102
  %v1141 = vpack.c.bf16 %v1107, %v1105
  %v1142 = vpack.c.bf16 %v1108, %v1106
  %v1143 = vpack.c.bf16 %v1111, %v1109
  %v1144 = vpack.c.bf16 %v1112, %v1110
  %1145 = vmatprep.subr.bf16.mxu0 %v1128
  %1146 = vmatpush1.bf16.xpose.msra.mxu0 %v1127
  %1147 = vmatprep.subr.bf16.mxu0 %v1126
  %1148 = vmatpush1.bf16.xpose.msra.mxu0 %v1125
  %1149 = vmatprep.subr.bf16.mxu0 %v1124
  %1150 = vmatpush1.bf16.xpose.msra.mxu0 %v1123
  %1151 = vmatprep.subr.bf16.mxu0 %v1122
  %1152 = vmatpush1.bf16.xpose.msra.mxu0 %v1121
  %1153 = vmatprep.subr.bf16.mxu0 %v1120
  %1154 = vmatpush1.bf16.xpose.msra.mxu0 %v1119
  %1155 = vmatprep.subr.bf16.mxu0 %v1118
  %1156 = vmatpush1.bf16.xpose.msra.mxu0 %v1117
  %1157 = vmatprep.subr.bf16.mxu0 %v1116
  %1158 = vmatpush1.bf16.xpose.msra.mxu0 %v1115
  %1159 = vmatprep.subr.bf16.mxu0 %v1114
  %1160 = vmatpush1.bf16.xpose.msra.mxu0 %v1113
  %1161 = vmatprep.subr.bf16.mxu0 %v1144
  %1162 = vmatpush2.bf16.xpose.msra.mxu0 %v1143
  %1163 = vmatprep.subr.bf16.mxu0 %v1142
  %1164 = vmatpush2.bf16.xpose.msra.mxu0 %v1141
  %1165 = vmatprep.subr.bf16.mxu0 %v1140
  %1166 = vmatpush2.bf16.xpose.msra.mxu0 %v1139
  %1167 = vmatprep.subr.bf16.mxu0 %v1138
  %1168 = vmatpush2.bf16.xpose.msra.mxu0 %v1137
  %1169 = vmatprep.subr.bf16.mxu0 %v1136
  %1170 = vmatpush2.bf16.xpose.msra.mxu0 %v1135
  %1171 = vmatprep.subr.bf16.mxu0 %v1134
  %1172 = vmatpush2.bf16.xpose.msra.mxu0 %v1133
  %1173 = vmatprep.subr.bf16.mxu0 %v1132
  %1174 = vmatpush2.bf16.xpose.msra.mxu0 %v1131
  %1175 = vmatprep.subr.bf16.mxu0 %v1130
  %1176 = vmatpush2.bf16.xpose.msra.mxu0 %v1129
  %1177 = vmatprep.mubr.bf16.mxu0 %v32
  %1178 = vmatmul.mubr.bf16.gmra.mxu0 %v31
  %v1179 = vpop.f32.mrf.mxu0
  %v1180 = vadd.f32 0.0, %v1179
  %v1181 = vpop.f32.mrf.mxu0
  %v1182 = vadd.f32 0.0, %v1181
  %v1183 = vpop.f32.mrf.mxu0
  %v1184 = vadd.f32 0.0, %v1183
  %v1185 = vpop.f32.mrf.mxu0
  %v1186 = vadd.f32 0.0, %v1185
  %1187 = vmatprep.mubr.bf16.mxu0 %v34
  %1188 = vmatmul.mubr.bf16.gmra.mxu0 %v33
  %v1189 = vpop.f32.mrf.mxu0
  %v1190 = vadd.f32 0.0, %v1189
  %v1191 = vpop.f32.mrf.mxu0
  %v1192 = vadd.f32 0.0, %v1191
  %v1193 = vpop.f32.mrf.mxu0
  %v1194 = vadd.f32 0.0, %v1193
  %v1195 = vpop.f32.mrf.mxu0
  %v1196 = vadd.f32 0.0, %v1195
  %1197 = vmatprep.mubr.bf16.mxu0 %v36
  %1198 = vmatmul.mubr.bf16.gmra.mxu0 %v35
  %v1199 = vpop.f32.mrf.mxu0
  %v1200 = vadd.f32 0.0, %v1199
  %v1201 = vpop.f32.mrf.mxu0
  %v1202 = vadd.f32 0.0, %v1201
  %v1203 = vpop.f32.mrf.mxu0
  %v1204 = vadd.f32 0.0, %v1203
  %v1205 = vpop.f32.mrf.mxu0
  %v1206 = vadd.f32 0.0, %v1205
  %1207 = vmatprep.mubr.bf16.mxu0 %v38
  %1208 = vmatmul.mubr.bf16.gmra.mxu0 %v37
  %v1209 = vpop.f32.mrf.mxu0
  %v1210 = vadd.f32 0.0, %v1209
  %v1211 = vpop.f32.mrf.mxu0
  %v1212 = vadd.f32 0.0, %v1211
  %v1213 = vpop.f32.mrf.mxu0
  %v1214 = vadd.f32 0.0, %v1213
  %v1215 = vpop.f32.mrf.mxu0
  %v1216 = vadd.f32 0.0, %v1215
  %1217 = vdwg.mxu0
  %v1218 = vmul.f32 %v1180, %v1180
  %v1219 = vmul.f32 %v1182, %v1182
  %v1220 = vmul.f32 %v1184, %v1184
  %v1221 = vmul.f32 %v1186, %v1186
  %v1222 = vmul.f32 %v1190, %v1190
  %v1223 = vmul.f32 %v1192, %v1192
  %v1224 = vmul.f32 %v1194, %v1194
  %v1225 = vmul.f32 %v1196, %v1196
  %v1226 = vmul.f32 %v1200, %v1200
  %v1227 = vmul.f32 %v1202, %v1202
  %v1228 = vmul.f32 %v1204, %v1204
  %v1229 = vmul.f32 %v1206, %v1206
  %v1230 = vmul.f32 %v1210, %v1210
  %v1231 = vmul.f32 %v1212, %v1212
  %v1232 = vmul.f32 %v1214, %v1214
  %v1233 = vmul.f32 %v1216, %v1216
  %v1234 = vadd.f32 %v1218, %v1219
  %1235 = vadd.xlane.f32.xlu0 %v1234
  %v1236 = vpop.xlane.xlu0 %1235
  %v1237 = vadd.f32 %v1220, %v1221
  %1238 = vadd.xlane.f32.xlu0 %v1237
  %v1239 = vpop.xlane.xlu0 %1238
  %v1240 = vadd.f32 %v1222, %v1223
  %1241 = vadd.xlane.f32.xlu0 %v1240
  %v1242 = vpop.xlane.xlu0 %1241
  %v1243 = vadd.f32 %v1224, %v1225
  %1244 = vadd.xlane.f32.xlu0 %v1243
  %v1245 = vpop.xlane.xlu0 %1244
  %v1246 = vadd.f32 %v1226, %v1227
  %1247 = vadd.xlane.f32.xlu0 %v1246
  %v1248 = vpop.xlane.xlu0 %1247
  %v1249 = vadd.f32 %v1228, %v1229
  %1250 = vadd.xlane.f32.xlu0 %v1249
  %v1251 = vpop.xlane.xlu0 %1250
  %v1252 = vadd.f32 %v1230, %v1231
  %1253 = vadd.xlane.f32.xlu0 %v1252
  %v1254 = vpop.xlane.xlu0 %1253
  %v1255 = vadd.f32 %v1232, %v1233
  %1256 = vadd.xlane.f32.xlu0 %v1255
  %v1257 = vpop.xlane.xlu0 %1256
  %v1258 = vmax.f32 %v1236, 1e-08
  %v1259 = vmax.f32 %v1239, 1e-08
  %v1260 = vmax.f32 %v1242, 1e-08
  %v1261 = vmax.f32 %v1245, 1e-08
  %v1262 = vmax.f32 %v1248, 1e-08
  %v1263 = vmax.f32 %v1251, 1e-08
  %v1264 = vmax.f32 %v1254, 1e-08
  %v1265 = vmax.f32 %v1257, 1e-08
  %v1266 = vrsqrt.pop %v1258
  %v1267 = vrsqrt.pop %v1259
  %v1268 = vrsqrt.pop %v1260
  %v1269 = vrsqrt.pop %v1261
  %v1270 = vrsqrt.pop %v1262
  %v1271 = vrsqrt.pop %v1263
  %v1272 = vrsqrt.pop %v1264
  %v1273 = vrsqrt.pop %v1265
  %v1274 = vmul.f32 %v1266, 20.0
  %v1275 = vmul.f32 %v1267, 20.0
  %v1276 = vmul.f32 %v1268, 20.0
  %v1277 = vmul.f32 %v1269, 20.0
  %v1278 = vmul.f32 %v1270, 20.0
  %v1279 = vmul.f32 %v1271, 20.0
  %v1280 = vmul.f32 %v1272, 20.0
  %v1281 = vmul.f32 %v1273, 20.0
  %v1282 = vmul.f32 %v1180, %v1274
  %v1283 = vmul.f32 %v1182, %v1274
  %v1284 = vmul.f32 %v1184, %v1275
  %v1285 = vmul.f32 %v1186, %v1275
  %v1286 = vmul.f32 %v1190, %v1276
  %v1287 = vmul.f32 %v1192, %v1276
  %v1288 = vmul.f32 %v1194, %v1277
  %v1289 = vmul.f32 %v1196, %v1277
  %v1290 = vmul.f32 %v1200, %v1278
  %v1291 = vmul.f32 %v1202, %v1278
  %v1292 = vmul.f32 %v1204, %v1279
  %v1293 = vmul.f32 %v1206, %v1279
  %v1294 = vmul.f32 %v1210, %v1280
  %v1295 = vmul.f32 %v1212, %v1280
  %v1296 = vmul.f32 %v1214, %v1281
  %v1297 = vmul.f32 %v1216, %v1281
  %v1298 = vpack.c.bf16 %v1284, %v1282
  %v1299 = vpack.c.bf16 %v1285, %v1283
  %v1300 = vpack.c.bf16 %v1288, %v1286
  %v1301 = vpack.c.bf16 %v1289, %v1287
  %v1302 = vpack.c.bf16 %v1292, %v1290
  %v1303 = vpack.c.bf16 %v1293, %v1291
  %v1304 = vpack.c.bf16 %v1296, %v1294
  %v1305 = vpack.c.bf16 %v1297, %v1295
  %v1314 = vunpack.c.l.b16 %v1298
  %v1315 = vunpack.c.l.b16 %v1299
  %v1316 = vunpack.c.h.b16 %v1298
  %v1317 = vunpack.c.h.b16 %v1299
  %v1318 = vunpack.c.l.b16 %v1300
  %v1319 = vunpack.c.l.b16 %v1301
  %v1320 = vunpack.c.h.b16 %v1300
  %v1321 = vunpack.c.h.b16 %v1301
  %v1322 = vunpack.c.l.b16 %v1302
  %v1323 = vunpack.c.l.b16 %v1303
  %v1324 = vunpack.c.h.b16 %v1302
  %v1325 = vunpack.c.h.b16 %v1303
  %v1326 = vunpack.c.l.b16 %v1304
  %v1327 = vunpack.c.l.b16 %v1305
  %v1328 = vunpack.c.h.b16 %v1304
  %v1329 = vunpack.c.h.b16 %v1305
  %v1330 = vpack.c.b16 %v1315, %v1314
  %v1331 = vpack.c.b16 %v1317, %v1316
  %v1332 = vpack.c.b16 %v1319, %v1318
  %v1333 = vpack.c.b16 %v1321, %v1320
  %v1334 = vpack.c.b16 %v1323, %v1322
  %v1335 = vpack.c.b16 %v1325, %v1324
  %v1336 = vpack.c.b16 %v1327, %v1326
  %v1337 = vpack.c.b16 %v1329, %v1328
  %1346 = vst [vmem:[%s3] sm:$0xff] %v1330
  %1347 = vst [vmem:[%s3 + $0x8] sm:$0xff] %v1331
  %1348 = vst [vmem:[%s3 + $0x10] sm:$0xff] %v1332
  %1349 = vst [vmem:[%s3 + $0x18] sm:$0xff] %v1333
  %1350 = vst [vmem:[%s3 + $0x20] sm:$0xff] %v1334
  %1351 = vst [vmem:[%s3 + $0x28] sm:$0xff] %v1335
  %1352 = vst [vmem:[%s3 + $0x30] sm:$0xff] %v1336
  %1353 = vst [vmem:[%s3 + $0x38] sm:$0xff] %v1337
  // Predicated region
  $region14: #{_gridconv_core.2} parent=0 // pred_check
    _
  $region15: #{_gridconv_core.2} parent=0 // pred_check_branch
    %1355 = sbr.rel (0) target = $region17
  $region16: #{_gridconv_core.2} parent=0 // pred_region
    _
  $region17: #{_gridconv_core.2} parent=0 // pred_fallthru
    _
  // Predicated region
  $region18: #{_gridconv_core.2} parent=0 // pred_check
    _
  $region19: #{_gridconv_core.2} parent=0 // pred_check_branch
    %1357 = sbr.rel (0) target = $region21
  $region20: #{_gridconv_core.2} parent=0 // pred_region
    _
  $region21: #{_gridconv_core.2} parent=0 // pred_fallthru
    _

// kernel: _gridconv_core.3
$region0: #{_gridconv_core.3}
  #allocation0 [shape = 'u32[]', space=smem, size = 0x4, offset = 0x4, fixed_abs, tag = 'smem constant byte address 0x4 - core index']
  #allocation1 [shape = 'u32[144,128]{1,0:T(1,128)}', space=vmem, size = 0x12000, scoped, tag = 'internal scratch']
  %s0 = inlined_call_operand.vmem [shape: bf16[64,256], index: 0, kind: input, shape index: {}]
  %s1 = inlined_call_operand.vmem [shape: f32[64,2], index: 1, kind: input, shape index: {}]
  %s2 = inlined_call_operand.vmem [shape: f32[256,256], index: 2, kind: input, shape index: {}]
  %s3 = inlined_call_operand.vmem [shape: f32[64,256], index: 3, kind: output, shape index: {0}]
  %s4 = inlined_call_operand.vmem [shape: f32[1,256], index: 4, kind: output, shape index: {1}]
  %s5 = inlined_call_operand.vmem [shape: f32[1,256], index: 5, kind: output, shape index: {2}]
  %6 = xla_tuple %s3, %s4, %s5
  %s7 = sld [smem:[#allocation0]]
  $region38: #{_gridconv_core.3} parent=0
    _
  %s9 = ssub.s32 1, %s7
  %s10 = scalar_select 0, %s9, %s7
  // Predicated region
  $region2: #{_gridconv_core.3} parent=0 // pred_check
    _
  $region3: #{_gridconv_core.3} parent=0 // pred_check_branch
    %12 = sbr.rel (0) target = $region5
  $region4: #{_gridconv_core.3} parent=0 // pred_region
    _
  $region5: #{_gridconv_core.3} parent=0 // pred_fallthru
    _
  // Predicated region
  $region6: #{_gridconv_core.3} parent=0 // pred_check
    _
  $region7: #{_gridconv_core.3} parent=0 // pred_check_branch
    %14 = sbr.rel (0) target = $region9
  $region8: #{_gridconv_core.3} parent=0 // pred_region
    _
  $region9: #{_gridconv_core.3} parent=0 // pred_fallthru
    _
  // Predicated region
  $region10: #{_gridconv_core.3} parent=0 // pred_check
    _
  $region11: #{_gridconv_core.3} parent=0 // pred_check_branch
    %16 = sbr.rel (0) target = $region13
  $region12: #{_gridconv_core.3} parent=0 // pred_region
    _
  $region13: #{_gridconv_core.3} parent=0 // pred_fallthru
    _
  %v17 = vld [vmem:[%s0] sm:$0xff]
  %v18 = vld [vmem:[%s0 + $0x8] sm:$0xff]
  %v19 = vld [vmem:[%s0 + $0x10] sm:$0xff]
  %v20 = vld [vmem:[%s0 + $0x18] sm:$0xff]
  %v21 = vld [vmem:[%s0 + $0x20] sm:$0xff]
  %v22 = vld [vmem:[%s0 + $0x28] sm:$0xff]
  %v23 = vld [vmem:[%s0 + $0x30] sm:$0xff]
  %v24 = vld [vmem:[%s0 + $0x38] sm:$0xff]
  %v25 = vld [vmem:[%s2] sm:$0xff]
  %v26 = vld [vmem:[%s2 + $0x8] sm:$0xff]
  %v27 = vld [vmem:[%s2 + $0x10] sm:$0xff]
  %v28 = vld [vmem:[%s2 + $0x18] sm:$0xff]
  %v29 = vld [vmem:[%s2 + $0x20] sm:$0xff]
  %v30 = vld [vmem:[%s2 + $0x28] sm:$0xff]
  %v31 = vld [vmem:[%s2 + $0x30] sm:$0xff]
  %v32 = vld [vmem:[%s2 + $0x38] sm:$0xff]
  %v33 = vld [vmem:[%s2 + $0x40] sm:$0xff]
  %v34 = vld [vmem:[%s2 + $0x48] sm:$0xff]
  %v35 = vld [vmem:[%s2 + $0x50] sm:$0xff]
  %v36 = vld [vmem:[%s2 + $0x58] sm:$0xff]
  %v37 = vld [vmem:[%s2 + $0x60] sm:$0xff]
  %v38 = vld [vmem:[%s2 + $0x68] sm:$0xff]
  %v39 = vld [vmem:[%s2 + $0x70] sm:$0xff]
  %v40 = vld [vmem:[%s2 + $0x78] sm:$0xff]
  %v41 = vld [vmem:[%s2 + $0x80] sm:$0xff]
  %v42 = vld [vmem:[%s2 + $0x88] sm:$0xff]
  %v43 = vld [vmem:[%s2 + $0x90] sm:$0xff]
  %v44 = vld [vmem:[%s2 + $0x98] sm:$0xff]
  %v45 = vld [vmem:[%s2 + $0xa0] sm:$0xff]
  %v46 = vld [vmem:[%s2 + $0xa8] sm:$0xff]
  %v47 = vld [vmem:[%s2 + $0xb0] sm:$0xff]
  %v48 = vld [vmem:[%s2 + $0xb8] sm:$0xff]
  %v49 = vld [vmem:[%s2 + $0xc0] sm:$0xff]
  %v50 = vld [vmem:[%s2 + $0xc8] sm:$0xff]
  %v51 = vld [vmem:[%s2 + $0xd0] sm:$0xff]
  %v52 = vld [vmem:[%s2 + $0xd8] sm:$0xff]
  %v53 = vld [vmem:[%s2 + $0xe0] sm:$0xff]
  %v54 = vld [vmem:[%s2 + $0xe8] sm:$0xff]
  %v55 = vld [vmem:[%s2 + $0xf0] sm:$0xff]
  %v56 = vld [vmem:[%s2 + $0xf8] sm:$0xff]
  %v57 = vld [vmem:[%s2 + $0x100] sm:$0xff]
  %v58 = vld [vmem:[%s2 + $0x108] sm:$0xff]
  %v59 = vld [vmem:[%s2 + $0x110] sm:$0xff]
  %v60 = vld [vmem:[%s2 + $0x118] sm:$0xff]
  %v61 = vld [vmem:[%s2 + $0x120] sm:$0xff]
  %v62 = vld [vmem:[%s2 + $0x128] sm:$0xff]
  %v63 = vld [vmem:[%s2 + $0x130] sm:$0xff]
  %v64 = vld [vmem:[%s2 + $0x138] sm:$0xff]
  %v65 = vld [vmem:[%s2 + $0x140] sm:$0xff]
  %v66 = vld [vmem:[%s2 + $0x148] sm:$0xff]
  %v67 = vld [vmem:[%s2 + $0x150] sm:$0xff]
  %v68 = vld [vmem:[%s2 + $0x158] sm:$0xff]
  %v69 = vld [vmem:[%s2 + $0x160] sm:$0xff]
  %v70 = vld [vmem:[%s2 + $0x168] sm:$0xff]
  %v71 = vld [vmem:[%s2 + $0x170] sm:$0xff]
  %v72 = vld [vmem:[%s2 + $0x178] sm:$0xff]
  %v73 = vld [vmem:[%s2 + $0x180] sm:$0xff]
  %v74 = vld [vmem:[%s2 + $0x188] sm:$0xff]
  %v75 = vld [vmem:[%s2 + $0x190] sm:$0xff]
  %v76 = vld [vmem:[%s2 + $0x198] sm:$0xff]
  %v77 = vld [vmem:[%s2 + $0x1a0] sm:$0xff]
  %v78 = vld [vmem:[%s2 + $0x1a8] sm:$0xff]
  %v79 = vld [vmem:[%s2 + $0x1b0] sm:$0xff]
  %v80 = vld [vmem:[%s2 + $0x1b8] sm:$0xff]
  %v81 = vld [vmem:[%s2 + $0x1c0] sm:$0xff]
  %v82 = vld [vmem:[%s2 + $0x1c8] sm:$0xff]
  %v83 = vld [vmem:[%s2 + $0x1d0] sm:$0xff]
  %v84 = vld [vmem:[%s2 + $0x1d8] sm:$0xff]
  %v85 = vld [vmem:[%s2 + $0x1e0] sm:$0xff]
  %v86 = vld [vmem:[%s2 + $0x1e8] sm:$0xff]
  %v87 = vld [vmem:[%s2 + $0x1f0] sm:$0xff]
  %v88 = vld [vmem:[%s2 + $0x1f8] sm:$0xff]
  %v89 = vmul.f32 %v25, %v25
  %v90 = vmul.f32 %v26, %v26
  %v91 = vmul.f32 %v27, %v27
  %v92 = vmul.f32 %v28, %v28
  %v93 = vmul.f32 %v29, %v29
  %v94 = vmul.f32 %v30, %v30
  %v95 = vmul.f32 %v31, %v31
  %v96 = vmul.f32 %v32, %v32
  %v97 = vmul.f32 %v33, %v33
  %v98 = vmul.f32 %v34, %v34
  %v99 = vmul.f32 %v35, %v35
  %v100 = vmul.f32 %v36, %v36
  %v101 = vmul.f32 %v37, %v37
  %v102 = vmul.f32 %v38, %v38
  %v103 = vmul.f32 %v39, %v39
  %v104 = vmul.f32 %v40, %v40
  %v105 = vmul.f32 %v41, %v41
  %v106 = vmul.f32 %v42, %v42
  %v107 = vmul.f32 %v43, %v43
  %v108 = vmul.f32 %v44, %v44
  %v109 = vmul.f32 %v45, %v45
  %v110 = vmul.f32 %v46, %v46
  %v111 = vmul.f32 %v47, %v47
  %v112 = vmul.f32 %v48, %v48
  %v113 = vmul.f32 %v49, %v49
  %v114 = vmul.f32 %v50, %v50
  %v115 = vmul.f32 %v51, %v51
  %v116 = vmul.f32 %v52, %v52
  %v117 = vmul.f32 %v53, %v53
  %v118 = vmul.f32 %v54, %v54
  %v119 = vmul.f32 %v55, %v55
  %v120 = vmul.f32 %v56, %v56
  %v121 = vmul.f32 %v57, %v57
  %v122 = vmul.f32 %v58, %v58
  %v123 = vmul.f32 %v59, %v59
  %v124 = vmul.f32 %v60, %v60
  %v125 = vmul.f32 %v61, %v61
  %v126 = vmul.f32 %v62, %v62
  %v127 = vmul.f32 %v63, %v63
  %v128 = vmul.f32 %v64, %v64
  %v129 = vmul.f32 %v65, %v65
  %v130 = vmul.f32 %v66, %v66
  %v131 = vmul.f32 %v67, %v67
  %v132 = vmul.f32 %v68, %v68
  %v133 = vmul.f32 %v69, %v69
  %v134 = vmul.f32 %v70, %v70
  %v135 = vmul.f32 %v71, %v71
  %v136 = vmul.f32 %v72, %v72
  %v137 = vmul.f32 %v73, %v73
  %v138 = vmul.f32 %v74, %v74
  %v139 = vmul.f32 %v75, %v75
  %v140 = vmul.f32 %v76, %v76
  %v141 = vmul.f32 %v77, %v77
  %v142 = vmul.f32 %v78, %v78
  %v143 = vmul.f32 %v79, %v79
  %v144 = vmul.f32 %v80, %v80
  %v145 = vmul.f32 %v81, %v81
  %v146 = vmul.f32 %v82, %v82
  %v147 = vmul.f32 %v83, %v83
  %v148 = vmul.f32 %v84, %v84
  %v149 = vmul.f32 %v85, %v85
  %v150 = vmul.f32 %v86, %v86
  %v151 = vmul.f32 %v87, %v87
  %v152 = vmul.f32 %v88, %v88
  %v153 = vadd.f32 %v89, %v91
  %v154 = vadd.f32 %v153, %v93
  %v155 = vadd.f32 %v154, %v95
  %v156 = vadd.f32 %v155, %v97
  %v157 = vadd.f32 %v156, %v99
  %v158 = vadd.f32 %v157, %v101
  %v159 = vadd.f32 %v158, %v103
  %v160 = vadd.f32 %v159, %v105
  %v161 = vadd.f32 %v160, %v107
  %v162 = vadd.f32 %v161, %v109
  %v163 = vadd.f32 %v162, %v111
  %v164 = vadd.f32 %v163, %v113
  %v165 = vadd.f32 %v164, %v115
  %v166 = vadd.f32 %v165, %v117
  %v167 = vadd.f32 %v166, %v119
  %v168 = vadd.f32 %v167, %v121
  %v169 = vadd.f32 %v168, %v123
  %v170 = vadd.f32 %v169, %v125
  %v171 = vadd.f32 %v170, %v127
  %v172 = vadd.f32 %v171, %v129
  %v173 = vadd.f32 %v172, %v131
  %v174 = vadd.f32 %v173, %v133
  %v175 = vadd.f32 %v174, %v135
  %v176 = vadd.f32 %v175, %v137
  %v177 = vadd.f32 %v176, %v139
  %v178 = vadd.f32 %v177, %v141
  %v179 = vadd.f32 %v178, %v143
  %v180 = vadd.f32 %v179, %v145
  %v181 = vadd.f32 %v180, %v147
  %v182 = vadd.f32 %v181, %v149
  %v183 = vadd.f32 %v182, %v151
  %v184 = vrot.slane %v183, 4
  %v185 = vadd.f32 %v183, %v184
  %v186 = vrot.slane %v185, 2
  %v187 = vadd.f32 %v185, %v186
  %v188 = vrot.slane %v187, 1
  %v189 = vadd.f32 %v187, %v188
  %v190 = vadd.f32 %v90, %v92
  %v191 = vadd.f32 %v190, %v94
  %v192 = vadd.f32 %v191, %v96
  %v193 = vadd.f32 %v192, %v98
  %v194 = vadd.f32 %v193, %v100
  %v195 = vadd.f32 %v194, %v102
  %v196 = vadd.f32 %v195, %v104
  %v197 = vadd.f32 %v196, %v106
  %v198 = vadd.f32 %v197, %v108
  %v199 = vadd.f32 %v198, %v110
  %v200 = vadd.f32 %v199, %v112
  %v201 = vadd.f32 %v200, %v114
  %v202 = vadd.f32 %v201, %v116
  %v203 = vadd.f32 %v202, %v118
  %v204 = vadd.f32 %v203, %v120
  %v205 = vadd.f32 %v204, %v122
  %v206 = vadd.f32 %v205, %v124
  %v207 = vadd.f32 %v206, %v126
  %v208 = vadd.f32 %v207, %v128
  %v209 = vadd.f32 %v208, %v130
  %v210 = vadd.f32 %v209, %v132
  %v211 = vadd.f32 %v210, %v134
  %v212 = vadd.f32 %v211, %v136
  %v213 = vadd.f32 %v212, %v138
  %v214 = vadd.f32 %v213, %v140
  %v215 = vadd.f32 %v214, %v142
  %v216 = vadd.f32 %v215, %v144
  %v217 = vadd.f32 %v216, %v146
  %v218 = vadd.f32 %v217, %v148
  %v219 = vadd.f32 %v218, %v150
  %v220 = vadd.f32 %v219, %v152
  %v221 = vrot.slane %v220, 4
  %v222 = vadd.f32 %v220, %v221
  %v223 = vrot.slane %v222, 2
  %v224 = vadd.f32 %v222, %v223
  %v225 = vrot.slane %v224, 1
  %v226 = vadd.f32 %v224, %v225
  %v227 = vmax.f32 %v189, 1e-08
  %v228 = vmax.f32 %v226, 1e-08
  %v229 = vrsqrt.pop %v227
  %v230 = vrsqrt.pop %v228
  %v231 = vpack.c.bf16 %v27, %v25
  %v232 = vpack.c.bf16 %v28, %v26
  %v233 = vpack.c.bf16 %v31, %v29
  %v234 = vpack.c.bf16 %v32, %v30
  %v235 = vpack.c.bf16 %v35, %v33
  %v236 = vpack.c.bf16 %v36, %v34
  %v237 = vpack.c.bf16 %v39, %v37
  %v238 = vpack.c.bf16 %v40, %v38
  %v239 = vpack.c.bf16 %v43, %v41
  %v240 = vpack.c.bf16 %v44, %v42
  %v241 = vpack.c.bf16 %v47, %v45
  %v242 = vpack.c.bf16 %v48, %v46
  %v243 = vpack.c.bf16 %v51, %v49
  %v244 = vpack.c.bf16 %v52, %v50
  %v245 = vpack.c.bf16 %v55, %v53
  %v246 = vpack.c.bf16 %v56, %v54
  %v247 = vpack.c.bf16 %v59, %v57
  %v248 = vpack.c.bf16 %v60, %v58
  %v249 = vpack.c.bf16 %v63, %v61
  %v250 = vpack.c.bf16 %v64, %v62
  %v251 = vpack.c.bf16 %v67, %v65
  %v252 = vpack.c.bf16 %v68, %v66
  %v253 = vpack.c.bf16 %v71, %v69
  %v254 = vpack.c.bf16 %v72, %v70
  %v255 = vpack.c.bf16 %v75, %v73
  %v256 = vpack.c.bf16 %v76, %v74
  %v257 = vpack.c.bf16 %v79, %v77
  %v258 = vpack.c.bf16 %v80, %v78
  %v259 = vpack.c.bf16 %v83, %v81
  %v260 = vpack.c.bf16 %v84, %v82
  %v261 = vpack.c.bf16 %v87, %v85
  %v262 = vpack.c.bf16 %v88, %v86
  %v271 = vunpack.c.l.b16 %v17
  %v272 = vunpack.c.h.b16 %v17
  %v273 = vunpack.c.l.b16 %v18
  %v274 = vunpack.c.h.b16 %v18
  %v275 = vunpack.c.l.b16 %v19
  %v276 = vunpack.c.h.b16 %v19
  %v277 = vunpack.c.l.b16 %v20
  %v278 = vunpack.c.h.b16 %v20
  %v279 = vunpack.c.l.b16 %v21
  %v280 = vunpack.c.h.b16 %v21
  %v281 = vunpack.c.l.b16 %v22
  %v282 = vunpack.c.h.b16 %v22
  %v283 = vunpack.c.l.b16 %v23
  %v284 = vunpack.c.h.b16 %v23
  %v285 = vunpack.c.l.b16 %v24
  %v286 = vunpack.c.h.b16 %v24
  %v287 = vpack.c.b16 %v273, %v271
  %v288 = vpack.c.b16 %v274, %v272
  %v289 = vpack.c.b16 %v277, %v275
  %v290 = vpack.c.b16 %v278, %v276
  %v291 = vpack.c.b16 %v281, %v279
  %v292 = vpack.c.b16 %v282, %v280
  %v293 = vpack.c.b16 %v285, %v283
  %v294 = vpack.c.b16 %v286, %v284
  %303 = vmatprep.subr.bf16.mxu0 %v246
  %304 = vmatpush1.bf16.msra.mxu0 %v245
  %305 = vmatprep.subr.bf16.mxu0 %v244
  %306 = vmatpush1.bf16.msra.mxu0 %v243
  %307 = vmatprep.subr.bf16.mxu0 %v242
  %308 = vmatpush1.bf16.msra.mxu0 %v241
  %309 = vmatprep.subr.bf16.mxu0 %v240
  %310 = vmatpush1.bf16.msra.mxu0 %v239
  %311 = vmatprep.subr.bf16.mxu0 %v238
  %312 = vmatpush1.bf16.msra.mxu0 %v237
  %313 = vmatprep.subr.bf16.mxu0 %v236
  %314 = vmatpush1.bf16.msra.mxu0 %v235
  %315 = vmatprep.subr.bf16.mxu0 %v234
  %316 = vmatpush1.bf16.msra.mxu0 %v233
  %317 = vmatprep.subr.bf16.mxu0 %v232
  %318 = vmatpush1.bf16.msra.mxu0 %v231
  %319 = vmatprep.subr.bf16.mxu0 %v262
  %320 = vmatpush2.bf16.msra.mxu0 %v261
  %321 = vmatprep.subr.bf16.mxu0 %v260
  %322 = vmatpush2.bf16.msra.mxu0 %v259
  %323 = vmatprep.subr.bf16.mxu0 %v258
  %324 = vmatpush2.bf16.msra.mxu0 %v257
  %325 = vmatprep.subr.bf16.mxu0 %v256
  %326 = vmatpush2.bf16.msra.mxu0 %v255
  %327 = vmatprep.subr.bf16.mxu0 %v254
  %328 = vmatpush2.bf16.msra.mxu0 %v253
  %329 = vmatprep.subr.bf16.mxu0 %v252
  %330 = vmatpush2.bf16.msra.mxu0 %v251
  %331 = vmatprep.subr.bf16.mxu0 %v250
  %332 = vmatpush2.bf16.msra.mxu0 %v249
  %333 = vmatprep.subr.bf16.mxu0 %v248
  %334 = vmatpush2.bf16.msra.mxu0 %v247
  %335 = vmatprep.mubr.bf16.mxu0 %v288
  %336 = vmatmul.mubr.bf16.gmra.mxu0 %v287
  %v337 = vpop.f32.mrf.mxu0
  %v338 = vadd.f32 0.0, %v337
  %v339 = vpop.f32.mrf.mxu0
  %v340 = vadd.f32 0.0, %v339
  %v341 = vpop.f32.mrf.mxu0
  %v342 = vadd.f32 0.0, %v341
  %v343 = vpop.f32.mrf.mxu0
  %v344 = vadd.f32 0.0, %v343
  %345 = vmatprep.mubr.bf16.mxu0 %v290
  %346 = vmatmul.mubr.bf16.gmra.mxu0 %v289
  %v347 = vpop.f32.mrf.mxu0
  %v348 = vadd.f32 0.0, %v347
  %v349 = vpop.f32.mrf.mxu0
  %v350 = vadd.f32 0.0, %v349
  %v351 = vpop.f32.mrf.mxu0
  %v352 = vadd.f32 0.0, %v351
  %v353 = vpop.f32.mrf.mxu0
  %v354 = vadd.f32 0.0, %v353
  %355 = vmatprep.mubr.bf16.mxu0 %v292
  %356 = vmatmul.mubr.bf16.gmra.mxu0 %v291
  %v357 = vpop.f32.mrf.mxu0
  %v358 = vadd.f32 0.0, %v357
  %v359 = vpop.f32.mrf.mxu0
  %v360 = vadd.f32 0.0, %v359
  %v361 = vpop.f32.mrf.mxu0
  %v362 = vadd.f32 0.0, %v361
  %v363 = vpop.f32.mrf.mxu0
  %v364 = vadd.f32 0.0, %v363
  %365 = vmatprep.mubr.bf16.mxu0 %v294
  %366 = vmatmul.mubr.bf16.gmra.mxu0 %v293
  %v367 = vpop.f32.mrf.mxu0
  %v368 = vadd.f32 0.0, %v367
  %v369 = vpop.f32.mrf.mxu0
  %v370 = vadd.f32 0.0, %v369
  %v371 = vpop.f32.mrf.mxu0
  %v372 = vadd.f32 0.0, %v371
  %v373 = vpop.f32.mrf.mxu0
  %v374 = vadd.f32 0.0, %v373
  %375 = vdwg.mxu0
  %v376 = vmul.f32 %v338, %v229
  %v377 = vmul.f32 %v340, %v230
  %v378 = vmul.f32 %v342, %v229
  %v379 = vmul.f32 %v344, %v230
  %v380 = vmul.f32 %v348, %v229
  %v381 = vmul.f32 %v350, %v230
  %v382 = vmul.f32 %v352, %v229
  %v383 = vmul.f32 %v354, %v230
  %v384 = vmul.f32 %v358, %v229
  %v385 = vmul.f32 %v360, %v230
  %v386 = vmul.f32 %v362, %v229
  %v387 = vmul.f32 %v364, %v230
  %v388 = vmul.f32 %v368, %v229
  %v389 = vmul.f32 %v370, %v230
  %v390 = vmul.f32 %v372, %v229
  %v391 = vmul.f32 %v374, %v230
  %v392 = vld [vmem:[%s1] sm:$0xff]
  %v393 = vld [vmem:[%s1 + $0x8] sm:$0xff]
  %v394 = vld [vmem:[%s1 + $0x10] sm:$0xff]
  %v395 = vld [vmem:[%s1 + $0x18] sm:$0xff]
  %v396 = vld [vmem:[%s1 + $0x20] sm:$0xff]
  %v397 = vld [vmem:[%s1 + $0x28] sm:$0xff]
  %v398 = vld [vmem:[%s1 + $0x30] sm:$0xff]
  %v399 = vld [vmem:[%s1 + $0x38] sm:$0xff]
  %401 = vset.pattern.permute.xlu0 0
  %402 = vperm.xlu0 %401, %v392
  %v403 = vpop.permute.xlu0 %402
  %406 = vset.pattern.permute.xlu0 0
  %407 = vperm.xlu0 %406, %v393
  %v408 = vpop.permute.xlu0 %407
  %411 = vset.pattern.permute.xlu0 0
  %412 = vperm.xlu0 %411, %v394
  %v413 = vpop.permute.xlu0 %412
  %416 = vset.pattern.permute.xlu0 0
  %417 = vperm.xlu0 %416, %v395
  %v418 = vpop.permute.xlu0 %417
  %421 = vset.pattern.permute.xlu0 0
  %422 = vperm.xlu0 %421, %v396
  %v423 = vpop.permute.xlu0 %422
  %426 = vset.pattern.permute.xlu0 0
  %427 = vperm.xlu0 %426, %v397
  %v428 = vpop.permute.xlu0 %427
  %431 = vset.pattern.permute.xlu0 0
  %432 = vperm.xlu0 %431, %v398
  %v433 = vpop.permute.xlu0 %432
  %436 = vset.pattern.permute.xlu0 0
  %437 = vperm.xlu0 %436, %v399
  %v438 = vpop.permute.xlu0 %437
  %v440 = vadd.f32 %v376, %v403
  %v441 = vadd.f32 %v377, %v403
  %v442 = vadd.f32 %v378, %v408
  %v443 = vadd.f32 %v379, %v408
  %v444 = vadd.f32 %v380, %v413
  %v445 = vadd.f32 %v381, %v413
  %v446 = vadd.f32 %v382, %v418
  %v447 = vadd.f32 %v383, %v418
  %v448 = vadd.f32 %v384, %v423
  %v449 = vadd.f32 %v385, %v423
  %v450 = vadd.f32 %v386, %v428
  %v451 = vadd.f32 %v387, %v428
  %v452 = vadd.f32 %v388, %v433
  %v453 = vadd.f32 %v389, %v433
  %v454 = vadd.f32 %v390, %v438
  %v455 = vadd.f32 %v391, %v438
  %v456 = vmax.f32 %v440, %v444
  %v457 = vmax.f32 %v442, %v446
  %v458 = vmax.f32 %v456, %v448
  %v459 = vmax.f32 %v457, %v450
  %v460 = vmax.f32 %v458, %v452
  %v461 = vmax.f32 %v459, %v454
  %v462 = vmax.f32 %v460, %v461
  %v463 = vrot.slane %v462, 4
  %v464 = vmax.f32 %v462, %v463
  %v465 = vrot.slane %v464, 2
  %v466 = vmax.f32 %v464, %v465
  %v467 = vrot.slane %v466, 1
  %v468 = vmax.f32 %v466, %v467
  %v469 = vmax.f32 %v441, %v445
  %v470 = vmax.f32 %v443, %v447
  %v471 = vmax.f32 %v469, %v449
  %v472 = vmax.f32 %v470, %v451
  %v473 = vmax.f32 %v471, %v453
  %v474 = vmax.f32 %v472, %v455
  %v475 = vmax.f32 %v473, %v474
  %v476 = vrot.slane %v475, 4
  %v477 = vmax.f32 %v475, %v476
  %v478 = vrot.slane %v477, 2
  %v479 = vmax.f32 %v477, %v478
  %v480 = vrot.slane %v479, 1
  %v481 = vmax.f32 %v479, %v480
  %v482 = vsub.f32 %v440, %v468
  %v483 = vsub.f32 %v441, %v481
  %v484 = vsub.f32 %v442, %v468
  %v485 = vsub.f32 %v443, %v481
  %v486 = vsub.f32 %v444, %v468
  %v487 = vsub.f32 %v445, %v481
  %v488 = vsub.f32 %v446, %v468
  %v489 = vsub.f32 %v447, %v481
  %v490 = vsub.f32 %v448, %v468
  %v491 = vsub.f32 %v449, %v481
  %v492 = vsub.f32 %v450, %v468
  %v493 = vsub.f32 %v451, %v481
  %v494 = vsub.f32 %v452, %v468
  %v495 = vsub.f32 %v453, %v481
  %v496 = vsub.f32 %v454, %v468
  %v497 = vsub.f32 %v455, %v481
  %v498 = vmul.f32 %v482, 1.442695
  %v499 = vpow.pop %v498
  %v500 = vmul.f32 %v483, 1.442695
  %v501 = vpow.pop %v500
  %v502 = vmul.f32 %v484, 1.442695
  %v503 = vpow.pop %v502
  %v504 = vmul.f32 %v485, 1.442695
  %v505 = vpow.pop %v504
  %v506 = vmul.f32 %v486, 1.442695
  %v507 = vpow.pop %v506
  %v508 = vmul.f32 %v487, 1.442695
  %v509 = vpow.pop %v508
  %v510 = vmul.f32 %v488, 1.442695
  %v511 = vpow.pop %v510
  %v512 = vmul.f32 %v489, 1.442695
  %v513 = vpow.pop %v512
  %v514 = vmul.f32 %v490, 1.442695
  %v515 = vpow.pop %v514
  %v516 = vmul.f32 %v491, 1.442695
  %v517 = vpow.pop %v516
  %v518 = vmul.f32 %v492, 1.442695
  %v519 = vpow.pop %v518
  %v520 = vmul.f32 %v493, 1.442695
  %v521 = vpow.pop %v520
  %v522 = vmul.f32 %v494, 1.442695
  %v523 = vpow.pop %v522
  %v524 = vmul.f32 %v495, 1.442695
  %v525 = vpow.pop %v524
  %v526 = vmul.f32 %v496, 1.442695
  %v527 = vpow.pop %v526
  %v528 = vmul.f32 %v497, 1.442695
  %v529 = vpow.pop %v528
  %v530 = vadd.f32 %v499, %v503
  %v531 = vadd.f32 %v530, %v507
  %v532 = vadd.f32 %v531, %v511
  %v533 = vadd.f32 %v532, %v515
  %v534 = vadd.f32 %v533, %v519
  %v535 = vadd.f32 %v534, %v523
  %v536 = vadd.f32 %v535, %v527
  %v537 = vrot.slane %v536, 4
  %v538 = vadd.f32 %v536, %v537
  %v539 = vrot.slane %v538, 2
  %v540 = vadd.f32 %v538, %v539
  %v541 = vrot.slane %v540, 1
  %v542 = vadd.f32 %v540, %v541
  %v543 = vadd.f32 %v501, %v505
  %v544 = vadd.f32 %v543, %v509
  %v545 = vadd.f32 %v544, %v513
  %v546 = vadd.f32 %v545, %v517
  %v547 = vadd.f32 %v546, %v521
  %v548 = vadd.f32 %v547, %v525
  %v549 = vadd.f32 %v548, %v529
  %v550 = vrot.slane %v549, 4
  %v551 = vadd.f32 %v549, %v550
  %v552 = vrot.slane %v551, 2
  %v553 = vadd.f32 %v551, %v552
  %v554 = vrot.slane %v553, 1
  %v555 = vadd.f32 %v553, %v554
  %v556 = vrcp.pop %v542
  %v557 = vrcp.pop %v555
  %v558 = vmul.f32 %v499, %v376
  %v559 = vmul.f32 %v501, %v377
  %v560 = vmul.f32 %v503, %v378
  %v561 = vmul.f32 %v505, %v379
  %v562 = vmul.f32 %v507, %v380
  %v563 = vmul.f32 %v509, %v381
  %v564 = vmul.f32 %v511, %v382
  %v565 = vmul.f32 %v513, %v383
  %v566 = vmul.f32 %v515, %v384
  %v567 = vmul.f32 %v517, %v385
  %v568 = vmul.f32 %v519, %v386
  %v569 = vmul.f32 %v521, %v387
  %v570 = vmul.f32 %v523, %v388
  %v571 = vmul.f32 %v525, %v389
  %v572 = vmul.f32 %v527, %v390
  %v573 = vmul.f32 %v529, %v391
  %v574 = vadd.f32 %v558, %v560
  %v575 = vadd.f32 %v574, %v562
  %v576 = vadd.f32 %v575, %v564
  %v577 = vadd.f32 %v576, %v566
  %v578 = vadd.f32 %v577, %v568
  %v579 = vadd.f32 %v578, %v570
  %v580 = vadd.f32 %v579, %v572
  %v581 = vrot.slane %v580, 4
  %v582 = vadd.f32 %v580, %v581
  %v583 = vrot.slane %v582, 2
  %v584 = vadd.f32 %v582, %v583
  %v585 = vrot.slane %v584, 1
  %v586 = vadd.f32 %v584, %v585
  %v587 = vadd.f32 %v559, %v561
  %v588 = vadd.f32 %v587, %v563
  %v589 = vadd.f32 %v588, %v565
  %v590 = vadd.f32 %v589, %v567
  %v591 = vadd.f32 %v590, %v569
  %v592 = vadd.f32 %v591, %v571
  %v593 = vadd.f32 %v592, %v573
  %v594 = vrot.slane %v593, 4
  %v595 = vadd.f32 %v593, %v594
  %v596 = vrot.slane %v595, 2
  %v597 = vadd.f32 %v595, %v596
  %v598 = vrot.slane %v597, 1
  %v599 = vadd.f32 %v597, %v598
  %v600 = vmul.f32 %v586, %v556
  %v601 = vmul.f32 %v599, %v557
  %602 = vst [vmem:[%s3] sm:$0xff] %v376
  %603 = vst [vmem:[%s3 + $0x8] sm:$0xff] %v377
  %604 = vst [vmem:[%s3 + $0x10] sm:$0xff] %v378
  %605 = vst [vmem:[%s3 + $0x18] sm:$0xff] %v379
  %606 = vst [vmem:[%s3 + $0x20] sm:$0xff] %v380
  %607 = vst [vmem:[%s3 + $0x28] sm:$0xff] %v381
  %608 = vst [vmem:[%s3 + $0x30] sm:$0xff] %v382
  %609 = vst [vmem:[%s3 + $0x38] sm:$0xff] %v383
  %610 = vst [vmem:[%s3 + $0x40] sm:$0xff] %v384
  %611 = vst [vmem:[%s3 + $0x48] sm:$0xff] %v385
  %612 = vst [vmem:[%s3 + $0x50] sm:$0xff] %v386
  %613 = vst [vmem:[%s3 + $0x58] sm:$0xff] %v387
  %614 = vst [vmem:[%s3 + $0x60] sm:$0xff] %v388
  %615 = vst [vmem:[%s3 + $0x68] sm:$0xff] %v389
  %616 = vst [vmem:[%s3 + $0x70] sm:$0xff] %v390
  %617 = vst [vmem:[%s3 + $0x78] sm:$0xff] %v391
  %v620 = vcombine.low %v600, %v601
  %v622 = vunpack.c.l.s4 1966171168
  %v623 = vunpack.c.0.s8 %v622
  %v624 = vlaneseq
  %v625 = vshrl.u32 %v624, 7
  %v626 = vsub.s32 %v623, %v625
  %v627 = vrot.slane %v620, %v626
  %v629 = vunpack.c.l.s4 1966171168
  %v630 = vunpack.c.0.s8 %v629
  %v631 = vlaneseq
  %v632 = vshrl.u32 %v631, 7
  %v633 = vsub.s32 %v630, %v632
  %v634 = vrot.slane %v627, %v633
  %v636 = vlaneseq
  %vm637 = vcmp.ge.s32.totalorder %v636, 0
  %vm638 = vcmp.lt.s32.totalorder %v636, 256
  %vm639 = vmand %vm637, %vm638
  %640 = vst.msk [vmem:[%s4] sm:$0x3] %vm639, %v634
  %v641 = vld [vmem:[%s1] sm:$0xff]
  %v642 = vld [vmem:[%s1 + $0x8] sm:$0xff]
  %v643 = vld [vmem:[%s1 + $0x10] sm:$0xff]
  %v644 = vld [vmem:[%s1 + $0x18] sm:$0xff]
  %v645 = vld [vmem:[%s1 + $0x20] sm:$0xff]
  %v646 = vld [vmem:[%s1 + $0x28] sm:$0xff]
  %v647 = vld [vmem:[%s1 + $0x30] sm:$0xff]
  %v648 = vld [vmem:[%s1 + $0x38] sm:$0xff]
  %650 = vset.pattern.permute.xlu0 1
  %651 = vperm.xlu0 %650, %v641
  %v652 = vpop.permute.xlu0 %651
  %655 = vset.pattern.permute.xlu0 1
  %656 = vperm.xlu0 %655, %v642
  %v657 = vpop.permute.xlu0 %656
  %660 = vset.pattern.permute.xlu0 1
  %661 = vperm.xlu0 %660, %v643
  %v662 = vpop.permute.xlu0 %661
  %665 = vset.pattern.permute.xlu0 1
  %666 = vperm.xlu0 %665, %v644
  %v667 = vpop.permute.xlu0 %666
  %670 = vset.pattern.permute.xlu0 1
  %671 = vperm.xlu0 %670, %v645
  %v672 = vpop.permute.xlu0 %671
  %675 = vset.pattern.permute.xlu0 1
  %676 = vperm.xlu0 %675, %v646
  %v677 = vpop.permute.xlu0 %676
  %680 = vset.pattern.permute.xlu0 1
  %681 = vperm.xlu0 %680, %v647
  %v682 = vpop.permute.xlu0 %681
  %685 = vset.pattern.permute.xlu0 1
  %686 = vperm.xlu0 %685, %v648
  %v687 = vpop.permute.xlu0 %686
  %vm689 = vcmp.ge.f32.partialorder %v440, %v468
  %vm690 = vcmp.ge.f32.partialorder %v441, %v481
  %vm691 = vcmp.ge.f32.partialorder %v442, %v468
  %vm692 = vcmp.ge.f32.partialorder %v443, %v481
  %vm693 = vcmp.ge.f32.partialorder %v444, %v468
  %vm694 = vcmp.ge.f32.partialorder %v445, %v481
  %vm695 = vcmp.ge.f32.partialorder %v446, %v468
  %vm696 = vcmp.ge.f32.partialorder %v447, %v481
  %vm697 = vcmp.ge.f32.partialorder %v448, %v468
  %vm698 = vcmp.ge.f32.partialorder %v449, %v481
  %vm699 = vcmp.ge.f32.partialorder %v450, %v468
  %vm700 = vcmp.ge.f32.partialorder %v451, %v481
  %vm701 = vcmp.ge.f32.partialorder %v452, %v468
  %vm702 = vcmp.ge.f32.partialorder %v453, %v481
  %vm703 = vcmp.ge.f32.partialorder %v454, %v468
  %vm704 = vcmp.ge.f32.partialorder %v455, %v481
  %v705 = vsel %vm689, %v652, 1e+09
  %v706 = vsel %vm690, %v652, 1e+09
  %v707 = vsel %vm691, %v657, 1e+09
  %v708 = vsel %vm692, %v657, 1e+09
  %v709 = vsel %vm693, %v662, 1e+09
  %v710 = vsel %vm694, %v662, 1e+09
  %v711 = vsel %vm695, %v667, 1e+09
  %v712 = vsel %vm696, %v667, 1e+09
  %v713 = vsel %vm697, %v672, 1e+09
  %v714 = vsel %vm698, %v672, 1e+09
  %v715 = vsel %vm699, %v677, 1e+09
  %v716 = vsel %vm700, %v677, 1e+09
  %v717 = vsel %vm701, %v682, 1e+09
  %v718 = vsel %vm702, %v682, 1e+09
  %v719 = vsel %vm703, %v687, 1e+09
  %v720 = vsel %vm704, %v687, 1e+09
  %v721 = vmin.f32 %v705, %v709
  %v722 = vmin.f32 %v707, %v711
  %v723 = vmin.f32 %v721, %v713
  %v724 = vmin.f32 %v722, %v715
  %v725 = vmin.f32 %v723, %v717
  %v726 = vmin.f32 %v724, %v719
  %v727 = vmin.f32 %v725, %v726
  %v728 = vrot.slane %v727, 4
  %v729 = vmin.f32 %v727, %v728
  %v730 = vrot.slane %v729, 2
  %v731 = vmin.f32 %v729, %v730
  %v732 = vrot.slane %v731, 1
  %v733 = vmin.f32 %v731, %v732
  %v734 = vmin.f32 %v706, %v710
  %v735 = vmin.f32 %v708, %v712
  %v736 = vmin.f32 %v734, %v714
  %v737 = vmin.f32 %v735, %v716
  %v738 = vmin.f32 %v736, %v718
  %v739 = vmin.f32 %v737, %v720
  %v740 = vmin.f32 %v738, %v739
  %v741 = vrot.slane %v740, 4
  %v742 = vmin.f32 %v740, %v741
  %v743 = vrot.slane %v742, 2
  %v744 = vmin.f32 %v742, %v743
  %v745 = vrot.slane %v744, 1
  %v746 = vmin.f32 %v744, %v745
  %v749 = vcombine.low %v733, %v746
  %v751 = vunpack.c.l.s4 1966171168
  %v752 = vunpack.c.0.s8 %v751
  %v753 = vlaneseq
  %v754 = vshrl.u32 %v753, 7
  %v755 = vsub.s32 %v752, %v754
  %v756 = vrot.slane %v749, %v755
  %v758 = vunpack.c.l.s4 1966171168
  %v759 = vunpack.c.0.s8 %v758
  %v760 = vlaneseq
  %v761 = vshrl.u32 %v760, 7
  %v762 = vsub.s32 %v759, %v761
  %v763 = vrot.slane %v756, %v762
  %765 = vst.msk [vmem:[%s5] sm:$0x3] %vm639, %v763
  // Predicated region
  $region14: #{_gridconv_core.3} parent=0 // pred_check
    _
  $region15: #{_gridconv_core.3} parent=0 // pred_check_branch
    %767 = sbr.rel (0) target = $region17
  $region16: #{_gridconv_core.3} parent=0 // pred_region
    _
  $region17: #{_gridconv_core.3} parent=0 // pred_fallthru
    _
  // Predicated region
  $region18: #{_gridconv_core.3} parent=0 // pred_check
    _
  $region19: #{_gridconv_core.3} parent=0 // pred_check_branch
    %769 = sbr.rel (0) target = $region21
  $region20: #{_gridconv_core.3} parent=0 // pred_region
    _
  $region21: #{_gridconv_core.3} parent=0 // pred_fallthru
    _
  // Predicated region
  $region22: #{_gridconv_core.3} parent=0 // pred_check
    _
  $region23: #{_gridconv_core.3} parent=0 // pred_check_branch
    %771 = sbr.rel (0) target = $region25
  $region24: #{_gridconv_core.3} parent=0 // pred_region
    _
  $region25: #{_gridconv_core.3} parent=0 // pred_fallthru
    _
  // Predicated region
  $region26: #{_gridconv_core.3} parent=0 // pred_check
    _
  $region27: #{_gridconv_core.3} parent=0 // pred_check_branch
    %773 = sbr.rel (0) target = $region29
  $region28: #{_gridconv_core.3} parent=0 // pred_region
    _
  $region29: #{_gridconv_core.3} parent=0 // pred_fallthru
    _
  // Predicated region
  $region30: #{_gridconv_core.3} parent=0 // pred_check
    _
  $region31: #{_gridconv_core.3} parent=0 // pred_check_branch
    %775 = sbr.rel (0) target = $region33
  $region32: #{_gridconv_core.3} parent=0 // pred_region
    _
  $region33: #{_gridconv_core.3} parent=0 // pred_fallthru
    _
  // Predicated region
  $region34: #{_gridconv_core.3} parent=0 // pred_check
    _
  $region35: #{_gridconv_core.3} parent=0 // pred_check_branch
    %777 = sbr.rel (0) target = $region37
  $region36: #{_gridconv_core.3} parent=0 // pred_region
    _
  $region37: #{_gridconv_core.3} parent=0 // pred_fallthru
    _

</llo_original>
